<compile_context>
chip_gen: v7x
topology: tpu7x:2x2x1
jax: 0.10.0
libtpu: 0.0.40
codegen_flags: <defaults>
</compile_context>

<pallas_src>
import functools

import jax
import jax.numpy as jnp
from jax import lax
from jax.experimental import pallas as pl
from jax.experimental.pallas import tpu as pltpu


def _upsample2x_kernel(mat_ref, x_ref, o_ref, *, w, k):
    """mat_ref: SMEM (4,) f32 = [m00, m01, m10, m11].
    x_ref: (rb, k*w) — k original W-wide rows per block row.
    o_ref: (rb, 4*k*w) — per original row r the group [top_r(2w) | bot_r(2w)].
    """
    x = x_ref[...]                                   # (rb, k*w)
    rb = x.shape[0]
    dt = x.dtype

    # Duplicate each original W-wide chunk: z = [x_r | x_r | x_{r+1} | x_{r+1} | ...]
    if k == 1:
        z = jnp.concatenate([x, x], axis=-1)         # (rb, 2*w)
    else:
        pieces = []
        for g in range(k):                           # k is a small static int
            seg = x[:, g * w:(g + 1) * w]
            pieces.append(seg)
            pieces.append(seg)
        z = jnp.concatenate(pieces, axis=-1)         # (rb, 2*k*w)

    # Column interleave (each element duplicated into adjacent lanes):
    # y row = [ I(x_r) | I(x_r) | I(x_{r+1}) | I(x_{r+1}) | ... ], each I(.) 2w wide.
    y = jnp.broadcast_to(z[:, :, None], (rb, 2 * k * w, 2)).reshape(rb, 4 * k * w)

    # Periodic lane scale (period 4w): first 2w lanes alternate (m00, m01) -> even
    # output rows, next 2w lanes alternate (m10, m11) -> odd output rows.
    # All ones for HoVer-Net; kept general so any unpool buffer matches PyTorch.
    m00, m01, m10, m11 = mat_ref[0], mat_ref[1], mat_ref[2], mat_ref[3]
    odd = (lax.broadcasted_iota(jnp.int32, (1, 2 * w), 1) & 1) == 1
    top_pat = jnp.where(odd, m01, m00)               # (1, 2w) f32
    bot_pat = jnp.where(odd, m11, m10)               # (1, 2w) f32
    group = jnp.concatenate([top_pat, bot_pat], axis=-1)     # (1, 4w)
    scale = group if k == 1 else jnp.tile(group, (1, k))     # (1, 4*k*w)
    scale = scale.astype(dt)                         # keep compute in x.dtype

    # Single dense, lane-contiguous store of the full block.
    o_ref[...] = (y * scale).astype(o_ref.dtype)


def _fold_factor(num_rows, width, lane_target=128):
    """Smallest k dividing num_rows with 4*k*width >= lane_target (bounded)."""
    if 4 * width >= lane_target:
        return 1
    k0 = -(-lane_target // (4 * width))              # ceil
    for cand in range(k0, min(num_rows, 64) + 1):
        if num_rows % cand == 0:
            return cand
    return 1


def _rows_per_block(num_rows, row_bytes, target_bytes):
    """Sublane-aligned block rows; prefers an even grid (>=2 steps) for megacore."""
    cdiv = lambda a, b: -(-a // b)
    rows = max(8, int(target_bytes) // max(1, row_bytes))
    rows = min(rows, num_rows)
    rows = max(8, (rows // 8) * 8)
    if rows >= num_rows:
        # Whole array fits in one block: split in two so both v7x TCs get work.
        if num_rows >= 16:
            half = cdiv(num_rows, 2)
            half = cdiv(half, 8) * 8
            return min(half, num_rows)
        return num_rows
    # Multi-block: nudge down (bounded) to make the step count even.
    if cdiv(num_rows, rows) % 2 == 1:
        for cand in range(rows - 8, max(7, rows - 72), -8):
            if cand >= 8 and cdiv(num_rows, cand) % 2 == 0:
                return cand
    return rows


def upsample2x(x, unpool_mat, *, target_block_bytes=2 << 20,
               vmem_limit_bytes=48 << 20, out_dtype=None):
    """x: (N, C, H, W); unpool_mat: (2, 2). Returns (N, C, 2H, 2W)."""
    N, C, H, W = x.shape
    if out_dtype is None:
        out_dtype = x.dtype                          # no silent bf16 -> f32 promotion

    R = N * C * H
    k = _fold_factor(R, W)                           # fold rows for >=128-lane output
    Rk = R // k
    x2 = x.reshape(Rk, k * W)                        # contiguous merge — free

    in_item = jnp.dtype(x.dtype).itemsize
    out_item = jnp.dtype(out_dtype).itemsize
    rb = _rows_per_block(Rk, k * W * in_item, target_block_bytes)
    grid = (pl.cdiv(Rk, rb),)

    mat_flat = unpool_mat.astype(jnp.float32).reshape(4)
    kern = functools.partial(_upsample2x_kernel, w=W, k=k)

    out2 = pl.pallas_call(
        kern,
        out_shape=jax.ShapeDtypeStruct((Rk, 4 * k * W), out_dtype),
        grid_spec=pltpu.PrefetchScalarGridSpec(
            num_scalar_prefetch=1,                   # 2x2 unpool matrix -> SMEM
            grid=grid,
            in_specs=[pl.BlockSpec((rb, k * W), lambda i, mat: (i, 0))],
            out_specs=pl.BlockSpec((rb, 4 * k * W), lambda i, mat: (i, 0)),
        ),
        compiler_params=pltpu.CompilerParams(
            dimension_semantics=("parallel",),
            vmem_limit_bytes=vmem_limit_bytes,
        ),
        cost_estimate=pl.CostEstimate(
            flops=0, transcendentals=0,
            bytes_accessed=R * W * in_item + 4 * R * W * out_item,
        ),
    )(mat_flat, x2)

    # (Rk, 4kW) is exactly the row-major flat order of (N, C, 2H, 2W) — free view.
    return out2.reshape(N, C, 2 * H, 2 * W)


def _reference(x, mat):
    # out[n, c, 2i+di, 2j+dj] = x[n, c, i, j] * mat[di, dj]
    N, C, H, W = x.shape
    y = jnp.einsum("nchw,pq->nchpwq", x, mat)
    return y.reshape(N, C, 2 * H, 2 * W)


if __name__ == "__main__":
    key = jax.random.PRNGKey(0)
    N, C, H, W = 2, 4, 16, 16
    x = jax.random.normal(key, (N, C, H, W), dtype=jnp.float32)

    # Module's registered buffer: ones((2, 2), float32).
    unpool_mat = jnp.ones((2, 2), dtype=jnp.float32)

    # 1) Default (ones) matrix, narrow-W fold path (4W = 64 < 128 -> k = 2).
    out = jax.block_until_ready(upsample2x(x, unpool_mat))
    ref = jnp.repeat(jnp.repeat(x, 2, axis=2), 2, axis=3)
    assert out.shape == (N, C, 2 * H, 2 * W)
    assert out.dtype == x.dtype
    assert jnp.allclose(out, ref, atol=0.0, rtol=0.0)

    # 2) General (non-ones) unpool matrix — exercises the SMEM scale path.
    mat_g = jnp.array([[1.0, 2.0], [3.0, 4.0]], dtype=jnp.float32)
    out_g = jax.block_until_ready(upsample2x(x, mat_g))
    assert jnp.allclose(out_g, _reference(x, mat_g), atol=1e-6, rtol=1e-6)

    # 3) Multi-block grid with a partial trailing block (forced tiny tile size).
    xb = jax.random.normal(jax.random.PRNGKey(1), (1, 3, 40, 24), dtype=jnp.float32)
    out_b = jax.block_until_ready(upsample2x(xb, unpool_mat, target_block_bytes=4096))
    ref_b = jnp.repeat(jnp.repeat(xb, 2, axis=2), 2, axis=3)
    assert jnp.allclose(out_b, ref_b, atol=0.0, rtol=0.0)

    # 4) Wide feature map (4W >= 128 -> no fold, k = 1).
    xw = jax.random.normal(jax.random.PRNGKey(2), (1, 2, 8, 64), dtype=jnp.float32)
    out_w = jax.block_until_ready(upsample2x(xw, unpool_mat))
    ref_w = jnp.repeat(jnp.repeat(xw, 2, axis=2), 2, axis=3)
    assert jnp.allclose(out_w, ref_w, atol=0.0, rtol=0.0)

    # 5) bf16 input stays bf16 end-to-end (no promotion, half the write bytes).
    xh = x.astype(jnp.bfloat16)
    out_h = jax.block_until_ready(upsample2x(xh, unpool_mat))
    ref_h = jnp.repeat(jnp.repeat(xh, 2, axis=2), 2, axis=3)
    assert out_h.dtype == jnp.bfloat16
    assert jnp.array_equal(out_h, ref_h)

    print("KERNEL_OK")
</pallas_src>

<mosaic_0001>
module attributes {stable_mosaic.version = 11 : i64} {
  func.func @_upsample2x_kernel(%arg0: i32, %arg1: memref<4xf32, #tpu.memory_space<smem>>, %arg2: memref<32x32xf32, #tpu.memory_space<vmem>>, %arg3: memref<32x128xf32, #tpu.memory_space<vmem>>) attributes {dimension_semantics = [#tpu.dimension_semantics<parallel>], iteration_bounds = array<i64: 2>, scalar_prefetch = 1 : i64, scratch_operands = 0 : i64, tpu.core_type = #tpu.core_type<tc>, window_params = [{transform_indices = @transform_0, window_bounds = array<i64: 32, 32>}, {transform_indices = @transform_1, window_bounds = array<i64: 32, 128>}]} {
    %c0 = arith.constant 0 : index
    %c0_0 = arith.constant 0 : index
    %0 = vector.load %arg2[%c0, %c0_0] : memref<32x32xf32, #tpu.memory_space<vmem>>, vector<32x32xf32>
    %1 = vector.extract_strided_slice %0 {offsets = [0, 0], sizes = [32, 16], strides = [1, 1]} : vector<32x32xf32> to vector<32x16xf32>
    %2 = vector.extract_strided_slice %0 {offsets = [0, 16], sizes = [32, 16], strides = [1, 1]} : vector<32x32xf32> to vector<32x16xf32>
    %3 = tpu.concatenate %1, %1, %2, %2 in 1 : vector<32x16xf32>, vector<32x16xf32>, vector<32x16xf32>, vector<32x16xf32> -> vector<32x64xf32>
    %4 = vector.shape_cast %3 : vector<32x64xf32> to vector<32x64x1xf32>
    %5 = vector.shape_cast %4 : vector<32x64x1xf32> to vector<32x64x1xf32>
    %6 = vector.broadcast %5 : vector<32x64x1xf32> to vector<32x64x2xf32>
    %7 = vector.shape_cast %6 : vector<32x64x2xf32> to vector<32x128xf32>
    %c0_1 = arith.constant 0 : index
    %8 = memref.load %arg1[%c0_1] : memref<4xf32, #tpu.memory_space<smem>>
    %c1 = arith.constant 1 : index
    %9 = memref.load %arg1[%c1] : memref<4xf32, #tpu.memory_space<smem>>
    %c2 = arith.constant 2 : index
    %10 = memref.load %arg1[%c2] : memref<4xf32, #tpu.memory_space<smem>>
    %c3 = arith.constant 3 : index
    %11 = memref.load %arg1[%c3] : memref<4xf32, #tpu.memory_space<smem>>
    %12 = tpu.iota {dimensions = array<i32: 1>} : vector<1x32xi32>
    %c1_i32 = arith.constant 1 : i32
    %13 = vector.broadcast %c1_i32 : i32 to vector<1x32xi32>
    %14 = arith.andi %12, %13 : vector<1x32xi32>
    %c1_i32_2 = arith.constant 1 : i32
    %15 = vector.broadcast %c1_i32_2 : i32 to vector<1x32xi32>
    %16 = arith.cmpi eq, %14, %15 : vector<1x32xi32>
    %17 = vector.broadcast %9 : f32 to vector<1x32xf32>
    %18 = vector.broadcast %8 : f32 to vector<1x32xf32>
    %19 = arith.select %16, %17, %18 : vector<1x32xi1>, vector<1x32xf32>
    %20 = vector.broadcast %11 : f32 to vector<1x32xf32>
    %21 = vector.broadcast %10 : f32 to vector<1x32xf32>
    %22 = arith.select %16, %20, %21 : vector<1x32xi1>, vector<1x32xf32>
    %23 = tpu.concatenate %19, %22 in 1 : vector<1x32xf32>, vector<1x32xf32> -> vector<1x64xf32>
    %24 = tpu.concatenate %23, %23 in 1 : vector<1x64xf32>, vector<1x64xf32> -> vector<1x128xf32>
    %25 = vector.broadcast %24 : vector<1x128xf32> to vector<32x128xf32>
    %26 = arith.mulf %7, %25 : vector<32x128xf32>
    %c0_3 = arith.constant 0 : index
    %c0_4 = arith.constant 0 : index
    %27 = vector.load %arg3[%c0_3, %c0_4] : memref<32x128xf32, #tpu.memory_space<vmem>>, vector<32x128xf32>
    tpu.vector_store %arg3[%c0_3, %c0_4], %26 {strides = array<i32>} : memref<32x128xf32, #tpu.memory_space<vmem>>, vector<32x128xf32>,
    return
  }
  func.func @transform_0(%arg0: i32, %arg1: memref<4xf32, #tpu.memory_space<smem>>) -> (i32, i32) {
    %c0_i32 = arith.constant 0 : i32
    %c0_i32_0 = arith.constant 0 : i32
    return %arg0, %c0_i32 : i32, i32
  }
  func.func @transform_1(%arg0: i32, %arg1: memref<4xf32, #tpu.memory_space<smem>>) -> (i32, i32) {
    %c0_i32 = arith.constant 0 : i32
    %c0_i32_0 = arith.constant 0 : i32
    return %arg0, %c0_i32 : i32, i32
  }
}

</mosaic_0001>

<llo_original>
// kernel: tpu_custom_call.1
$region0: #{tpu_custom_call.1}
  #allocation0 [shape = 'u32[]', space=smem, size = 0x4, offset = 0x4, fixed_abs, tag = 'smem constant byte address 0x4 - core index']
  #allocation1 [shape = 'u32[144,128]{1,0:T(1,128)}', space=vmem, size = 0x12000, scoped, tag = 'internal scratch']
  #allocation2 [shape = 's32[1]{0}', space=sflag, size = 0x4, scoped, tag = 'scoped memory for tpu_custom_call.1']
  #allocation3 [shape = 'u8[512]{0}', space=smem, size = 0x200, scoped, tag = 'prefetched SMEM operand 0']
  %s0 = inlined_call_operand.vmem [shape: f32[4], index: 0, kind: input, shape index: {}]
  %s1 = inlined_call_operand.vmem [shape: f32[64,32], index: 1, kind: input, shape index: {}]
  %s2 = inlined_call_operand.hbm [shape: f32[64,128], index: 2, kind: output, shape index: {}]
  %s3 = sld [smem:[#allocation0]]
  $region37: #{tpu_custom_call.1} parent=0
    _
  %s5 = ssub.s32 1, %s3
  %s6 = scalar_select 0, %s5, %s3
  %s7 = sshll.u32 %s0, 4
  %s8 = int_to_ptr.vmem [resolvable:$true] %s7
  %10 = dma.vmem_to_smem %s8, 16, [#allocation3], [#allocation2]
  %11 = dma.done [#allocation2], 16
  %12 = sfence
  $region1: #{tpu_custom_call.1} parent=0
    #allocation4 [shape = 'u8[32768]{0}', space=vmem, size = 0x8000, scoped, tag = 'output window, operand 0']
    #allocation5 [shape = 's32[2]{0}', space=sflag, size = 0x8, scoped, tag = 'scoped memory for tpu_custom_call.1']
    %13 = vsyncpa [#allocation5], 0
    %s14 = scalar_lea.sflag [#allocation5], 1
    %15 = vsyncpa %s14, 0
    loop: start=0, step=1, limit=4
    $region2: #{tpu_custom_call.1} parent=1 // loop_pre_header
      _
    $region3: #{tpu_custom_call.1} parent=1 // loop_header
      %s17 = sphi 0, %s21
      %p18 = scmp.ge.s32.totalorder %s17, 4
      %s27 = sphi 0, %s29
      %s30 = sphi 0, %s27
      %s31 = sphi 0, %s30
      %s47 = sphi 0, %s31
      %s53 = sphi 0, %s55
      %s56 = sphi 0, %s53
      %s57 = sphi 0, %s56
      %s73 = sphi 0, %s57
    $region4: #{tpu_custom_call.1} parent=1 // loop_header_branch
      %20 = sbr.rel (%p18) target = $region8
    $region5: #{tpu_custom_call.1} parent=1 // loop_body
      %s22 = ssub.s32 %s17, 1
      %s23 = ssub.s32 %s17, 2
      %s24 = sadd.s32 %s17, 1
      %s25 = ssub.s32 %s17, %s24
      %p26 = scmp.eq.s32.totalorder %s25, 0
      %s28 = sadd.s32 %s27, 1
      %s29 = scalar_select %p26, %s27, %s28
      %p32 = pneg %p26
      %p33 = scmp.eq.s32.totalorder %s17, 1
      %p34 = por %p32, %p33
      %p35 = scmp.ne.s32.totalorder %s27, %s30
      %p36 = scmp.eq.s32.totalorder %s17, 0
      %p37 = por %p35, %p36
      %p38 = scmp.ne.s32.totalorder %s27, %s30
      %p39 = scmp.eq.s32.totalorder %s22, 1
      %p40 = por %p38, %p39
      %p41 = scmp.ne.s32.totalorder %s30, %s31
      %p42 = scmp.eq.s32.totalorder %s22, 0
      %p43 = por %p41, %p42
      %p44 = scmp.ne.s32.totalorder %s30, %s31
      %p45 = scmp.eq.s32.totalorder %s23, 1
      %p46 = por %p44, %p45
      %p48 = scmp.ne.s32.totalorder %s31, %s47
      %p49 = scmp.eq.s32.totalorder %s23, 0
      %p50 = por %p48, %p49
      %s51 = ssub.s32 %s17, %s24
      %p52 = scmp.eq.s32.totalorder %s51, 0
      %s54 = sadd.s32 %s53, 1
      %s55 = scalar_select %p52, %s53, %s54
      %p58 = pneg %p52
      %p59 = scmp.eq.s32.totalorder %s17, 1
      %p60 = por %p58, %p59
      %p61 = scmp.ne.s32.totalorder %s53, %s56
      %p62 = scmp.eq.s32.totalorder %s17, 0
      %p63 = por %p61, %p62
      %p64 = scmp.ne.s32.totalorder %s53, %s56
      %p65 = scmp.eq.s32.totalorder %s22, 1
      %p66 = por %p64, %p65
      %p67 = scmp.ne.s32.totalorder %s56, %s57
      %p68 = scmp.eq.s32.totalorder %s22, 0
      %p69 = por %p67, %p68
      %p70 = scmp.ne.s32.totalorder %s56, %s57
      %p71 = scmp.eq.s32.totalorder %s23, 1
      %p72 = por %p70, %p71
      %p74 = scmp.ne.s32.totalorder %s57, %s73
      %p75 = scmp.eq.s32.totalorder %s23, 0
      %p76 = por %p74, %p75
      %p77 = scmp.le.s32.totalorder 1, %s17
      %p78 = scmp.lt.s32.totalorder %s17, 3
      %p79 = pnand %p77, %p78
      %p80 = pneg %p79
      // Predicated region
      $region9: #{tpu_custom_call.1} parent=5 // pred_check
        _
      $region10: #{tpu_custom_call.1} parent=5 // pred_check_branch
        %82 = sbr.rel (%p79) target = $region12
      $region11: #{tpu_custom_call.1} parent=5 // pred_region
        %s83 = ssub.s32 %s17, 1
      $region12: #{tpu_custom_call.1} parent=5 // pred_fallthru
        _
      %p84 = scmp.lt.s32.totalorder %s17, 2
      // Predicated region
      $region13: #{tpu_custom_call.1} parent=5 // pred_check
        %p85 = pneg %p84
      $region14: #{tpu_custom_call.1} parent=5 // pred_check_branch
        %87 = sbr.rel (%p85) target = $region16
      $region15: #{tpu_custom_call.1} parent=5 // pred_region
        // Predicated region
        $region17: #{tpu_custom_call.1} parent=15 // pred_check
          %p88 = pneg %p37
        $region18: #{tpu_custom_call.1} parent=15 // pred_check_branch
          %90 = sbr.rel (%p88) target = $region20
        $region19: #{tpu_custom_call.1} parent=15 // pred_region
          %s91 = smul.u32 4, %s17
          %p92 = scmp.lt.s32.totalorder %s91, 7
          %s93 = scalar_select %p92, %s91, 7
          %s94 = smul.addr %s93, 8
          %s95 = scalar_lea.vmem %s1, %s94
          %s96 = smul.u32 4, %s17
        $region20: #{tpu_custom_call.1} parent=15 // pred_fallthru
          _
      $region16: #{tpu_custom_call.1} parent=5 // pred_fallthru
        _
      %p97 = scmp.le.s32.totalorder 1, %s17
      %p98 = scmp.lt.s32.totalorder %s17, 3
      %p99 = pnand %p97, %p98
      %p100 = pneg %p99
      // Predicated region
      $region21: #{tpu_custom_call.1} parent=5 // pred_check
        _
      $region22: #{tpu_custom_call.1} parent=5 // pred_check_branch
        %102 = sbr.rel (%p99) target = $region24
      $region23: #{tpu_custom_call.1} parent=5 // pred_region
        %s103 = ssub.s32 %s17, 1
        %s104 = smul.u32 4, %s22
        %p105 = scmp.lt.s32.totalorder %s104, 7
        %s106 = scalar_select %p105, %s104, 7
        %s107 = smul.addr %s106, 8
        %s108 = scalar_lea.vmem %s1, %s107
        %p109 = pneg %p43
        %p110 = pneg %p40
        %p111 = pneg %p69
        %p112 = pneg %p66
        %s113 = sand.u32 %s56, 1
        %s114 = scalar_lea.sflag [#allocation5], %s113
        %s115 = sand.u32 %s56, 1
        %s116 = smul.addr %s115, 32
        %s117 = scalar_lea.vmem [#allocation4], %s116
        %s118 = smul.u32 4, %s22
        %p119 = scmp.lt.s32.totalorder %s118, 7
        %s120 = scalar_select %p119, %s118, 7
        %s121 = smul.addr %s120, 8
        %s122 = scalar_lea.vmem %s1, %s121
        %s123 = smul.u32 4, %s22
        %s124 = smul.u32 4, %s22
        %v125 = vld [vmem:[%s122] sm:$0xff]
        %v126 = vld [vmem:[%s122 + $0x8] sm:$0xff]
        %v127 = vld [vmem:[%s122 + $0x10] sm:$0xff]
        %v128 = vld [vmem:[%s122 + $0x18] sm:$0xff]
        %133 = vrot.lane.b32.xlu0 %v125, 16
        %v134 = vpop.permute.xlu0 %133
        %135 = vrot.lane.b32.xlu0 %v126, 16
        %v136 = vpop.permute.xlu0 %135
        %137 = vrot.lane.b32.xlu0 %v127, 16
        %v138 = vpop.permute.xlu0 %137
        %139 = vrot.lane.b32.xlu0 %v128, 16
        %v140 = vpop.permute.xlu0 %139
        %145 = vrot.lane.b32.xlu0 %v125, 32
        %v146 = vpop.permute.xlu0 %145
        %147 = vrot.lane.b32.xlu0 %v126, 32
        %v148 = vpop.permute.xlu0 %147
        %149 = vrot.lane.b32.xlu0 %v127, 32
        %v150 = vpop.permute.xlu0 %149
        %151 = vrot.lane.b32.xlu0 %v128, 32
        %v152 = vpop.permute.xlu0 %151
        %vm157 = vcmask 130048
        %v158 = vsel %vm157, %v125, %v134
        %v159 = vsel %vm157, %v126, %v136
        %v160 = vsel %vm157, %v127, %v138
        %v161 = vsel %vm157, %v128, %v140
        %vm162 = vcmask 261120
        %v163 = vsel %vm162, %v158, %v134
        %v164 = vsel %vm162, %v159, %v136
        %v165 = vsel %vm162, %v160, %v138
        %v166 = vsel %vm162, %v161, %v140
        %vm167 = vcmask 392192
        %v168 = vsel %vm167, %v163, %v146
        %v169 = vsel %vm167, %v164, %v148
        %v170 = vsel %vm167, %v165, %v150
        %v171 = vsel %vm167, %v166, %v152
        %v172 = vlaneseq
        %v173 = vshrl.u32 %v172, 7
        %v174 = vsub.s32 0, %v173
        %v175 = vrot.slane %v168, %v174
        %177 = vbcast.lane.b32.xlu0 %v175, 256
        %v178 = vpop.permute.xlu0 %177
        %s180 = sor.u32 256, 8
        %181 = vbcast.lane.b32.xlu0 %v175, %s180
        %v182 = vpop.permute.xlu0 %181
        %s184 = sor.u32 256, 16
        %185 = vbcast.lane.b32.xlu0 %v175, %s184
        %v186 = vpop.permute.xlu0 %185
        %s188 = sor.u32 256, 24
        %189 = vbcast.lane.b32.xlu0 %v175, %s188
        %v190 = vpop.permute.xlu0 %189
        %s192 = sor.u32 256, 32
        %193 = vbcast.lane.b32.xlu0 %v175, %s192
        %v194 = vpop.permute.xlu0 %193
        %s196 = sor.u32 256, 40
        %197 = vbcast.lane.b32.xlu0 %v175, %s196
        %v198 = vpop.permute.xlu0 %197
        %s200 = sor.u32 256, 48
        %201 = vbcast.lane.b32.xlu0 %v175, %s200
        %v202 = vpop.permute.xlu0 %201
        %s204 = sor.u32 256, 56
        %205 = vbcast.lane.b32.xlu0 %v175, %s204
        %v206 = vpop.permute.xlu0 %205
        %v207 = vlaneseq
        %v208 = vshrl.u32 %v207, 7
        %v209 = vsub.s32 1, %v208
        %v210 = vrot.slane %v168, %v209
        %212 = vbcast.lane.b32.xlu0 %v210, 256
        %v213 = vpop.permute.xlu0 %212
        %s215 = sor.u32 256, 8
        %216 = vbcast.lane.b32.xlu0 %v210, %s215
        %v217 = vpop.permute.xlu0 %216
        %s219 = sor.u32 256, 16
        %220 = vbcast.lane.b32.xlu0 %v210, %s219
        %v221 = vpop.permute.xlu0 %220
        %s223 = sor.u32 256, 24
        %224 = vbcast.lane.b32.xlu0 %v210, %s223
        %v225 = vpop.permute.xlu0 %224
        %s227 = sor.u32 256, 32
        %228 = vbcast.lane.b32.xlu0 %v210, %s227
        %v229 = vpop.permute.xlu0 %228
        %s231 = sor.u32 256, 40
        %232 = vbcast.lane.b32.xlu0 %v210, %s231
        %v233 = vpop.permute.xlu0 %232
        %s235 = sor.u32 256, 48
        %236 = vbcast.lane.b32.xlu0 %v210, %s235
        %v237 = vpop.permute.xlu0 %236
        %s239 = sor.u32 256, 56
        %240 = vbcast.lane.b32.xlu0 %v210, %s239
        %v241 = vpop.permute.xlu0 %240
        %v242 = vlaneseq
        %v243 = vshrl.u32 %v242, 7
        %v244 = vsub.s32 2, %v243
        %v245 = vrot.slane %v168, %v244
        %247 = vbcast.lane.b32.xlu0 %v245, 256
        %v248 = vpop.permute.xlu0 %247
        %s250 = sor.u32 256, 8
        %251 = vbcast.lane.b32.xlu0 %v245, %s250
        %v252 = vpop.permute.xlu0 %251
        %s254 = sor.u32 256, 16
        %255 = vbcast.lane.b32.xlu0 %v245, %s254
        %v256 = vpop.permute.xlu0 %255
        %s258 = sor.u32 256, 24
        %259 = vbcast.lane.b32.xlu0 %v245, %s258
        %v260 = vpop.permute.xlu0 %259
        %s262 = sor.u32 256, 32
        %263 = vbcast.lane.b32.xlu0 %v245, %s262
        %v264 = vpop.permute.xlu0 %263
        %s266 = sor.u32 256, 40
        %267 = vbcast.lane.b32.xlu0 %v245, %s266
        %v268 = vpop.permute.xlu0 %267
        %s270 = sor.u32 256, 48
        %271 = vbcast.lane.b32.xlu0 %v245, %s270
        %v272 = vpop.permute.xlu0 %271
        %s274 = sor.u32 256, 56
        %275 = vbcast.lane.b32.xlu0 %v245, %s274
        %v276 = vpop.permute.xlu0 %275
        %v277 = vlaneseq
        %v278 = vshrl.u32 %v277, 7
        %v279 = vsub.s32 3, %v278
        %v280 = vrot.slane %v168, %v279
        %282 = vbcast.lane.b32.xlu0 %v280, 256
        %v283 = vpop.permute.xlu0 %282
        %s285 = sor.u32 256, 8
        %286 = vbcast.lane.b32.xlu0 %v280, %s285
        %v287 = vpop.permute.xlu0 %286
        %s289 = sor.u32 256, 16
        %290 = vbcast.lane.b32.xlu0 %v280, %s289
        %v291 = vpop.permute.xlu0 %290
        %s293 = sor.u32 256, 24
        %294 = vbcast.lane.b32.xlu0 %v280, %s293
        %v295 = vpop.permute.xlu0 %294
        %s297 = sor.u32 256, 32
        %298 = vbcast.lane.b32.xlu0 %v280, %s297
        %v299 = vpop.permute.xlu0 %298
        %s301 = sor.u32 256, 40
        %302 = vbcast.lane.b32.xlu0 %v280, %s301
        %v303 = vpop.permute.xlu0 %302
        %s305 = sor.u32 256, 48
        %306 = vbcast.lane.b32.xlu0 %v280, %s305
        %v307 = vpop.permute.xlu0 %306
        %s309 = sor.u32 256, 56
        %310 = vbcast.lane.b32.xlu0 %v280, %s309
        %v311 = vpop.permute.xlu0 %310
        %v312 = vlaneseq
        %v313 = vshrl.u32 %v312, 7
        %v314 = vsub.s32 4, %v313
        %v315 = vrot.slane %v168, %v314
        %317 = vbcast.lane.b32.xlu0 %v315, 256
        %v318 = vpop.permute.xlu0 %317
        %s320 = sor.u32 256, 8
        %321 = vbcast.lane.b32.xlu0 %v315, %s320
        %v322 = vpop.permute.xlu0 %321
        %s324 = sor.u32 256, 16
        %325 = vbcast.lane.b32.xlu0 %v315, %s324
        %v326 = vpop.permute.xlu0 %325
        %s328 = sor.u32 256, 24
        %329 = vbcast.lane.b32.xlu0 %v315, %s328
        %v330 = vpop.permute.xlu0 %329
        %s332 = sor.u32 256, 32
        %333 = vbcast.lane.b32.xlu0 %v315, %s332
        %v334 = vpop.permute.xlu0 %333
        %s336 = sor.u32 256, 40
        %337 = vbcast.lane.b32.xlu0 %v315, %s336
        %v338 = vpop.permute.xlu0 %337
        %s340 = sor.u32 256, 48
        %341 = vbcast.lane.b32.xlu0 %v315, %s340
        %v342 = vpop.permute.xlu0 %341
        %s344 = sor.u32 256, 56
        %345 = vbcast.lane.b32.xlu0 %v315, %s344
        %v346 = vpop.permute.xlu0 %345
        %v347 = vlaneseq
        %v348 = vshrl.u32 %v347, 7
        %v349 = vsub.s32 5, %v348
        %v350 = vrot.slane %v168, %v349
        %352 = vbcast.lane.b32.xlu0 %v350, 256
        %v353 = vpop.permute.xlu0 %352
        %s355 = sor.u32 256, 8
        %356 = vbcast.lane.b32.xlu0 %v350, %s355
        %v357 = vpop.permute.xlu0 %356
        %s359 = sor.u32 256, 16
        %360 = vbcast.lane.b32.xlu0 %v350, %s359
        %v361 = vpop.permute.xlu0 %360
        %s363 = sor.u32 256, 24
        %364 = vbcast.lane.b32.xlu0 %v350, %s363
        %v365 = vpop.permute.xlu0 %364
        %s367 = sor.u32 256, 32
        %368 = vbcast.lane.b32.xlu0 %v350, %s367
        %v369 = vpop.permute.xlu0 %368
        %s371 = sor.u32 256, 40
        %372 = vbcast.lane.b32.xlu0 %v350, %s371
        %v373 = vpop.permute.xlu0 %372
        %s375 = sor.u32 256, 48
        %376 = vbcast.lane.b32.xlu0 %v350, %s375
        %v377 = vpop.permute.xlu0 %376
        %s379 = sor.u32 256, 56
        %380 = vbcast.lane.b32.xlu0 %v350, %s379
        %v381 = vpop.permute.xlu0 %380
        %v382 = vlaneseq
        %v383 = vshrl.u32 %v382, 7
        %v384 = vsub.s32 6, %v383
        %v385 = vrot.slane %v168, %v384
        %387 = vbcast.lane.b32.xlu0 %v385, 256
        %v388 = vpop.permute.xlu0 %387
        %s390 = sor.u32 256, 8
        %391 = vbcast.lane.b32.xlu0 %v385, %s390
        %v392 = vpop.permute.xlu0 %391
        %s394 = sor.u32 256, 16
        %395 = vbcast.lane.b32.xlu0 %v385, %s394
        %v396 = vpop.permute.xlu0 %395
        %s398 = sor.u32 256, 24
        %399 = vbcast.lane.b32.xlu0 %v385, %s398
        %v400 = vpop.permute.xlu0 %399
        %s402 = sor.u32 256, 32
        %403 = vbcast.lane.b32.xlu0 %v385, %s402
        %v404 = vpop.permute.xlu0 %403
        %s406 = sor.u32 256, 40
        %407 = vbcast.lane.b32.xlu0 %v385, %s406
        %v408 = vpop.permute.xlu0 %407
        %s410 = sor.u32 256, 48
        %411 = vbcast.lane.b32.xlu0 %v385, %s410
        %v412 = vpop.permute.xlu0 %411
        %s414 = sor.u32 256, 56
        %415 = vbcast.lane.b32.xlu0 %v385, %s414
        %v416 = vpop.permute.xlu0 %415
        %v417 = vlaneseq
        %v418 = vshrl.u32 %v417, 7
        %v419 = vsub.s32 7, %v418
        %v420 = vrot.slane %v168, %v419
        %422 = vbcast.lane.b32.xlu0 %v420, 256
        %v423 = vpop.permute.xlu0 %422
        %s425 = sor.u32 256, 8
        %426 = vbcast.lane.b32.xlu0 %v420, %s425
        %v427 = vpop.permute.xlu0 %426
        %s429 = sor.u32 256, 16
        %430 = vbcast.lane.b32.xlu0 %v420, %s429
        %v431 = vpop.permute.xlu0 %430
        %s433 = sor.u32 256, 24
        %434 = vbcast.lane.b32.xlu0 %v420, %s433
        %v435 = vpop.permute.xlu0 %434
        %s437 = sor.u32 256, 32
        %438 = vbcast.lane.b32.xlu0 %v420, %s437
        %v439 = vpop.permute.xlu0 %438
        %s441 = sor.u32 256, 40
        %442 = vbcast.lane.b32.xlu0 %v420, %s441
        %v443 = vpop.permute.xlu0 %442
        %s445 = sor.u32 256, 48
        %446 = vbcast.lane.b32.xlu0 %v420, %s445
        %v447 = vpop.permute.xlu0 %446
        %s449 = sor.u32 256, 56
        %450 = vbcast.lane.b32.xlu0 %v420, %s449
        %v451 = vpop.permute.xlu0 %450
        %v452 = vlaneseq
        %v453 = vshrl.u32 %v452, 7
        %v454 = vsub.s32 0, %v453
        %v455 = vrot.slane %v169, %v454
        %457 = vbcast.lane.b32.xlu0 %v455, 256
        %v458 = vpop.permute.xlu0 %457
        %s460 = sor.u32 256, 8
        %461 = vbcast.lane.b32.xlu0 %v455, %s460
        %v462 = vpop.permute.xlu0 %461
        %s464 = sor.u32 256, 16
        %465 = vbcast.lane.b32.xlu0 %v455, %s464
        %v466 = vpop.permute.xlu0 %465
        %s468 = sor.u32 256, 24
        %469 = vbcast.lane.b32.xlu0 %v455, %s468
        %v470 = vpop.permute.xlu0 %469
        %s472 = sor.u32 256, 32
        %473 = vbcast.lane.b32.xlu0 %v455, %s472
        %v474 = vpop.permute.xlu0 %473
        %s476 = sor.u32 256, 40
        %477 = vbcast.lane.b32.xlu0 %v455, %s476
        %v478 = vpop.permute.xlu0 %477
        %s480 = sor.u32 256, 48
        %481 = vbcast.lane.b32.xlu0 %v455, %s480
        %v482 = vpop.permute.xlu0 %481
        %s484 = sor.u32 256, 56
        %485 = vbcast.lane.b32.xlu0 %v455, %s484
        %v486 = vpop.permute.xlu0 %485
        %v487 = vlaneseq
        %v488 = vshrl.u32 %v487, 7
        %v489 = vsub.s32 1, %v488
        %v490 = vrot.slane %v169, %v489
        %492 = vbcast.lane.b32.xlu0 %v490, 256
        %v493 = vpop.permute.xlu0 %492
        %s495 = sor.u32 256, 8
        %496 = vbcast.lane.b32.xlu0 %v490, %s495
        %v497 = vpop.permute.xlu0 %496
        %s499 = sor.u32 256, 16
        %500 = vbcast.lane.b32.xlu0 %v490, %s499
        %v501 = vpop.permute.xlu0 %500
        %s503 = sor.u32 256, 24
        %504 = vbcast.lane.b32.xlu0 %v490, %s503
        %v505 = vpop.permute.xlu0 %504
        %s507 = sor.u32 256, 32
        %508 = vbcast.lane.b32.xlu0 %v490, %s507
        %v509 = vpop.permute.xlu0 %508
        %s511 = sor.u32 256, 40
        %512 = vbcast.lane.b32.xlu0 %v490, %s511
        %v513 = vpop.permute.xlu0 %512
        %s515 = sor.u32 256, 48
        %516 = vbcast.lane.b32.xlu0 %v490, %s515
        %v517 = vpop.permute.xlu0 %516
        %s519 = sor.u32 256, 56
        %520 = vbcast.lane.b32.xlu0 %v490, %s519
        %v521 = vpop.permute.xlu0 %520
        %v522 = vlaneseq
        %v523 = vshrl.u32 %v522, 7
        %v524 = vsub.s32 2, %v523
        %v525 = vrot.slane %v169, %v524
        %527 = vbcast.lane.b32.xlu0 %v525, 256
        %v528 = vpop.permute.xlu0 %527
        %s530 = sor.u32 256, 8
        %531 = vbcast.lane.b32.xlu0 %v525, %s530
        %v532 = vpop.permute.xlu0 %531
        %s534 = sor.u32 256, 16
        %535 = vbcast.lane.b32.xlu0 %v525, %s534
        %v536 = vpop.permute.xlu0 %535
        %s538 = sor.u32 256, 24
        %539 = vbcast.lane.b32.xlu0 %v525, %s538
        %v540 = vpop.permute.xlu0 %539
        %s542 = sor.u32 256, 32
        %543 = vbcast.lane.b32.xlu0 %v525, %s542
        %v544 = vpop.permute.xlu0 %543
        %s546 = sor.u32 256, 40
        %547 = vbcast.lane.b32.xlu0 %v525, %s546
        %v548 = vpop.permute.xlu0 %547
        %s550 = sor.u32 256, 48
        %551 = vbcast.lane.b32.xlu0 %v525, %s550
        %v552 = vpop.permute.xlu0 %551
        %s554 = sor.u32 256, 56
        %555 = vbcast.lane.b32.xlu0 %v525, %s554
        %v556 = vpop.permute.xlu0 %555
        %v557 = vlaneseq
        %v558 = vshrl.u32 %v557, 7
        %v559 = vsub.s32 3, %v558
        %v560 = vrot.slane %v169, %v559
        %562 = vbcast.lane.b32.xlu0 %v560, 256
        %v563 = vpop.permute.xlu0 %562
        %s565 = sor.u32 256, 8
        %566 = vbcast.lane.b32.xlu0 %v560, %s565
        %v567 = vpop.permute.xlu0 %566
        %s569 = sor.u32 256, 16
        %570 = vbcast.lane.b32.xlu0 %v560, %s569
        %v571 = vpop.permute.xlu0 %570
        %s573 = sor.u32 256, 24
        %574 = vbcast.lane.b32.xlu0 %v560, %s573
        %v575 = vpop.permute.xlu0 %574
        %s577 = sor.u32 256, 32
        %578 = vbcast.lane.b32.xlu0 %v560, %s577
        %v579 = vpop.permute.xlu0 %578
        %s581 = sor.u32 256, 40
        %582 = vbcast.lane.b32.xlu0 %v560, %s581
        %v583 = vpop.permute.xlu0 %582
        %s585 = sor.u32 256, 48
        %586 = vbcast.lane.b32.xlu0 %v560, %s585
        %v587 = vpop.permute.xlu0 %586
        %s589 = sor.u32 256, 56
        %590 = vbcast.lane.b32.xlu0 %v560, %s589
        %v591 = vpop.permute.xlu0 %590
        %v592 = vlaneseq
        %v593 = vshrl.u32 %v592, 7
        %v594 = vsub.s32 4, %v593
        %v595 = vrot.slane %v169, %v594
        %597 = vbcast.lane.b32.xlu0 %v595, 256
        %v598 = vpop.permute.xlu0 %597
        %s600 = sor.u32 256, 8
        %601 = vbcast.lane.b32.xlu0 %v595, %s600
        %v602 = vpop.permute.xlu0 %601
        %s604 = sor.u32 256, 16
        %605 = vbcast.lane.b32.xlu0 %v595, %s604
        %v606 = vpop.permute.xlu0 %605
        %s608 = sor.u32 256, 24
        %609 = vbcast.lane.b32.xlu0 %v595, %s608
        %v610 = vpop.permute.xlu0 %609
        %s612 = sor.u32 256, 32
        %613 = vbcast.lane.b32.xlu0 %v595, %s612
        %v614 = vpop.permute.xlu0 %613
        %s616 = sor.u32 256, 40
        %617 = vbcast.lane.b32.xlu0 %v595, %s616
        %v618 = vpop.permute.xlu0 %617
        %s620 = sor.u32 256, 48
        %621 = vbcast.lane.b32.xlu0 %v595, %s620
        %v622 = vpop.permute.xlu0 %621
        %s624 = sor.u32 256, 56
        %625 = vbcast.lane.b32.xlu0 %v595, %s624
        %v626 = vpop.permute.xlu0 %625
        %v627 = vlaneseq
        %v628 = vshrl.u32 %v627, 7
        %v629 = vsub.s32 5, %v628
        %v630 = vrot.slane %v169, %v629
        %632 = vbcast.lane.b32.xlu0 %v630, 256
        %v633 = vpop.permute.xlu0 %632
        %s635 = sor.u32 256, 8
        %636 = vbcast.lane.b32.xlu0 %v630, %s635
        %v637 = vpop.permute.xlu0 %636
        %s639 = sor.u32 256, 16
        %640 = vbcast.lane.b32.xlu0 %v630, %s639
        %v641 = vpop.permute.xlu0 %640
        %s643 = sor.u32 256, 24
        %644 = vbcast.lane.b32.xlu0 %v630, %s643
        %v645 = vpop.permute.xlu0 %644
        %s647 = sor.u32 256, 32
        %648 = vbcast.lane.b32.xlu0 %v630, %s647
        %v649 = vpop.permute.xlu0 %648
        %s651 = sor.u32 256, 40
        %652 = vbcast.lane.b32.xlu0 %v630, %s651
        %v653 = vpop.permute.xlu0 %652
        %s655 = sor.u32 256, 48
        %656 = vbcast.lane.b32.xlu0 %v630, %s655
        %v657 = vpop.permute.xlu0 %656
        %s659 = sor.u32 256, 56
        %660 = vbcast.lane.b32.xlu0 %v630, %s659
        %v661 = vpop.permute.xlu0 %660
        %v662 = vlaneseq
        %v663 = vshrl.u32 %v662, 7
        %v664 = vsub.s32 6, %v663
        %v665 = vrot.slane %v169, %v664
        %667 = vbcast.lane.b32.xlu0 %v665, 256
        %v668 = vpop.permute.xlu0 %667
        %s670 = sor.u32 256, 8
        %671 = vbcast.lane.b32.xlu0 %v665, %s670
        %v672 = vpop.permute.xlu0 %671
        %s674 = sor.u32 256, 16
        %675 = vbcast.lane.b32.xlu0 %v665, %s674
        %v676 = vpop.permute.xlu0 %675
        %s678 = sor.u32 256, 24
        %679 = vbcast.lane.b32.xlu0 %v665, %s678
        %v680 = vpop.permute.xlu0 %679
        %s682 = sor.u32 256, 32
        %683 = vbcast.lane.b32.xlu0 %v665, %s682
        %v684 = vpop.permute.xlu0 %683
        %s686 = sor.u32 256, 40
        %687 = vbcast.lane.b32.xlu0 %v665, %s686
        %v688 = vpop.permute.xlu0 %687
        %s690 = sor.u32 256, 48
        %691 = vbcast.lane.b32.xlu0 %v665, %s690
        %v692 = vpop.permute.xlu0 %691
        %s694 = sor.u32 256, 56
        %695 = vbcast.lane.b32.xlu0 %v665, %s694
        %v696 = vpop.permute.xlu0 %695
        %v697 = vlaneseq
        %v698 = vshrl.u32 %v697, 7
        %v699 = vsub.s32 7, %v698
        %v700 = vrot.slane %v169, %v699
        %702 = vbcast.lane.b32.xlu0 %v700, 256
        %v703 = vpop.permute.xlu0 %702
        %s705 = sor.u32 256, 8
        %706 = vbcast.lane.b32.xlu0 %v700, %s705
        %v707 = vpop.permute.xlu0 %706
        %s709 = sor.u32 256, 16
        %710 = vbcast.lane.b32.xlu0 %v700, %s709
        %v711 = vpop.permute.xlu0 %710
        %s713 = sor.u32 256, 24
        %714 = vbcast.lane.b32.xlu0 %v700, %s713
        %v715 = vpop.permute.xlu0 %714
        %s717 = sor.u32 256, 32
        %718 = vbcast.lane.b32.xlu0 %v700, %s717
        %v719 = vpop.permute.xlu0 %718
        %s721 = sor.u32 256, 40
        %722 = vbcast.lane.b32.xlu0 %v700, %s721
        %v723 = vpop.permute.xlu0 %722
        %s725 = sor.u32 256, 48
        %726 = vbcast.lane.b32.xlu0 %v700, %s725
        %v727 = vpop.permute.xlu0 %726
        %s729 = sor.u32 256, 56
        %730 = vbcast.lane.b32.xlu0 %v700, %s729
        %v731 = vpop.permute.xlu0 %730
        %v732 = vlaneseq
        %v733 = vshrl.u32 %v732, 7
        %v734 = vsub.s32 0, %v733
        %v735 = vrot.slane %v170, %v734
        %737 = vbcast.lane.b32.xlu0 %v735, 256
        %v738 = vpop.permute.xlu0 %737
        %s740 = sor.u32 256, 8
        %741 = vbcast.lane.b32.xlu0 %v735, %s740
        %v742 = vpop.permute.xlu0 %741
        %s744 = sor.u32 256, 16
        %745 = vbcast.lane.b32.xlu0 %v735, %s744
        %v746 = vpop.permute.xlu0 %745
        %s748 = sor.u32 256, 24
        %749 = vbcast.lane.b32.xlu0 %v735, %s748
        %v750 = vpop.permute.xlu0 %749
        %s752 = sor.u32 256, 32
        %753 = vbcast.lane.b32.xlu0 %v735, %s752
        %v754 = vpop.permute.xlu0 %753
        %s756 = sor.u32 256, 40
        %757 = vbcast.lane.b32.xlu0 %v735, %s756
        %v758 = vpop.permute.xlu0 %757
        %s760 = sor.u32 256, 48
        %761 = vbcast.lane.b32.xlu0 %v735, %s760
        %v762 = vpop.permute.xlu0 %761
        %s764 = sor.u32 256, 56
        %765 = vbcast.lane.b32.xlu0 %v735, %s764
        %v766 = vpop.permute.xlu0 %765
        %v767 = vlaneseq
        %v768 = vshrl.u32 %v767, 7
        %v769 = vsub.s32 1, %v768
        %v770 = vrot.slane %v170, %v769
        %772 = vbcast.lane.b32.xlu0 %v770, 256
        %v773 = vpop.permute.xlu0 %772
        %s775 = sor.u32 256, 8
        %776 = vbcast.lane.b32.xlu0 %v770, %s775
        %v777 = vpop.permute.xlu0 %776
        %s779 = sor.u32 256, 16
        %780 = vbcast.lane.b32.xlu0 %v770, %s779
        %v781 = vpop.permute.xlu0 %780
        %s783 = sor.u32 256, 24
        %784 = vbcast.lane.b32.xlu0 %v770, %s783
        %v785 = vpop.permute.xlu0 %784
        %s787 = sor.u32 256, 32
        %788 = vbcast.lane.b32.xlu0 %v770, %s787
        %v789 = vpop.permute.xlu0 %788
        %s791 = sor.u32 256, 40
        %792 = vbcast.lane.b32.xlu0 %v770, %s791
        %v793 = vpop.permute.xlu0 %792
        %s795 = sor.u32 256, 48
        %796 = vbcast.lane.b32.xlu0 %v770, %s795
        %v797 = vpop.permute.xlu0 %796
        %s799 = sor.u32 256, 56
        %800 = vbcast.lane.b32.xlu0 %v770, %s799
        %v801 = vpop.permute.xlu0 %800
        %v802 = vlaneseq
        %v803 = vshrl.u32 %v802, 7
        %v804 = vsub.s32 2, %v803
        %v805 = vrot.slane %v170, %v804
        %807 = vbcast.lane.b32.xlu0 %v805, 256
        %v808 = vpop.permute.xlu0 %807
        %s810 = sor.u32 256, 8
        %811 = vbcast.lane.b32.xlu0 %v805, %s810
        %v812 = vpop.permute.xlu0 %811
        %s814 = sor.u32 256, 16
        %815 = vbcast.lane.b32.xlu0 %v805, %s814
        %v816 = vpop.permute.xlu0 %815
        %s818 = sor.u32 256, 24
        %819 = vbcast.lane.b32.xlu0 %v805, %s818
        %v820 = vpop.permute.xlu0 %819
        %s822 = sor.u32 256, 32
        %823 = vbcast.lane.b32.xlu0 %v805, %s822
        %v824 = vpop.permute.xlu0 %823
        %s826 = sor.u32 256, 40
        %827 = vbcast.lane.b32.xlu0 %v805, %s826
        %v828 = vpop.permute.xlu0 %827
        %s830 = sor.u32 256, 48
        %831 = vbcast.lane.b32.xlu0 %v805, %s830
        %v832 = vpop.permute.xlu0 %831
        %s834 = sor.u32 256, 56
        %835 = vbcast.lane.b32.xlu0 %v805, %s834
        %v836 = vpop.permute.xlu0 %835
        %v837 = vlaneseq
        %v838 = vshrl.u32 %v837, 7
        %v839 = vsub.s32 3, %v838
        %v840 = vrot.slane %v170, %v839
        %842 = vbcast.lane.b32.xlu0 %v840, 256
        %v843 = vpop.permute.xlu0 %842
        %s845 = sor.u32 256, 8
        %846 = vbcast.lane.b32.xlu0 %v840, %s845
        %v847 = vpop.permute.xlu0 %846
        %s849 = sor.u32 256, 16
        %850 = vbcast.lane.b32.xlu0 %v840, %s849
        %v851 = vpop.permute.xlu0 %850
        %s853 = sor.u32 256, 24
        %854 = vbcast.lane.b32.xlu0 %v840, %s853
        %v855 = vpop.permute.xlu0 %854
        %s857 = sor.u32 256, 32
        %858 = vbcast.lane.b32.xlu0 %v840, %s857
        %v859 = vpop.permute.xlu0 %858
        %s861 = sor.u32 256, 40
        %862 = vbcast.lane.b32.xlu0 %v840, %s861
        %v863 = vpop.permute.xlu0 %862
        %s865 = sor.u32 256, 48
        %866 = vbcast.lane.b32.xlu0 %v840, %s865
        %v867 = vpop.permute.xlu0 %866
        %s869 = sor.u32 256, 56
        %870 = vbcast.lane.b32.xlu0 %v840, %s869
        %v871 = vpop.permute.xlu0 %870
        %v872 = vlaneseq
        %v873 = vshrl.u32 %v872, 7
        %v874 = vsub.s32 4, %v873
        %v875 = vrot.slane %v170, %v874
        %877 = vbcast.lane.b32.xlu0 %v875, 256
        %v878 = vpop.permute.xlu0 %877
        %s880 = sor.u32 256, 8
        %881 = vbcast.lane.b32.xlu0 %v875, %s880
        %v882 = vpop.permute.xlu0 %881
        %s884 = sor.u32 256, 16
        %885 = vbcast.lane.b32.xlu0 %v875, %s884
        %v886 = vpop.permute.xlu0 %885
        %s888 = sor.u32 256, 24
        %889 = vbcast.lane.b32.xlu0 %v875, %s888
        %v890 = vpop.permute.xlu0 %889
        %s892 = sor.u32 256, 32
        %893 = vbcast.lane.b32.xlu0 %v875, %s892
        %v894 = vpop.permute.xlu0 %893
        %s896 = sor.u32 256, 40
        %897 = vbcast.lane.b32.xlu0 %v875, %s896
        %v898 = vpop.permute.xlu0 %897
        %s900 = sor.u32 256, 48
        %901 = vbcast.lane.b32.xlu0 %v875, %s900
        %v902 = vpop.permute.xlu0 %901
        %s904 = sor.u32 256, 56
        %905 = vbcast.lane.b32.xlu0 %v875, %s904
        %v906 = vpop.permute.xlu0 %905
        %v907 = vlaneseq
        %v908 = vshrl.u32 %v907, 7
        %v909 = vsub.s32 5, %v908
        %v910 = vrot.slane %v170, %v909
        %912 = vbcast.lane.b32.xlu0 %v910, 256
        %v913 = vpop.permute.xlu0 %912
        %s915 = sor.u32 256, 8
        %916 = vbcast.lane.b32.xlu0 %v910, %s915
        %v917 = vpop.permute.xlu0 %916
        %s919 = sor.u32 256, 16
        %920 = vbcast.lane.b32.xlu0 %v910, %s919
        %v921 = vpop.permute.xlu0 %920
        %s923 = sor.u32 256, 24
        %924 = vbcast.lane.b32.xlu0 %v910, %s923
        %v925 = vpop.permute.xlu0 %924
        %s927 = sor.u32 256, 32
        %928 = vbcast.lane.b32.xlu0 %v910, %s927
        %v929 = vpop.permute.xlu0 %928
        %s931 = sor.u32 256, 40
        %932 = vbcast.lane.b32.xlu0 %v910, %s931
        %v933 = vpop.permute.xlu0 %932
        %s935 = sor.u32 256, 48
        %936 = vbcast.lane.b32.xlu0 %v910, %s935
        %v937 = vpop.permute.xlu0 %936
        %s939 = sor.u32 256, 56
        %940 = vbcast.lane.b32.xlu0 %v910, %s939
        %v941 = vpop.permute.xlu0 %940
        %v942 = vlaneseq
        %v943 = vshrl.u32 %v942, 7
        %v944 = vsub.s32 6, %v943
        %v945 = vrot.slane %v170, %v944
        %947 = vbcast.lane.b32.xlu0 %v945, 256
        %v948 = vpop.permute.xlu0 %947
        %s950 = sor.u32 256, 8
        %951 = vbcast.lane.b32.xlu0 %v945, %s950
        %v952 = vpop.permute.xlu0 %951
        %s954 = sor.u32 256, 16
        %955 = vbcast.lane.b32.xlu0 %v945, %s954
        %v956 = vpop.permute.xlu0 %955
        %s958 = sor.u32 256, 24
        %959 = vbcast.lane.b32.xlu0 %v945, %s958
        %v960 = vpop.permute.xlu0 %959
        %s962 = sor.u32 256, 32
        %963 = vbcast.lane.b32.xlu0 %v945, %s962
        %v964 = vpop.permute.xlu0 %963
        %s966 = sor.u32 256, 40
        %967 = vbcast.lane.b32.xlu0 %v945, %s966
        %v968 = vpop.permute.xlu0 %967
        %s970 = sor.u32 256, 48
        %971 = vbcast.lane.b32.xlu0 %v945, %s970
        %v972 = vpop.permute.xlu0 %971
        %s974 = sor.u32 256, 56
        %975 = vbcast.lane.b32.xlu0 %v945, %s974
        %v976 = vpop.permute.xlu0 %975
        %v977 = vlaneseq
        %v978 = vshrl.u32 %v977, 7
        %v979 = vsub.s32 7, %v978
        %v980 = vrot.slane %v170, %v979
        %982 = vbcast.lane.b32.xlu0 %v980, 256
        %v983 = vpop.permute.xlu0 %982
        %s985 = sor.u32 256, 8
        %986 = vbcast.lane.b32.xlu0 %v980, %s985
        %v987 = vpop.permute.xlu0 %986
        %s989 = sor.u32 256, 16
        %990 = vbcast.lane.b32.xlu0 %v980, %s989
        %v991 = vpop.permute.xlu0 %990
        %s993 = sor.u32 256, 24
        %994 = vbcast.lane.b32.xlu0 %v980, %s993
        %v995 = vpop.permute.xlu0 %994
        %s997 = sor.u32 256, 32
        %998 = vbcast.lane.b32.xlu0 %v980, %s997
        %v999 = vpop.permute.xlu0 %998
        %s1001 = sor.u32 256, 40
        %1002 = vbcast.lane.b32.xlu0 %v980, %s1001
        %v1003 = vpop.permute.xlu0 %1002
        %s1005 = sor.u32 256, 48
        %1006 = vbcast.lane.b32.xlu0 %v980, %s1005
        %v1007 = vpop.permute.xlu0 %1006
        %s1009 = sor.u32 256, 56
        %1010 = vbcast.lane.b32.xlu0 %v980, %s1009
        %v1011 = vpop.permute.xlu0 %1010
        %v1012 = vlaneseq
        %v1013 = vshrl.u32 %v1012, 7
        %v1014 = vsub.s32 0, %v1013
        %v1015 = vrot.slane %v171, %v1014
        %1017 = vbcast.lane.b32.xlu0 %v1015, 256
        %v1018 = vpop.permute.xlu0 %1017
        %s1020 = sor.u32 256, 8
        %1021 = vbcast.lane.b32.xlu0 %v1015, %s1020
        %v1022 = vpop.permute.xlu0 %1021
        %s1024 = sor.u32 256, 16
        %1025 = vbcast.lane.b32.xlu0 %v1015, %s1024
        %v1026 = vpop.permute.xlu0 %1025
        %s1028 = sor.u32 256, 24
        %1029 = vbcast.lane.b32.xlu0 %v1015, %s1028
        %v1030 = vpop.permute.xlu0 %1029
        %s1032 = sor.u32 256, 32
        %1033 = vbcast.lane.b32.xlu0 %v1015, %s1032
        %v1034 = vpop.permute.xlu0 %1033
        %s1036 = sor.u32 256, 40
        %1037 = vbcast.lane.b32.xlu0 %v1015, %s1036
        %v1038 = vpop.permute.xlu0 %1037
        %s1040 = sor.u32 256, 48
        %1041 = vbcast.lane.b32.xlu0 %v1015, %s1040
        %v1042 = vpop.permute.xlu0 %1041
        %s1044 = sor.u32 256, 56
        %1045 = vbcast.lane.b32.xlu0 %v1015, %s1044
        %v1046 = vpop.permute.xlu0 %1045
        %v1047 = vlaneseq
        %v1048 = vshrl.u32 %v1047, 7
        %v1049 = vsub.s32 1, %v1048
        %v1050 = vrot.slane %v171, %v1049
        %1052 = vbcast.lane.b32.xlu0 %v1050, 256
        %v1053 = vpop.permute.xlu0 %1052
        %s1055 = sor.u32 256, 8
        %1056 = vbcast.lane.b32.xlu0 %v1050, %s1055
        %v1057 = vpop.permute.xlu0 %1056
        %s1059 = sor.u32 256, 16
        %1060 = vbcast.lane.b32.xlu0 %v1050, %s1059
        %v1061 = vpop.permute.xlu0 %1060
        %s1063 = sor.u32 256, 24
        %1064 = vbcast.lane.b32.xlu0 %v1050, %s1063
        %v1065 = vpop.permute.xlu0 %1064
        %s1067 = sor.u32 256, 32
        %1068 = vbcast.lane.b32.xlu0 %v1050, %s1067
        %v1069 = vpop.permute.xlu0 %1068
        %s1071 = sor.u32 256, 40
        %1072 = vbcast.lane.b32.xlu0 %v1050, %s1071
        %v1073 = vpop.permute.xlu0 %1072
        %s1075 = sor.u32 256, 48
        %1076 = vbcast.lane.b32.xlu0 %v1050, %s1075
        %v1077 = vpop.permute.xlu0 %1076
        %s1079 = sor.u32 256, 56
        %1080 = vbcast.lane.b32.xlu0 %v1050, %s1079
        %v1081 = vpop.permute.xlu0 %1080
        %v1082 = vlaneseq
        %v1083 = vshrl.u32 %v1082, 7
        %v1084 = vsub.s32 2, %v1083
        %v1085 = vrot.slane %v171, %v1084
        %1087 = vbcast.lane.b32.xlu0 %v1085, 256
        %v1088 = vpop.permute.xlu0 %1087
        %s1090 = sor.u32 256, 8
        %1091 = vbcast.lane.b32.xlu0 %v1085, %s1090
        %v1092 = vpop.permute.xlu0 %1091
        %s1094 = sor.u32 256, 16
        %1095 = vbcast.lane.b32.xlu0 %v1085, %s1094
        %v1096 = vpop.permute.xlu0 %1095
        %s1098 = sor.u32 256, 24
        %1099 = vbcast.lane.b32.xlu0 %v1085, %s1098
        %v1100 = vpop.permute.xlu0 %1099
        %s1102 = sor.u32 256, 32
        %1103 = vbcast.lane.b32.xlu0 %v1085, %s1102
        %v1104 = vpop.permute.xlu0 %1103
        %s1106 = sor.u32 256, 40
        %1107 = vbcast.lane.b32.xlu0 %v1085, %s1106
        %v1108 = vpop.permute.xlu0 %1107
        %s1110 = sor.u32 256, 48
        %1111 = vbcast.lane.b32.xlu0 %v1085, %s1110
        %v1112 = vpop.permute.xlu0 %1111
        %s1114 = sor.u32 256, 56
        %1115 = vbcast.lane.b32.xlu0 %v1085, %s1114
        %v1116 = vpop.permute.xlu0 %1115
        %v1117 = vlaneseq
        %v1118 = vshrl.u32 %v1117, 7
        %v1119 = vsub.s32 3, %v1118
        %v1120 = vrot.slane %v171, %v1119
        %1122 = vbcast.lane.b32.xlu0 %v1120, 256
        %v1123 = vpop.permute.xlu0 %1122
        %s1125 = sor.u32 256, 8
        %1126 = vbcast.lane.b32.xlu0 %v1120, %s1125
        %v1127 = vpop.permute.xlu0 %1126
        %s1129 = sor.u32 256, 16
        %1130 = vbcast.lane.b32.xlu0 %v1120, %s1129
        %v1131 = vpop.permute.xlu0 %1130
        %s1133 = sor.u32 256, 24
        %1134 = vbcast.lane.b32.xlu0 %v1120, %s1133
        %v1135 = vpop.permute.xlu0 %1134
        %s1137 = sor.u32 256, 32
        %1138 = vbcast.lane.b32.xlu0 %v1120, %s1137
        %v1139 = vpop.permute.xlu0 %1138
        %s1141 = sor.u32 256, 40
        %1142 = vbcast.lane.b32.xlu0 %v1120, %s1141
        %v1143 = vpop.permute.xlu0 %1142
        %s1145 = sor.u32 256, 48
        %1146 = vbcast.lane.b32.xlu0 %v1120, %s1145
        %v1147 = vpop.permute.xlu0 %1146
        %s1149 = sor.u32 256, 56
        %1150 = vbcast.lane.b32.xlu0 %v1120, %s1149
        %v1151 = vpop.permute.xlu0 %1150
        %v1152 = vlaneseq
        %v1153 = vshrl.u32 %v1152, 7
        %v1154 = vsub.s32 4, %v1153
        %v1155 = vrot.slane %v171, %v1154
        %1157 = vbcast.lane.b32.xlu0 %v1155, 256
        %v1158 = vpop.permute.xlu0 %1157
        %s1160 = sor.u32 256, 8
        %1161 = vbcast.lane.b32.xlu0 %v1155, %s1160
        %v1162 = vpop.permute.xlu0 %1161
        %s1164 = sor.u32 256, 16
        %1165 = vbcast.lane.b32.xlu0 %v1155, %s1164
        %v1166 = vpop.permute.xlu0 %1165
        %s1168 = sor.u32 256, 24
        %1169 = vbcast.lane.b32.xlu0 %v1155, %s1168
        %v1170 = vpop.permute.xlu0 %1169
        %s1172 = sor.u32 256, 32
        %1173 = vbcast.lane.b32.xlu0 %v1155, %s1172
        %v1174 = vpop.permute.xlu0 %1173
        %s1176 = sor.u32 256, 40
        %1177 = vbcast.lane.b32.xlu0 %v1155, %s1176
        %v1178 = vpop.permute.xlu0 %1177
        %s1180 = sor.u32 256, 48
        %1181 = vbcast.lane.b32.xlu0 %v1155, %s1180
        %v1182 = vpop.permute.xlu0 %1181
        %s1184 = sor.u32 256, 56
        %1185 = vbcast.lane.b32.xlu0 %v1155, %s1184
        %v1186 = vpop.permute.xlu0 %1185
        %v1187 = vlaneseq
        %v1188 = vshrl.u32 %v1187, 7
        %v1189 = vsub.s32 5, %v1188
        %v1190 = vrot.slane %v171, %v1189
        %1192 = vbcast.lane.b32.xlu0 %v1190, 256
        %v1193 = vpop.permute.xlu0 %1192
        %s1195 = sor.u32 256, 8
        %1196 = vbcast.lane.b32.xlu0 %v1190, %s1195
        %v1197 = vpop.permute.xlu0 %1196
        %s1199 = sor.u32 256, 16
        %1200 = vbcast.lane.b32.xlu0 %v1190, %s1199
        %v1201 = vpop.permute.xlu0 %1200
        %s1203 = sor.u32 256, 24
        %1204 = vbcast.lane.b32.xlu0 %v1190, %s1203
        %v1205 = vpop.permute.xlu0 %1204
        %s1207 = sor.u32 256, 32
        %1208 = vbcast.lane.b32.xlu0 %v1190, %s1207
        %v1209 = vpop.permute.xlu0 %1208
        %s1211 = sor.u32 256, 40
        %1212 = vbcast.lane.b32.xlu0 %v1190, %s1211
        %v1213 = vpop.permute.xlu0 %1212
        %s1215 = sor.u32 256, 48
        %1216 = vbcast.lane.b32.xlu0 %v1190, %s1215
        %v1217 = vpop.permute.xlu0 %1216
        %s1219 = sor.u32 256, 56
        %1220 = vbcast.lane.b32.xlu0 %v1190, %s1219
        %v1221 = vpop.permute.xlu0 %1220
        %v1222 = vlaneseq
        %v1223 = vshrl.u32 %v1222, 7
        %v1224 = vsub.s32 6, %v1223
        %v1225 = vrot.slane %v171, %v1224
        %1227 = vbcast.lane.b32.xlu0 %v1225, 256
        %v1228 = vpop.permute.xlu0 %1227
        %s1230 = sor.u32 256, 8
        %1231 = vbcast.lane.b32.xlu0 %v1225, %s1230
        %v1232 = vpop.permute.xlu0 %1231
        %s1234 = sor.u32 256, 16
        %1235 = vbcast.lane.b32.xlu0 %v1225, %s1234
        %v1236 = vpop.permute.xlu0 %1235
        %s1238 = sor.u32 256, 24
        %1239 = vbcast.lane.b32.xlu0 %v1225, %s1238
        %v1240 = vpop.permute.xlu0 %1239
        %s1242 = sor.u32 256, 32
        %1243 = vbcast.lane.b32.xlu0 %v1225, %s1242
        %v1244 = vpop.permute.xlu0 %1243
        %s1246 = sor.u32 256, 40
        %1247 = vbcast.lane.b32.xlu0 %v1225, %s1246
        %v1248 = vpop.permute.xlu0 %1247
        %s1250 = sor.u32 256, 48
        %1251 = vbcast.lane.b32.xlu0 %v1225, %s1250
        %v1252 = vpop.permute.xlu0 %1251
        %s1254 = sor.u32 256, 56
        %1255 = vbcast.lane.b32.xlu0 %v1225, %s1254
        %v1256 = vpop.permute.xlu0 %1255
        %v1257 = vlaneseq
        %v1258 = vshrl.u32 %v1257, 7
        %v1259 = vsub.s32 7, %v1258
        %v1260 = vrot.slane %v171, %v1259
        %1262 = vbcast.lane.b32.xlu0 %v1260, 256
        %v1263 = vpop.permute.xlu0 %1262
        %s1265 = sor.u32 256, 8
        %1266 = vbcast.lane.b32.xlu0 %v1260, %s1265
        %v1267 = vpop.permute.xlu0 %1266
        %s1269 = sor.u32 256, 16
        %1270 = vbcast.lane.b32.xlu0 %v1260, %s1269
        %v1271 = vpop.permute.xlu0 %1270
        %s1273 = sor.u32 256, 24
        %1274 = vbcast.lane.b32.xlu0 %v1260, %s1273
        %v1275 = vpop.permute.xlu0 %1274
        %s1277 = sor.u32 256, 32
        %1278 = vbcast.lane.b32.xlu0 %v1260, %s1277
        %v1279 = vpop.permute.xlu0 %1278
        %s1281 = sor.u32 256, 40
        %1282 = vbcast.lane.b32.xlu0 %v1260, %s1281
        %v1283 = vpop.permute.xlu0 %1282
        %s1285 = sor.u32 256, 48
        %1286 = vbcast.lane.b32.xlu0 %v1260, %s1285
        %v1287 = vpop.permute.xlu0 %1286
        %s1289 = sor.u32 256, 56
        %1290 = vbcast.lane.b32.xlu0 %v1260, %s1289
        %v1291 = vpop.permute.xlu0 %1290
        %v1292 = vcombine.low %v178, %v248
        %v1293 = vcombine.high %v178, %v248
        %v1295 = vunpack.c.l.s4 1983009808
        %v1296 = vunpack.c.0.s8 %v1295
        %v1297 = vlaneseq
        %v1298 = vshrl.u32 %v1297, 7
        %v1299 = vsub.s32 %v1296, %v1298
        %v1300 = vrot.slane %v1292, %v1299
        %v1302 = vunpack.c.l.s4 1983009808
        %v1303 = vunpack.c.0.s8 %v1302
        %v1304 = vlaneseq
        %v1305 = vshrl.u32 %v1304, 7
        %v1306 = vsub.s32 %v1303, %v1305
        %v1307 = vrot.slane %v1293, %v1306
        %v1308 = vcombine.low %v213, %v283
        %v1309 = vcombine.high %v213, %v283
        %v1311 = vunpack.c.l.s4 1983009808
        %v1312 = vunpack.c.0.s8 %v1311
        %v1313 = vlaneseq
        %v1314 = vshrl.u32 %v1313, 7
        %v1315 = vsub.s32 %v1312, %v1314
        %v1316 = vrot.slane %v1308, %v1315
        %v1318 = vunpack.c.l.s4 1983009808
        %v1319 = vunpack.c.0.s8 %v1318
        %v1320 = vlaneseq
        %v1321 = vshrl.u32 %v1320, 7
        %v1322 = vsub.s32 %v1319, %v1321
        %v1323 = vrot.slane %v1309, %v1322
        %v1324 = vcombine.low %v318, %v388
        %v1325 = vcombine.high %v318, %v388
        %v1327 = vunpack.c.l.s4 1983009808
        %v1328 = vunpack.c.0.s8 %v1327
        %v1329 = vlaneseq
        %v1330 = vshrl.u32 %v1329, 7
        %v1331 = vsub.s32 %v1328, %v1330
        %v1332 = vrot.slane %v1324, %v1331
        %v1334 = vunpack.c.l.s4 1983009808
        %v1335 = vunpack.c.0.s8 %v1334
        %v1336 = vlaneseq
        %v1337 = vshrl.u32 %v1336, 7
        %v1338 = vsub.s32 %v1335, %v1337
        %v1339 = vrot.slane %v1325, %v1338
        %v1340 = vcombine.low %v353, %v423
        %v1341 = vcombine.high %v353, %v423
        %v1343 = vunpack.c.l.s4 1983009808
        %v1344 = vunpack.c.0.s8 %v1343
        %v1345 = vlaneseq
        %v1346 = vshrl.u32 %v1345, 7
        %v1347 = vsub.s32 %v1344, %v1346
        %v1348 = vrot.slane %v1340, %v1347
        %v1350 = vunpack.c.l.s4 1983009808
        %v1351 = vunpack.c.0.s8 %v1350
        %v1352 = vlaneseq
        %v1353 = vshrl.u32 %v1352, 7
        %v1354 = vsub.s32 %v1351, %v1353
        %v1355 = vrot.slane %v1341, %v1354
        %v1356 = vcombine.low %v1300, %v1316
        %v1357 = vcombine.high %v1300, %v1316
        %v1359 = vunpack.c.l.s4 1934713408
        %v1360 = vunpack.c.0.s8 %v1359
        %v1361 = vlaneseq
        %v1362 = vshrl.u32 %v1361, 7
        %v1363 = vsub.s32 %v1360, %v1362
        %v1364 = vrot.slane %v1356, %v1363
        %v1366 = vunpack.c.l.s4 1934713408
        %v1367 = vunpack.c.0.s8 %v1366
        %v1368 = vlaneseq
        %v1369 = vshrl.u32 %v1368, 7
        %v1370 = vsub.s32 %v1367, %v1369
        %v1371 = vrot.slane %v1357, %v1370
        %v1372 = vcombine.low %v1307, %v1323
        %v1373 = vcombine.high %v1307, %v1323
        %v1375 = vunpack.c.l.s4 1934713408
        %v1376 = vunpack.c.0.s8 %v1375
        %v1377 = vlaneseq
        %v1378 = vshrl.u32 %v1377, 7
        %v1379 = vsub.s32 %v1376, %v1378
        %v1380 = vrot.slane %v1372, %v1379
        %v1382 = vunpack.c.l.s4 1934713408
        %v1383 = vunpack.c.0.s8 %v1382
        %v1384 = vlaneseq
        %v1385 = vshrl.u32 %v1384, 7
        %v1386 = vsub.s32 %v1383, %v1385
        %v1387 = vrot.slane %v1373, %v1386
        %v1388 = vcombine.low %v1332, %v1348
        %v1389 = vcombine.high %v1332, %v1348
        %v1391 = vunpack.c.l.s4 1934713408
        %v1392 = vunpack.c.0.s8 %v1391
        %v1393 = vlaneseq
        %v1394 = vshrl.u32 %v1393, 7
        %v1395 = vsub.s32 %v1392, %v1394
        %v1396 = vrot.slane %v1388, %v1395
        %v1398 = vunpack.c.l.s4 1934713408
        %v1399 = vunpack.c.0.s8 %v1398
        %v1400 = vlaneseq
        %v1401 = vshrl.u32 %v1400, 7
        %v1402 = vsub.s32 %v1399, %v1401
        %v1403 = vrot.slane %v1389, %v1402
        %v1404 = vcombine.low %v1339, %v1355
        %v1405 = vcombine.high %v1339, %v1355
        %v1407 = vunpack.c.l.s4 1934713408
        %v1408 = vunpack.c.0.s8 %v1407
        %v1409 = vlaneseq
        %v1410 = vshrl.u32 %v1409, 7
        %v1411 = vsub.s32 %v1408, %v1410
        %v1412 = vrot.slane %v1404, %v1411
        %v1414 = vunpack.c.l.s4 1934713408
        %v1415 = vunpack.c.0.s8 %v1414
        %v1416 = vlaneseq
        %v1417 = vshrl.u32 %v1416, 7
        %v1418 = vsub.s32 %v1415, %v1417
        %v1419 = vrot.slane %v1405, %v1418
        %v1420 = vcombine.low %v1364, %v1396
        %v1421 = vcombine.high %v1364, %v1396
        %v1422 = vcombine.low %v1371, %v1403
        %v1423 = vcombine.high %v1371, %v1403
        %v1424 = vcombine.low %v1380, %v1412
        %v1425 = vcombine.high %v1380, %v1412
        %v1426 = vcombine.low %v1387, %v1419
        %v1427 = vcombine.high %v1387, %v1419
        %v1428 = vcombine.low %v458, %v528
        %v1429 = vcombine.high %v458, %v528
        %v1431 = vunpack.c.l.s4 1983009808
        %v1432 = vunpack.c.0.s8 %v1431
        %v1433 = vlaneseq
        %v1434 = vshrl.u32 %v1433, 7
        %v1435 = vsub.s32 %v1432, %v1434
        %v1436 = vrot.slane %v1428, %v1435
        %v1438 = vunpack.c.l.s4 1983009808
        %v1439 = vunpack.c.0.s8 %v1438
        %v1440 = vlaneseq
        %v1441 = vshrl.u32 %v1440, 7
        %v1442 = vsub.s32 %v1439, %v1441
        %v1443 = vrot.slane %v1429, %v1442
        %v1444 = vcombine.low %v493, %v563
        %v1445 = vcombine.high %v493, %v563
        %v1447 = vunpack.c.l.s4 1983009808
        %v1448 = vunpack.c.0.s8 %v1447
        %v1449 = vlaneseq
        %v1450 = vshrl.u32 %v1449, 7
        %v1451 = vsub.s32 %v1448, %v1450
        %v1452 = vrot.slane %v1444, %v1451
        %v1454 = vunpack.c.l.s4 1983009808
        %v1455 = vunpack.c.0.s8 %v1454
        %v1456 = vlaneseq
        %v1457 = vshrl.u32 %v1456, 7
        %v1458 = vsub.s32 %v1455, %v1457
        %v1459 = vrot.slane %v1445, %v1458
        %v1460 = vcombine.low %v598, %v668
        %v1461 = vcombine.high %v598, %v668
        %v1463 = vunpack.c.l.s4 1983009808
        %v1464 = vunpack.c.0.s8 %v1463
        %v1465 = vlaneseq
        %v1466 = vshrl.u32 %v1465, 7
        %v1467 = vsub.s32 %v1464, %v1466
        %v1468 = vrot.slane %v1460, %v1467
        %v1470 = vunpack.c.l.s4 1983009808
        %v1471 = vunpack.c.0.s8 %v1470
        %v1472 = vlaneseq
        %v1473 = vshrl.u32 %v1472, 7
        %v1474 = vsub.s32 %v1471, %v1473
        %v1475 = vrot.slane %v1461, %v1474
        %v1476 = vcombine.low %v633, %v703
        %v1477 = vcombine.high %v633, %v703
        %v1479 = vunpack.c.l.s4 1983009808
        %v1480 = vunpack.c.0.s8 %v1479
        %v1481 = vlaneseq
        %v1482 = vshrl.u32 %v1481, 7
        %v1483 = vsub.s32 %v1480, %v1482
        %v1484 = vrot.slane %v1476, %v1483
        %v1486 = vunpack.c.l.s4 1983009808
        %v1487 = vunpack.c.0.s8 %v1486
        %v1488 = vlaneseq
        %v1489 = vshrl.u32 %v1488, 7
        %v1490 = vsub.s32 %v1487, %v1489
        %v1491 = vrot.slane %v1477, %v1490
        %v1492 = vcombine.low %v1436, %v1452
        %v1493 = vcombine.high %v1436, %v1452
        %v1495 = vunpack.c.l.s4 1934713408
        %v1496 = vunpack.c.0.s8 %v1495
        %v1497 = vlaneseq
        %v1498 = vshrl.u32 %v1497, 7
        %v1499 = vsub.s32 %v1496, %v1498
        %v1500 = vrot.slane %v1492, %v1499
        %v1502 = vunpack.c.l.s4 1934713408
        %v1503 = vunpack.c.0.s8 %v1502
        %v1504 = vlaneseq
        %v1505 = vshrl.u32 %v1504, 7
        %v1506 = vsub.s32 %v1503, %v1505
        %v1507 = vrot.slane %v1493, %v1506
        %v1508 = vcombine.low %v1443, %v1459
        %v1509 = vcombine.high %v1443, %v1459
        %v1511 = vunpack.c.l.s4 1934713408
        %v1512 = vunpack.c.0.s8 %v1511
        %v1513 = vlaneseq
        %v1514 = vshrl.u32 %v1513, 7
        %v1515 = vsub.s32 %v1512, %v1514
        %v1516 = vrot.slane %v1508, %v1515
        %v1518 = vunpack.c.l.s4 1934713408
        %v1519 = vunpack.c.0.s8 %v1518
        %v1520 = vlaneseq
        %v1521 = vshrl.u32 %v1520, 7
        %v1522 = vsub.s32 %v1519, %v1521
        %v1523 = vrot.slane %v1509, %v1522
        %v1524 = vcombine.low %v1468, %v1484
        %v1525 = vcombine.high %v1468, %v1484
        %v1527 = vunpack.c.l.s4 1934713408
        %v1528 = vunpack.c.0.s8 %v1527
        %v1529 = vlaneseq
        %v1530 = vshrl.u32 %v1529, 7
        %v1531 = vsub.s32 %v1528, %v1530
        %v1532 = vrot.slane %v1524, %v1531
        %v1534 = vunpack.c.l.s4 1934713408
        %v1535 = vunpack.c.0.s8 %v1534
        %v1536 = vlaneseq
        %v1537 = vshrl.u32 %v1536, 7
        %v1538 = vsub.s32 %v1535, %v1537
        %v1539 = vrot.slane %v1525, %v1538
        %v1540 = vcombine.low %v1475, %v1491
        %v1541 = vcombine.high %v1475, %v1491
        %v1543 = vunpack.c.l.s4 1934713408
        %v1544 = vunpack.c.0.s8 %v1543
        %v1545 = vlaneseq
        %v1546 = vshrl.u32 %v1545, 7
        %v1547 = vsub.s32 %v1544, %v1546
        %v1548 = vrot.slane %v1540, %v1547
        %v1550 = vunpack.c.l.s4 1934713408
        %v1551 = vunpack.c.0.s8 %v1550
        %v1552 = vlaneseq
        %v1553 = vshrl.u32 %v1552, 7
        %v1554 = vsub.s32 %v1551, %v1553
        %v1555 = vrot.slane %v1541, %v1554
        %v1556 = vcombine.low %v1500, %v1532
        %v1557 = vcombine.high %v1500, %v1532
        %v1558 = vcombine.low %v1507, %v1539
        %v1559 = vcombine.high %v1507, %v1539
        %v1560 = vcombine.low %v1516, %v1548
        %v1561 = vcombine.high %v1516, %v1548
        %v1562 = vcombine.low %v1523, %v1555
        %v1563 = vcombine.high %v1523, %v1555
        %v1564 = vcombine.low %v738, %v808
        %v1565 = vcombine.high %v738, %v808
        %v1567 = vunpack.c.l.s4 1983009808
        %v1568 = vunpack.c.0.s8 %v1567
        %v1569 = vlaneseq
        %v1570 = vshrl.u32 %v1569, 7
        %v1571 = vsub.s32 %v1568, %v1570
        %v1572 = vrot.slane %v1564, %v1571
        %v1574 = vunpack.c.l.s4 1983009808
        %v1575 = vunpack.c.0.s8 %v1574
        %v1576 = vlaneseq
        %v1577 = vshrl.u32 %v1576, 7
        %v1578 = vsub.s32 %v1575, %v1577
        %v1579 = vrot.slane %v1565, %v1578
        %v1580 = vcombine.low %v773, %v843
        %v1581 = vcombine.high %v773, %v843
        %v1583 = vunpack.c.l.s4 1983009808
        %v1584 = vunpack.c.0.s8 %v1583
        %v1585 = vlaneseq
        %v1586 = vshrl.u32 %v1585, 7
        %v1587 = vsub.s32 %v1584, %v1586
        %v1588 = vrot.slane %v1580, %v1587
        %v1590 = vunpack.c.l.s4 1983009808
        %v1591 = vunpack.c.0.s8 %v1590
        %v1592 = vlaneseq
        %v1593 = vshrl.u32 %v1592, 7
        %v1594 = vsub.s32 %v1591, %v1593
        %v1595 = vrot.slane %v1581, %v1594
        %v1596 = vcombine.low %v878, %v948
        %v1597 = vcombine.high %v878, %v948
        %v1599 = vunpack.c.l.s4 1983009808
        %v1600 = vunpack.c.0.s8 %v1599
        %v1601 = vlaneseq
        %v1602 = vshrl.u32 %v1601, 7
        %v1603 = vsub.s32 %v1600, %v1602
        %v1604 = vrot.slane %v1596, %v1603
        %v1606 = vunpack.c.l.s4 1983009808
        %v1607 = vunpack.c.0.s8 %v1606
        %v1608 = vlaneseq
        %v1609 = vshrl.u32 %v1608, 7
        %v1610 = vsub.s32 %v1607, %v1609
        %v1611 = vrot.slane %v1597, %v1610
        %v1612 = vcombine.low %v913, %v983
        %v1613 = vcombine.high %v913, %v983
        %v1615 = vunpack.c.l.s4 1983009808
        %v1616 = vunpack.c.0.s8 %v1615
        %v1617 = vlaneseq
        %v1618 = vshrl.u32 %v1617, 7
        %v1619 = vsub.s32 %v1616, %v1618
        %v1620 = vrot.slane %v1612, %v1619
        %v1622 = vunpack.c.l.s4 1983009808
        %v1623 = vunpack.c.0.s8 %v1622
        %v1624 = vlaneseq
        %v1625 = vshrl.u32 %v1624, 7
        %v1626 = vsub.s32 %v1623, %v1625
        %v1627 = vrot.slane %v1613, %v1626
        %v1628 = vcombine.low %v1572, %v1588
        %v1629 = vcombine.high %v1572, %v1588
        %v1631 = vunpack.c.l.s4 1934713408
        %v1632 = vunpack.c.0.s8 %v1631
        %v1633 = vlaneseq
        %v1634 = vshrl.u32 %v1633, 7
        %v1635 = vsub.s32 %v1632, %v1634
        %v1636 = vrot.slane %v1628, %v1635
        %v1638 = vunpack.c.l.s4 1934713408
        %v1639 = vunpack.c.0.s8 %v1638
        %v1640 = vlaneseq
        %v1641 = vshrl.u32 %v1640, 7
        %v1642 = vsub.s32 %v1639, %v1641
        %v1643 = vrot.slane %v1629, %v1642
        %v1644 = vcombine.low %v1579, %v1595
        %v1645 = vcombine.high %v1579, %v1595
        %v1647 = vunpack.c.l.s4 1934713408
        %v1648 = vunpack.c.0.s8 %v1647
        %v1649 = vlaneseq
        %v1650 = vshrl.u32 %v1649, 7
        %v1651 = vsub.s32 %v1648, %v1650
        %v1652 = vrot.slane %v1644, %v1651
        %v1654 = vunpack.c.l.s4 1934713408
        %v1655 = vunpack.c.0.s8 %v1654
        %v1656 = vlaneseq
        %v1657 = vshrl.u32 %v1656, 7
        %v1658 = vsub.s32 %v1655, %v1657
        %v1659 = vrot.slane %v1645, %v1658
        %v1660 = vcombine.low %v1604, %v1620
        %v1661 = vcombine.high %v1604, %v1620
        %v1663 = vunpack.c.l.s4 1934713408
        %v1664 = vunpack.c.0.s8 %v1663
        %v1665 = vlaneseq
        %v1666 = vshrl.u32 %v1665, 7
        %v1667 = vsub.s32 %v1664, %v1666
        %v1668 = vrot.slane %v1660, %v1667
        %v1670 = vunpack.c.l.s4 1934713408
        %v1671 = vunpack.c.0.s8 %v1670
        %v1672 = vlaneseq
        %v1673 = vshrl.u32 %v1672, 7
        %v1674 = vsub.s32 %v1671, %v1673
        %v1675 = vrot.slane %v1661, %v1674
        %v1676 = vcombine.low %v1611, %v1627
        %v1677 = vcombine.high %v1611, %v1627
        %v1679 = vunpack.c.l.s4 1934713408
        %v1680 = vunpack.c.0.s8 %v1679
        %v1681 = vlaneseq
        %v1682 = vshrl.u32 %v1681, 7
        %v1683 = vsub.s32 %v1680, %v1682
        %v1684 = vrot.slane %v1676, %v1683
        %v1686 = vunpack.c.l.s4 1934713408
        %v1687 = vunpack.c.0.s8 %v1686
        %v1688 = vlaneseq
        %v1689 = vshrl.u32 %v1688, 7
        %v1690 = vsub.s32 %v1687, %v1689
        %v1691 = vrot.slane %v1677, %v1690
        %v1692 = vcombine.low %v1636, %v1668
        %v1693 = vcombine.high %v1636, %v1668
        %v1694 = vcombine.low %v1643, %v1675
        %v1695 = vcombine.high %v1643, %v1675
        %v1696 = vcombine.low %v1652, %v1684
        %v1697 = vcombine.high %v1652, %v1684
        %v1698 = vcombine.low %v1659, %v1691
        %v1699 = vcombine.high %v1659, %v1691
        %v1700 = vcombine.low %v1018, %v1088
        %v1701 = vcombine.high %v1018, %v1088
        %v1703 = vunpack.c.l.s4 1983009808
        %v1704 = vunpack.c.0.s8 %v1703
        %v1705 = vlaneseq
        %v1706 = vshrl.u32 %v1705, 7
        %v1707 = vsub.s32 %v1704, %v1706
        %v1708 = vrot.slane %v1700, %v1707
        %v1710 = vunpack.c.l.s4 1983009808
        %v1711 = vunpack.c.0.s8 %v1710
        %v1712 = vlaneseq
        %v1713 = vshrl.u32 %v1712, 7
        %v1714 = vsub.s32 %v1711, %v1713
        %v1715 = vrot.slane %v1701, %v1714
        %v1716 = vcombine.low %v1053, %v1123
        %v1717 = vcombine.high %v1053, %v1123
        %v1719 = vunpack.c.l.s4 1983009808
        %v1720 = vunpack.c.0.s8 %v1719
        %v1721 = vlaneseq
        %v1722 = vshrl.u32 %v1721, 7
        %v1723 = vsub.s32 %v1720, %v1722
        %v1724 = vrot.slane %v1716, %v1723
        %v1726 = vunpack.c.l.s4 1983009808
        %v1727 = vunpack.c.0.s8 %v1726
        %v1728 = vlaneseq
        %v1729 = vshrl.u32 %v1728, 7
        %v1730 = vsub.s32 %v1727, %v1729
        %v1731 = vrot.slane %v1717, %v1730
        %v1732 = vcombine.low %v1158, %v1228
        %v1733 = vcombine.high %v1158, %v1228
        %v1735 = vunpack.c.l.s4 1983009808
        %v1736 = vunpack.c.0.s8 %v1735
        %v1737 = vlaneseq
        %v1738 = vshrl.u32 %v1737, 7
        %v1739 = vsub.s32 %v1736, %v1738
        %v1740 = vrot.slane %v1732, %v1739
        %v1742 = vunpack.c.l.s4 1983009808
        %v1743 = vunpack.c.0.s8 %v1742
        %v1744 = vlaneseq
        %v1745 = vshrl.u32 %v1744, 7
        %v1746 = vsub.s32 %v1743, %v1745
        %v1747 = vrot.slane %v1733, %v1746
        %v1748 = vcombine.low %v1193, %v1263
        %v1749 = vcombine.high %v1193, %v1263
        %v1751 = vunpack.c.l.s4 1983009808
        %v1752 = vunpack.c.0.s8 %v1751
        %v1753 = vlaneseq
        %v1754 = vshrl.u32 %v1753, 7
        %v1755 = vsub.s32 %v1752, %v1754
        %v1756 = vrot.slane %v1748, %v1755
        %v1758 = vunpack.c.l.s4 1983009808
        %v1759 = vunpack.c.0.s8 %v1758
        %v1760 = vlaneseq
        %v1761 = vshrl.u32 %v1760, 7
        %v1762 = vsub.s32 %v1759, %v1761
        %v1763 = vrot.slane %v1749, %v1762
        %v1764 = vcombine.low %v1708, %v1724
        %v1765 = vcombine.high %v1708, %v1724
        %v1767 = vunpack.c.l.s4 1934713408
        %v1768 = vunpack.c.0.s8 %v1767
        %v1769 = vlaneseq
        %v1770 = vshrl.u32 %v1769, 7
        %v1771 = vsub.s32 %v1768, %v1770
        %v1772 = vrot.slane %v1764, %v1771
        %v1774 = vunpack.c.l.s4 1934713408
        %v1775 = vunpack.c.0.s8 %v1774
        %v1776 = vlaneseq
        %v1777 = vshrl.u32 %v1776, 7
        %v1778 = vsub.s32 %v1775, %v1777
        %v1779 = vrot.slane %v1765, %v1778
        %v1780 = vcombine.low %v1715, %v1731
        %v1781 = vcombine.high %v1715, %v1731
        %v1783 = vunpack.c.l.s4 1934713408
        %v1784 = vunpack.c.0.s8 %v1783
        %v1785 = vlaneseq
        %v1786 = vshrl.u32 %v1785, 7
        %v1787 = vsub.s32 %v1784, %v1786
        %v1788 = vrot.slane %v1780, %v1787
        %v1790 = vunpack.c.l.s4 1934713408
        %v1791 = vunpack.c.0.s8 %v1790
        %v1792 = vlaneseq
        %v1793 = vshrl.u32 %v1792, 7
        %v1794 = vsub.s32 %v1791, %v1793
        %v1795 = vrot.slane %v1781, %v1794
        %v1796 = vcombine.low %v1740, %v1756
        %v1797 = vcombine.high %v1740, %v1756
        %v1799 = vunpack.c.l.s4 1934713408
        %v1800 = vunpack.c.0.s8 %v1799
        %v1801 = vlaneseq
        %v1802 = vshrl.u32 %v1801, 7
        %v1803 = vsub.s32 %v1800, %v1802
        %v1804 = vrot.slane %v1796, %v1803
        %v1806 = vunpack.c.l.s4 1934713408
        %v1807 = vunpack.c.0.s8 %v1806
        %v1808 = vlaneseq
        %v1809 = vshrl.u32 %v1808, 7
        %v1810 = vsub.s32 %v1807, %v1809
        %v1811 = vrot.slane %v1797, %v1810
        %v1812 = vcombine.low %v1747, %v1763
        %v1813 = vcombine.high %v1747, %v1763
        %v1815 = vunpack.c.l.s4 1934713408
        %v1816 = vunpack.c.0.s8 %v1815
        %v1817 = vlaneseq
        %v1818 = vshrl.u32 %v1817, 7
        %v1819 = vsub.s32 %v1816, %v1818
        %v1820 = vrot.slane %v1812, %v1819
        %v1822 = vunpack.c.l.s4 1934713408
        %v1823 = vunpack.c.0.s8 %v1822
        %v1824 = vlaneseq
        %v1825 = vshrl.u32 %v1824, 7
        %v1826 = vsub.s32 %v1823, %v1825
        %v1827 = vrot.slane %v1813, %v1826
        %v1828 = vcombine.low %v1772, %v1804
        %v1829 = vcombine.high %v1772, %v1804
        %v1830 = vcombine.low %v1779, %v1811
        %v1831 = vcombine.high %v1779, %v1811
        %v1832 = vcombine.low %v1788, %v1820
        %v1833 = vcombine.high %v1788, %v1820
        %v1834 = vcombine.low %v1795, %v1827
        %v1835 = vcombine.high %v1795, %v1827
        %v1836 = vcombine.low %v182, %v252
        %v1837 = vcombine.high %v182, %v252
        %v1839 = vunpack.c.l.s4 1983009808
        %v1840 = vunpack.c.0.s8 %v1839
        %v1841 = vlaneseq
        %v1842 = vshrl.u32 %v1841, 7
        %v1843 = vsub.s32 %v1840, %v1842
        %v1844 = vrot.slane %v1836, %v1843
        %v1846 = vunpack.c.l.s4 1983009808
        %v1847 = vunpack.c.0.s8 %v1846
        %v1848 = vlaneseq
        %v1849 = vshrl.u32 %v1848, 7
        %v1850 = vsub.s32 %v1847, %v1849
        %v1851 = vrot.slane %v1837, %v1850
        %v1852 = vcombine.low %v217, %v287
        %v1853 = vcombine.high %v217, %v287
        %v1855 = vunpack.c.l.s4 1983009808
        %v1856 = vunpack.c.0.s8 %v1855
        %v1857 = vlaneseq
        %v1858 = vshrl.u32 %v1857, 7
        %v1859 = vsub.s32 %v1856, %v1858
        %v1860 = vrot.slane %v1852, %v1859
        %v1862 = vunpack.c.l.s4 1983009808
        %v1863 = vunpack.c.0.s8 %v1862
        %v1864 = vlaneseq
        %v1865 = vshrl.u32 %v1864, 7
        %v1866 = vsub.s32 %v1863, %v1865
        %v1867 = vrot.slane %v1853, %v1866
        %v1868 = vcombine.low %v322, %v392
        %v1869 = vcombine.high %v322, %v392
        %v1871 = vunpack.c.l.s4 1983009808
        %v1872 = vunpack.c.0.s8 %v1871
        %v1873 = vlaneseq
        %v1874 = vshrl.u32 %v1873, 7
        %v1875 = vsub.s32 %v1872, %v1874
        %v1876 = vrot.slane %v1868, %v1875
        %v1878 = vunpack.c.l.s4 1983009808
        %v1879 = vunpack.c.0.s8 %v1878
        %v1880 = vlaneseq
        %v1881 = vshrl.u32 %v1880, 7
        %v1882 = vsub.s32 %v1879, %v1881
        %v1883 = vrot.slane %v1869, %v1882
        %v1884 = vcombine.low %v357, %v427
        %v1885 = vcombine.high %v357, %v427
        %v1887 = vunpack.c.l.s4 1983009808
        %v1888 = vunpack.c.0.s8 %v1887
        %v1889 = vlaneseq
        %v1890 = vshrl.u32 %v1889, 7
        %v1891 = vsub.s32 %v1888, %v1890
        %v1892 = vrot.slane %v1884, %v1891
        %v1894 = vunpack.c.l.s4 1983009808
        %v1895 = vunpack.c.0.s8 %v1894
        %v1896 = vlaneseq
        %v1897 = vshrl.u32 %v1896, 7
        %v1898 = vsub.s32 %v1895, %v1897
        %v1899 = vrot.slane %v1885, %v1898
        %v1900 = vcombine.low %v1844, %v1860
        %v1901 = vcombine.high %v1844, %v1860
        %v1903 = vunpack.c.l.s4 1934713408
        %v1904 = vunpack.c.0.s8 %v1903
        %v1905 = vlaneseq
        %v1906 = vshrl.u32 %v1905, 7
        %v1907 = vsub.s32 %v1904, %v1906
        %v1908 = vrot.slane %v1900, %v1907
        %v1910 = vunpack.c.l.s4 1934713408
        %v1911 = vunpack.c.0.s8 %v1910
        %v1912 = vlaneseq
        %v1913 = vshrl.u32 %v1912, 7
        %v1914 = vsub.s32 %v1911, %v1913
        %v1915 = vrot.slane %v1901, %v1914
        %v1916 = vcombine.low %v1851, %v1867
        %v1917 = vcombine.high %v1851, %v1867
        %v1919 = vunpack.c.l.s4 1934713408
        %v1920 = vunpack.c.0.s8 %v1919
        %v1921 = vlaneseq
        %v1922 = vshrl.u32 %v1921, 7
        %v1923 = vsub.s32 %v1920, %v1922
        %v1924 = vrot.slane %v1916, %v1923
        %v1926 = vunpack.c.l.s4 1934713408
        %v1927 = vunpack.c.0.s8 %v1926
        %v1928 = vlaneseq
        %v1929 = vshrl.u32 %v1928, 7
        %v1930 = vsub.s32 %v1927, %v1929
        %v1931 = vrot.slane %v1917, %v1930
        %v1932 = vcombine.low %v1876, %v1892
        %v1933 = vcombine.high %v1876, %v1892
        %v1935 = vunpack.c.l.s4 1934713408
        %v1936 = vunpack.c.0.s8 %v1935
        %v1937 = vlaneseq
        %v1938 = vshrl.u32 %v1937, 7
        %v1939 = vsub.s32 %v1936, %v1938
        %v1940 = vrot.slane %v1932, %v1939
        %v1942 = vunpack.c.l.s4 1934713408
        %v1943 = vunpack.c.0.s8 %v1942
        %v1944 = vlaneseq
        %v1945 = vshrl.u32 %v1944, 7
        %v1946 = vsub.s32 %v1943, %v1945
        %v1947 = vrot.slane %v1933, %v1946
        %v1948 = vcombine.low %v1883, %v1899
        %v1949 = vcombine.high %v1883, %v1899
        %v1951 = vunpack.c.l.s4 1934713408
        %v1952 = vunpack.c.0.s8 %v1951
        %v1953 = vlaneseq
        %v1954 = vshrl.u32 %v1953, 7
        %v1955 = vsub.s32 %v1952, %v1954
        %v1956 = vrot.slane %v1948, %v1955
        %v1958 = vunpack.c.l.s4 1934713408
        %v1959 = vunpack.c.0.s8 %v1958
        %v1960 = vlaneseq
        %v1961 = vshrl.u32 %v1960, 7
        %v1962 = vsub.s32 %v1959, %v1961
        %v1963 = vrot.slane %v1949, %v1962
        %v1964 = vcombine.low %v1908, %v1940
        %v1965 = vcombine.high %v1908, %v1940
        %v1966 = vcombine.low %v1915, %v1947
        %v1967 = vcombine.high %v1915, %v1947
        %v1968 = vcombine.low %v1924, %v1956
        %v1969 = vcombine.high %v1924, %v1956
        %v1970 = vcombine.low %v1931, %v1963
        %v1971 = vcombine.high %v1931, %v1963
        %v1972 = vcombine.low %v462, %v532
        %v1973 = vcombine.high %v462, %v532
        %v1975 = vunpack.c.l.s4 1983009808
        %v1976 = vunpack.c.0.s8 %v1975
        %v1977 = vlaneseq
        %v1978 = vshrl.u32 %v1977, 7
        %v1979 = vsub.s32 %v1976, %v1978
        %v1980 = vrot.slane %v1972, %v1979
        %v1982 = vunpack.c.l.s4 1983009808
        %v1983 = vunpack.c.0.s8 %v1982
        %v1984 = vlaneseq
        %v1985 = vshrl.u32 %v1984, 7
        %v1986 = vsub.s32 %v1983, %v1985
        %v1987 = vrot.slane %v1973, %v1986
        %v1988 = vcombine.low %v497, %v567
        %v1989 = vcombine.high %v497, %v567
        %v1991 = vunpack.c.l.s4 1983009808
        %v1992 = vunpack.c.0.s8 %v1991
        %v1993 = vlaneseq
        %v1994 = vshrl.u32 %v1993, 7
        %v1995 = vsub.s32 %v1992, %v1994
        %v1996 = vrot.slane %v1988, %v1995
        %v1998 = vunpack.c.l.s4 1983009808
        %v1999 = vunpack.c.0.s8 %v1998
        %v2000 = vlaneseq
        %v2001 = vshrl.u32 %v2000, 7
        %v2002 = vsub.s32 %v1999, %v2001
        %v2003 = vrot.slane %v1989, %v2002
        %v2004 = vcombine.low %v602, %v672
        %v2005 = vcombine.high %v602, %v672
        %v2007 = vunpack.c.l.s4 1983009808
        %v2008 = vunpack.c.0.s8 %v2007
        %v2009 = vlaneseq
        %v2010 = vshrl.u32 %v2009, 7
        %v2011 = vsub.s32 %v2008, %v2010
        %v2012 = vrot.slane %v2004, %v2011
        %v2014 = vunpack.c.l.s4 1983009808
        %v2015 = vunpack.c.0.s8 %v2014
        %v2016 = vlaneseq
        %v2017 = vshrl.u32 %v2016, 7
        %v2018 = vsub.s32 %v2015, %v2017
        %v2019 = vrot.slane %v2005, %v2018
        %v2020 = vcombine.low %v637, %v707
        %v2021 = vcombine.high %v637, %v707
        %v2023 = vunpack.c.l.s4 1983009808
        %v2024 = vunpack.c.0.s8 %v2023
        %v2025 = vlaneseq
        %v2026 = vshrl.u32 %v2025, 7
        %v2027 = vsub.s32 %v2024, %v2026
        %v2028 = vrot.slane %v2020, %v2027
        %v2030 = vunpack.c.l.s4 1983009808
        %v2031 = vunpack.c.0.s8 %v2030
        %v2032 = vlaneseq
        %v2033 = vshrl.u32 %v2032, 7
        %v2034 = vsub.s32 %v2031, %v2033
        %v2035 = vrot.slane %v2021, %v2034
        %v2036 = vcombine.low %v1980, %v1996
        %v2037 = vcombine.high %v1980, %v1996
        %v2039 = vunpack.c.l.s4 1934713408
        %v2040 = vunpack.c.0.s8 %v2039
        %v2041 = vlaneseq
        %v2042 = vshrl.u32 %v2041, 7
        %v2043 = vsub.s32 %v2040, %v2042
        %v2044 = vrot.slane %v2036, %v2043
        %v2046 = vunpack.c.l.s4 1934713408
        %v2047 = vunpack.c.0.s8 %v2046
        %v2048 = vlaneseq
        %v2049 = vshrl.u32 %v2048, 7
        %v2050 = vsub.s32 %v2047, %v2049
        %v2051 = vrot.slane %v2037, %v2050
        %v2052 = vcombine.low %v1987, %v2003
        %v2053 = vcombine.high %v1987, %v2003
        %v2055 = vunpack.c.l.s4 1934713408
        %v2056 = vunpack.c.0.s8 %v2055
        %v2057 = vlaneseq
        %v2058 = vshrl.u32 %v2057, 7
        %v2059 = vsub.s32 %v2056, %v2058
        %v2060 = vrot.slane %v2052, %v2059
        %v2062 = vunpack.c.l.s4 1934713408
        %v2063 = vunpack.c.0.s8 %v2062
        %v2064 = vlaneseq
        %v2065 = vshrl.u32 %v2064, 7
        %v2066 = vsub.s32 %v2063, %v2065
        %v2067 = vrot.slane %v2053, %v2066
        %v2068 = vcombine.low %v2012, %v2028
        %v2069 = vcombine.high %v2012, %v2028
        %v2071 = vunpack.c.l.s4 1934713408
        %v2072 = vunpack.c.0.s8 %v2071
        %v2073 = vlaneseq
        %v2074 = vshrl.u32 %v2073, 7
        %v2075 = vsub.s32 %v2072, %v2074
        %v2076 = vrot.slane %v2068, %v2075
        %v2078 = vunpack.c.l.s4 1934713408
        %v2079 = vunpack.c.0.s8 %v2078
        %v2080 = vlaneseq
        %v2081 = vshrl.u32 %v2080, 7
        %v2082 = vsub.s32 %v2079, %v2081
        %v2083 = vrot.slane %v2069, %v2082
        %v2084 = vcombine.low %v2019, %v2035
        %v2085 = vcombine.high %v2019, %v2035
        %v2087 = vunpack.c.l.s4 1934713408
        %v2088 = vunpack.c.0.s8 %v2087
        %v2089 = vlaneseq
        %v2090 = vshrl.u32 %v2089, 7
        %v2091 = vsub.s32 %v2088, %v2090
        %v2092 = vrot.slane %v2084, %v2091
        %v2094 = vunpack.c.l.s4 1934713408
        %v2095 = vunpack.c.0.s8 %v2094
        %v2096 = vlaneseq
        %v2097 = vshrl.u32 %v2096, 7
        %v2098 = vsub.s32 %v2095, %v2097
        %v2099 = vrot.slane %v2085, %v2098
        %v2100 = vcombine.low %v2044, %v2076
        %v2101 = vcombine.high %v2044, %v2076
        %v2102 = vcombine.low %v2051, %v2083
        %v2103 = vcombine.high %v2051, %v2083
        %v2104 = vcombine.low %v2060, %v2092
        %v2105 = vcombine.high %v2060, %v2092
        %v2106 = vcombine.low %v2067, %v2099
        %v2107 = vcombine.high %v2067, %v2099
        %v2108 = vcombine.low %v742, %v812
        %v2109 = vcombine.high %v742, %v812
        %v2111 = vunpack.c.l.s4 1983009808
        %v2112 = vunpack.c.0.s8 %v2111
        %v2113 = vlaneseq
        %v2114 = vshrl.u32 %v2113, 7
        %v2115 = vsub.s32 %v2112, %v2114
        %v2116 = vrot.slane %v2108, %v2115
        %v2118 = vunpack.c.l.s4 1983009808
        %v2119 = vunpack.c.0.s8 %v2118
        %v2120 = vlaneseq
        %v2121 = vshrl.u32 %v2120, 7
        %v2122 = vsub.s32 %v2119, %v2121
        %v2123 = vrot.slane %v2109, %v2122
        %v2124 = vcombine.low %v777, %v847
        %v2125 = vcombine.high %v777, %v847
        %v2127 = vunpack.c.l.s4 1983009808
        %v2128 = vunpack.c.0.s8 %v2127
        %v2129 = vlaneseq
        %v2130 = vshrl.u32 %v2129, 7
        %v2131 = vsub.s32 %v2128, %v2130
        %v2132 = vrot.slane %v2124, %v2131
        %v2134 = vunpack.c.l.s4 1983009808
        %v2135 = vunpack.c.0.s8 %v2134
        %v2136 = vlaneseq
        %v2137 = vshrl.u32 %v2136, 7
        %v2138 = vsub.s32 %v2135, %v2137
        %v2139 = vrot.slane %v2125, %v2138
        %v2140 = vcombine.low %v882, %v952
        %v2141 = vcombine.high %v882, %v952
        %v2143 = vunpack.c.l.s4 1983009808
        %v2144 = vunpack.c.0.s8 %v2143
        %v2145 = vlaneseq
        %v2146 = vshrl.u32 %v2145, 7
        %v2147 = vsub.s32 %v2144, %v2146
        %v2148 = vrot.slane %v2140, %v2147
        %v2150 = vunpack.c.l.s4 1983009808
        %v2151 = vunpack.c.0.s8 %v2150
        %v2152 = vlaneseq
        %v2153 = vshrl.u32 %v2152, 7
        %v2154 = vsub.s32 %v2151, %v2153
        %v2155 = vrot.slane %v2141, %v2154
        %v2156 = vcombine.low %v917, %v987
        %v2157 = vcombine.high %v917, %v987
        %v2159 = vunpack.c.l.s4 1983009808
        %v2160 = vunpack.c.0.s8 %v2159
        %v2161 = vlaneseq
        %v2162 = vshrl.u32 %v2161, 7
        %v2163 = vsub.s32 %v2160, %v2162
        %v2164 = vrot.slane %v2156, %v2163
        %v2166 = vunpack.c.l.s4 1983009808
        %v2167 = vunpack.c.0.s8 %v2166
        %v2168 = vlaneseq
        %v2169 = vshrl.u32 %v2168, 7
        %v2170 = vsub.s32 %v2167, %v2169
        %v2171 = vrot.slane %v2157, %v2170
        %v2172 = vcombine.low %v2116, %v2132
        %v2173 = vcombine.high %v2116, %v2132
        %v2175 = vunpack.c.l.s4 1934713408
        %v2176 = vunpack.c.0.s8 %v2175
        %v2177 = vlaneseq
        %v2178 = vshrl.u32 %v2177, 7
        %v2179 = vsub.s32 %v2176, %v2178
        %v2180 = vrot.slane %v2172, %v2179
        %v2182 = vunpack.c.l.s4 1934713408
        %v2183 = vunpack.c.0.s8 %v2182
        %v2184 = vlaneseq
        %v2185 = vshrl.u32 %v2184, 7
        %v2186 = vsub.s32 %v2183, %v2185
        %v2187 = vrot.slane %v2173, %v2186
        %v2188 = vcombine.low %v2123, %v2139
        %v2189 = vcombine.high %v2123, %v2139
        %v2191 = vunpack.c.l.s4 1934713408
        %v2192 = vunpack.c.0.s8 %v2191
        %v2193 = vlaneseq
        %v2194 = vshrl.u32 %v2193, 7
        %v2195 = vsub.s32 %v2192, %v2194
        %v2196 = vrot.slane %v2188, %v2195
        %v2198 = vunpack.c.l.s4 1934713408
        %v2199 = vunpack.c.0.s8 %v2198
        %v2200 = vlaneseq
        %v2201 = vshrl.u32 %v2200, 7
        %v2202 = vsub.s32 %v2199, %v2201
        %v2203 = vrot.slane %v2189, %v2202
        %v2204 = vcombine.low %v2148, %v2164
        %v2205 = vcombine.high %v2148, %v2164
        %v2207 = vunpack.c.l.s4 1934713408
        %v2208 = vunpack.c.0.s8 %v2207
        %v2209 = vlaneseq
        %v2210 = vshrl.u32 %v2209, 7
        %v2211 = vsub.s32 %v2208, %v2210
        %v2212 = vrot.slane %v2204, %v2211
        %v2214 = vunpack.c.l.s4 1934713408
        %v2215 = vunpack.c.0.s8 %v2214
        %v2216 = vlaneseq
        %v2217 = vshrl.u32 %v2216, 7
        %v2218 = vsub.s32 %v2215, %v2217
        %v2219 = vrot.slane %v2205, %v2218
        %v2220 = vcombine.low %v2155, %v2171
        %v2221 = vcombine.high %v2155, %v2171
        %v2223 = vunpack.c.l.s4 1934713408
        %v2224 = vunpack.c.0.s8 %v2223
        %v2225 = vlaneseq
        %v2226 = vshrl.u32 %v2225, 7
        %v2227 = vsub.s32 %v2224, %v2226
        %v2228 = vrot.slane %v2220, %v2227
        %v2230 = vunpack.c.l.s4 1934713408
        %v2231 = vunpack.c.0.s8 %v2230
        %v2232 = vlaneseq
        %v2233 = vshrl.u32 %v2232, 7
        %v2234 = vsub.s32 %v2231, %v2233
        %v2235 = vrot.slane %v2221, %v2234
        %v2236 = vcombine.low %v2180, %v2212
        %v2237 = vcombine.high %v2180, %v2212
        %v2238 = vcombine.low %v2187, %v2219
        %v2239 = vcombine.high %v2187, %v2219
        %v2240 = vcombine.low %v2196, %v2228
        %v2241 = vcombine.high %v2196, %v2228
        %v2242 = vcombine.low %v2203, %v2235
        %v2243 = vcombine.high %v2203, %v2235
        %v2244 = vcombine.low %v1022, %v1092
        %v2245 = vcombine.high %v1022, %v1092
        %v2247 = vunpack.c.l.s4 1983009808
        %v2248 = vunpack.c.0.s8 %v2247
        %v2249 = vlaneseq
        %v2250 = vshrl.u32 %v2249, 7
        %v2251 = vsub.s32 %v2248, %v2250
        %v2252 = vrot.slane %v2244, %v2251
        %v2254 = vunpack.c.l.s4 1983009808
        %v2255 = vunpack.c.0.s8 %v2254
        %v2256 = vlaneseq
        %v2257 = vshrl.u32 %v2256, 7
        %v2258 = vsub.s32 %v2255, %v2257
        %v2259 = vrot.slane %v2245, %v2258
        %v2260 = vcombine.low %v1057, %v1127
        %v2261 = vcombine.high %v1057, %v1127
        %v2263 = vunpack.c.l.s4 1983009808
        %v2264 = vunpack.c.0.s8 %v2263
        %v2265 = vlaneseq
        %v2266 = vshrl.u32 %v2265, 7
        %v2267 = vsub.s32 %v2264, %v2266
        %v2268 = vrot.slane %v2260, %v2267
        %v2270 = vunpack.c.l.s4 1983009808
        %v2271 = vunpack.c.0.s8 %v2270
        %v2272 = vlaneseq
        %v2273 = vshrl.u32 %v2272, 7
        %v2274 = vsub.s32 %v2271, %v2273
        %v2275 = vrot.slane %v2261, %v2274
        %v2276 = vcombine.low %v1162, %v1232
        %v2277 = vcombine.high %v1162, %v1232
        %v2279 = vunpack.c.l.s4 1983009808
        %v2280 = vunpack.c.0.s8 %v2279
        %v2281 = vlaneseq
        %v2282 = vshrl.u32 %v2281, 7
        %v2283 = vsub.s32 %v2280, %v2282
        %v2284 = vrot.slane %v2276, %v2283
        %v2286 = vunpack.c.l.s4 1983009808
        %v2287 = vunpack.c.0.s8 %v2286
        %v2288 = vlaneseq
        %v2289 = vshrl.u32 %v2288, 7
        %v2290 = vsub.s32 %v2287, %v2289
        %v2291 = vrot.slane %v2277, %v2290
        %v2292 = vcombine.low %v1197, %v1267
        %v2293 = vcombine.high %v1197, %v1267
        %v2295 = vunpack.c.l.s4 1983009808
        %v2296 = vunpack.c.0.s8 %v2295
        %v2297 = vlaneseq
        %v2298 = vshrl.u32 %v2297, 7
        %v2299 = vsub.s32 %v2296, %v2298
        %v2300 = vrot.slane %v2292, %v2299
        %v2302 = vunpack.c.l.s4 1983009808
        %v2303 = vunpack.c.0.s8 %v2302
        %v2304 = vlaneseq
        %v2305 = vshrl.u32 %v2304, 7
        %v2306 = vsub.s32 %v2303, %v2305
        %v2307 = vrot.slane %v2293, %v2306
        %v2308 = vcombine.low %v2252, %v2268
        %v2309 = vcombine.high %v2252, %v2268
        %v2311 = vunpack.c.l.s4 1934713408
        %v2312 = vunpack.c.0.s8 %v2311
        %v2313 = vlaneseq
        %v2314 = vshrl.u32 %v2313, 7
        %v2315 = vsub.s32 %v2312, %v2314
        %v2316 = vrot.slane %v2308, %v2315
        %v2318 = vunpack.c.l.s4 1934713408
        %v2319 = vunpack.c.0.s8 %v2318
        %v2320 = vlaneseq
        %v2321 = vshrl.u32 %v2320, 7
        %v2322 = vsub.s32 %v2319, %v2321
        %v2323 = vrot.slane %v2309, %v2322
        %v2324 = vcombine.low %v2259, %v2275
        %v2325 = vcombine.high %v2259, %v2275
        %v2327 = vunpack.c.l.s4 1934713408
        %v2328 = vunpack.c.0.s8 %v2327
        %v2329 = vlaneseq
        %v2330 = vshrl.u32 %v2329, 7
        %v2331 = vsub.s32 %v2328, %v2330
        %v2332 = vrot.slane %v2324, %v2331
        %v2334 = vunpack.c.l.s4 1934713408
        %v2335 = vunpack.c.0.s8 %v2334
        %v2336 = vlaneseq
        %v2337 = vshrl.u32 %v2336, 7
        %v2338 = vsub.s32 %v2335, %v2337
        %v2339 = vrot.slane %v2325, %v2338
        %v2340 = vcombine.low %v2284, %v2300
        %v2341 = vcombine.high %v2284, %v2300
        %v2343 = vunpack.c.l.s4 1934713408
        %v2344 = vunpack.c.0.s8 %v2343
        %v2345 = vlaneseq
        %v2346 = vshrl.u32 %v2345, 7
        %v2347 = vsub.s32 %v2344, %v2346
        %v2348 = vrot.slane %v2340, %v2347
        %v2350 = vunpack.c.l.s4 1934713408
        %v2351 = vunpack.c.0.s8 %v2350
        %v2352 = vlaneseq
        %v2353 = vshrl.u32 %v2352, 7
        %v2354 = vsub.s32 %v2351, %v2353
        %v2355 = vrot.slane %v2341, %v2354
        %v2356 = vcombine.low %v2291, %v2307
        %v2357 = vcombine.high %v2291, %v2307
        %v2359 = vunpack.c.l.s4 1934713408
        %v2360 = vunpack.c.0.s8 %v2359
        %v2361 = vlaneseq
        %v2362 = vshrl.u32 %v2361, 7
        %v2363 = vsub.s32 %v2360, %v2362
        %v2364 = vrot.slane %v2356, %v2363
        %v2366 = vunpack.c.l.s4 1934713408
        %v2367 = vunpack.c.0.s8 %v2366
        %v2368 = vlaneseq
        %v2369 = vshrl.u32 %v2368, 7
        %v2370 = vsub.s32 %v2367, %v2369
        %v2371 = vrot.slane %v2357, %v2370
        %v2372 = vcombine.low %v2316, %v2348
        %v2373 = vcombine.high %v2316, %v2348
        %v2374 = vcombine.low %v2323, %v2355
        %v2375 = vcombine.high %v2323, %v2355
        %v2376 = vcombine.low %v2332, %v2364
        %v2377 = vcombine.high %v2332, %v2364
        %v2378 = vcombine.low %v2339, %v2371
        %v2379 = vcombine.high %v2339, %v2371
        %v2380 = vcombine.low %v186, %v256
        %v2381 = vcombine.high %v186, %v256
        %v2383 = vunpack.c.l.s4 1983009808
        %v2384 = vunpack.c.0.s8 %v2383
        %v2385 = vlaneseq
        %v2386 = vshrl.u32 %v2385, 7
        %v2387 = vsub.s32 %v2384, %v2386
        %v2388 = vrot.slane %v2380, %v2387
        %v2390 = vunpack.c.l.s4 1983009808
        %v2391 = vunpack.c.0.s8 %v2390
        %v2392 = vlaneseq
        %v2393 = vshrl.u32 %v2392, 7
        %v2394 = vsub.s32 %v2391, %v2393
        %v2395 = vrot.slane %v2381, %v2394
        %v2396 = vcombine.low %v221, %v291
        %v2397 = vcombine.high %v221, %v291
        %v2399 = vunpack.c.l.s4 1983009808
        %v2400 = vunpack.c.0.s8 %v2399
        %v2401 = vlaneseq
        %v2402 = vshrl.u32 %v2401, 7
        %v2403 = vsub.s32 %v2400, %v2402
        %v2404 = vrot.slane %v2396, %v2403
        %v2406 = vunpack.c.l.s4 1983009808
        %v2407 = vunpack.c.0.s8 %v2406
        %v2408 = vlaneseq
        %v2409 = vshrl.u32 %v2408, 7
        %v2410 = vsub.s32 %v2407, %v2409
        %v2411 = vrot.slane %v2397, %v2410
        %v2412 = vcombine.low %v326, %v396
        %v2413 = vcombine.high %v326, %v396
        %v2415 = vunpack.c.l.s4 1983009808
        %v2416 = vunpack.c.0.s8 %v2415
        %v2417 = vlaneseq
        %v2418 = vshrl.u32 %v2417, 7
        %v2419 = vsub.s32 %v2416, %v2418
        %v2420 = vrot.slane %v2412, %v2419
        %v2422 = vunpack.c.l.s4 1983009808
        %v2423 = vunpack.c.0.s8 %v2422
        %v2424 = vlaneseq
        %v2425 = vshrl.u32 %v2424, 7
        %v2426 = vsub.s32 %v2423, %v2425
        %v2427 = vrot.slane %v2413, %v2426
        %v2428 = vcombine.low %v361, %v431
        %v2429 = vcombine.high %v361, %v431
        %v2431 = vunpack.c.l.s4 1983009808
        %v2432 = vunpack.c.0.s8 %v2431
        %v2433 = vlaneseq
        %v2434 = vshrl.u32 %v2433, 7
        %v2435 = vsub.s32 %v2432, %v2434
        %v2436 = vrot.slane %v2428, %v2435
        %v2438 = vunpack.c.l.s4 1983009808
        %v2439 = vunpack.c.0.s8 %v2438
        %v2440 = vlaneseq
        %v2441 = vshrl.u32 %v2440, 7
        %v2442 = vsub.s32 %v2439, %v2441
        %v2443 = vrot.slane %v2429, %v2442
        %v2444 = vcombine.low %v2388, %v2404
        %v2445 = vcombine.high %v2388, %v2404
        %v2447 = vunpack.c.l.s4 1934713408
        %v2448 = vunpack.c.0.s8 %v2447
        %v2449 = vlaneseq
        %v2450 = vshrl.u32 %v2449, 7
        %v2451 = vsub.s32 %v2448, %v2450
        %v2452 = vrot.slane %v2444, %v2451
        %v2454 = vunpack.c.l.s4 1934713408
        %v2455 = vunpack.c.0.s8 %v2454
        %v2456 = vlaneseq
        %v2457 = vshrl.u32 %v2456, 7
        %v2458 = vsub.s32 %v2455, %v2457
        %v2459 = vrot.slane %v2445, %v2458
        %v2460 = vcombine.low %v2395, %v2411
        %v2461 = vcombine.high %v2395, %v2411
        %v2463 = vunpack.c.l.s4 1934713408
        %v2464 = vunpack.c.0.s8 %v2463
        %v2465 = vlaneseq
        %v2466 = vshrl.u32 %v2465, 7
        %v2467 = vsub.s32 %v2464, %v2466
        %v2468 = vrot.slane %v2460, %v2467
        %v2470 = vunpack.c.l.s4 1934713408
        %v2471 = vunpack.c.0.s8 %v2470
        %v2472 = vlaneseq
        %v2473 = vshrl.u32 %v2472, 7
        %v2474 = vsub.s32 %v2471, %v2473
        %v2475 = vrot.slane %v2461, %v2474
        %v2476 = vcombine.low %v2420, %v2436
        %v2477 = vcombine.high %v2420, %v2436
        %v2479 = vunpack.c.l.s4 1934713408
        %v2480 = vunpack.c.0.s8 %v2479
        %v2481 = vlaneseq
        %v2482 = vshrl.u32 %v2481, 7
        %v2483 = vsub.s32 %v2480, %v2482
        %v2484 = vrot.slane %v2476, %v2483
        %v2486 = vunpack.c.l.s4 1934713408
        %v2487 = vunpack.c.0.s8 %v2486
        %v2488 = vlaneseq
        %v2489 = vshrl.u32 %v2488, 7
        %v2490 = vsub.s32 %v2487, %v2489
        %v2491 = vrot.slane %v2477, %v2490
        %v2492 = vcombine.low %v2427, %v2443
        %v2493 = vcombine.high %v2427, %v2443
        %v2495 = vunpack.c.l.s4 1934713408
        %v2496 = vunpack.c.0.s8 %v2495
        %v2497 = vlaneseq
        %v2498 = vshrl.u32 %v2497, 7
        %v2499 = vsub.s32 %v2496, %v2498
        %v2500 = vrot.slane %v2492, %v2499
        %v2502 = vunpack.c.l.s4 1934713408
        %v2503 = vunpack.c.0.s8 %v2502
        %v2504 = vlaneseq
        %v2505 = vshrl.u32 %v2504, 7
        %v2506 = vsub.s32 %v2503, %v2505
        %v2507 = vrot.slane %v2493, %v2506
        %v2508 = vcombine.low %v2452, %v2484
        %v2509 = vcombine.high %v2452, %v2484
        %v2510 = vcombine.low %v2459, %v2491
        %v2511 = vcombine.high %v2459, %v2491
        %v2512 = vcombine.low %v2468, %v2500
        %v2513 = vcombine.high %v2468, %v2500
        %v2514 = vcombine.low %v2475, %v2507
        %v2515 = vcombine.high %v2475, %v2507
        %v2516 = vcombine.low %v466, %v536
        %v2517 = vcombine.high %v466, %v536
        %v2519 = vunpack.c.l.s4 1983009808
        %v2520 = vunpack.c.0.s8 %v2519
        %v2521 = vlaneseq
        %v2522 = vshrl.u32 %v2521, 7
        %v2523 = vsub.s32 %v2520, %v2522
        %v2524 = vrot.slane %v2516, %v2523
        %v2526 = vunpack.c.l.s4 1983009808
        %v2527 = vunpack.c.0.s8 %v2526
        %v2528 = vlaneseq
        %v2529 = vshrl.u32 %v2528, 7
        %v2530 = vsub.s32 %v2527, %v2529
        %v2531 = vrot.slane %v2517, %v2530
        %v2532 = vcombine.low %v501, %v571
        %v2533 = vcombine.high %v501, %v571
        %v2535 = vunpack.c.l.s4 1983009808
        %v2536 = vunpack.c.0.s8 %v2535
        %v2537 = vlaneseq
        %v2538 = vshrl.u32 %v2537, 7
        %v2539 = vsub.s32 %v2536, %v2538
        %v2540 = vrot.slane %v2532, %v2539
        %v2542 = vunpack.c.l.s4 1983009808
        %v2543 = vunpack.c.0.s8 %v2542
        %v2544 = vlaneseq
        %v2545 = vshrl.u32 %v2544, 7
        %v2546 = vsub.s32 %v2543, %v2545
        %v2547 = vrot.slane %v2533, %v2546
        %v2548 = vcombine.low %v606, %v676
        %v2549 = vcombine.high %v606, %v676
        %v2551 = vunpack.c.l.s4 1983009808
        %v2552 = vunpack.c.0.s8 %v2551
        %v2553 = vlaneseq
        %v2554 = vshrl.u32 %v2553, 7
        %v2555 = vsub.s32 %v2552, %v2554
        %v2556 = vrot.slane %v2548, %v2555
        %v2558 = vunpack.c.l.s4 1983009808
        %v2559 = vunpack.c.0.s8 %v2558
        %v2560 = vlaneseq
        %v2561 = vshrl.u32 %v2560, 7
        %v2562 = vsub.s32 %v2559, %v2561
        %v2563 = vrot.slane %v2549, %v2562
        %v2564 = vcombine.low %v641, %v711
        %v2565 = vcombine.high %v641, %v711
        %v2567 = vunpack.c.l.s4 1983009808
        %v2568 = vunpack.c.0.s8 %v2567
        %v2569 = vlaneseq
        %v2570 = vshrl.u32 %v2569, 7
        %v2571 = vsub.s32 %v2568, %v2570
        %v2572 = vrot.slane %v2564, %v2571
        %v2574 = vunpack.c.l.s4 1983009808
        %v2575 = vunpack.c.0.s8 %v2574
        %v2576 = vlaneseq
        %v2577 = vshrl.u32 %v2576, 7
        %v2578 = vsub.s32 %v2575, %v2577
        %v2579 = vrot.slane %v2565, %v2578
        %v2580 = vcombine.low %v2524, %v2540
        %v2581 = vcombine.high %v2524, %v2540
        %v2583 = vunpack.c.l.s4 1934713408
        %v2584 = vunpack.c.0.s8 %v2583
        %v2585 = vlaneseq
        %v2586 = vshrl.u32 %v2585, 7
        %v2587 = vsub.s32 %v2584, %v2586
        %v2588 = vrot.slane %v2580, %v2587
        %v2590 = vunpack.c.l.s4 1934713408
        %v2591 = vunpack.c.0.s8 %v2590
        %v2592 = vlaneseq
        %v2593 = vshrl.u32 %v2592, 7
        %v2594 = vsub.s32 %v2591, %v2593
        %v2595 = vrot.slane %v2581, %v2594
        %v2596 = vcombine.low %v2531, %v2547
        %v2597 = vcombine.high %v2531, %v2547
        %v2599 = vunpack.c.l.s4 1934713408
        %v2600 = vunpack.c.0.s8 %v2599
        %v2601 = vlaneseq
        %v2602 = vshrl.u32 %v2601, 7
        %v2603 = vsub.s32 %v2600, %v2602
        %v2604 = vrot.slane %v2596, %v2603
        %v2606 = vunpack.c.l.s4 1934713408
        %v2607 = vunpack.c.0.s8 %v2606
        %v2608 = vlaneseq
        %v2609 = vshrl.u32 %v2608, 7
        %v2610 = vsub.s32 %v2607, %v2609
        %v2611 = vrot.slane %v2597, %v2610
        %v2612 = vcombine.low %v2556, %v2572
        %v2613 = vcombine.high %v2556, %v2572
        %v2615 = vunpack.c.l.s4 1934713408
        %v2616 = vunpack.c.0.s8 %v2615
        %v2617 = vlaneseq
        %v2618 = vshrl.u32 %v2617, 7
        %v2619 = vsub.s32 %v2616, %v2618
        %v2620 = vrot.slane %v2612, %v2619
        %v2622 = vunpack.c.l.s4 1934713408
        %v2623 = vunpack.c.0.s8 %v2622
        %v2624 = vlaneseq
        %v2625 = vshrl.u32 %v2624, 7
        %v2626 = vsub.s32 %v2623, %v2625
        %v2627 = vrot.slane %v2613, %v2626
        %v2628 = vcombine.low %v2563, %v2579
        %v2629 = vcombine.high %v2563, %v2579
        %v2631 = vunpack.c.l.s4 1934713408
        %v2632 = vunpack.c.0.s8 %v2631
        %v2633 = vlaneseq
        %v2634 = vshrl.u32 %v2633, 7
        %v2635 = vsub.s32 %v2632, %v2634
        %v2636 = vrot.slane %v2628, %v2635
        %v2638 = vunpack.c.l.s4 1934713408
        %v2639 = vunpack.c.0.s8 %v2638
        %v2640 = vlaneseq
        %v2641 = vshrl.u32 %v2640, 7
        %v2642 = vsub.s32 %v2639, %v2641
        %v2643 = vrot.slane %v2629, %v2642
        %v2644 = vcombine.low %v2588, %v2620
        %v2645 = vcombine.high %v2588, %v2620
        %v2646 = vcombine.low %v2595, %v2627
        %v2647 = vcombine.high %v2595, %v2627
        %v2648 = vcombine.low %v2604, %v2636
        %v2649 = vcombine.high %v2604, %v2636
        %v2650 = vcombine.low %v2611, %v2643
        %v2651 = vcombine.high %v2611, %v2643
        %v2652 = vcombine.low %v746, %v816
        %v2653 = vcombine.high %v746, %v816
        %v2655 = vunpack.c.l.s4 1983009808
        %v2656 = vunpack.c.0.s8 %v2655
        %v2657 = vlaneseq
        %v2658 = vshrl.u32 %v2657, 7
        %v2659 = vsub.s32 %v2656, %v2658
        %v2660 = vrot.slane %v2652, %v2659
        %v2662 = vunpack.c.l.s4 1983009808
        %v2663 = vunpack.c.0.s8 %v2662
        %v2664 = vlaneseq
        %v2665 = vshrl.u32 %v2664, 7
        %v2666 = vsub.s32 %v2663, %v2665
        %v2667 = vrot.slane %v2653, %v2666
        %v2668 = vcombine.low %v781, %v851
        %v2669 = vcombine.high %v781, %v851
        %v2671 = vunpack.c.l.s4 1983009808
        %v2672 = vunpack.c.0.s8 %v2671
        %v2673 = vlaneseq
        %v2674 = vshrl.u32 %v2673, 7
        %v2675 = vsub.s32 %v2672, %v2674
        %v2676 = vrot.slane %v2668, %v2675
        %v2678 = vunpack.c.l.s4 1983009808
        %v2679 = vunpack.c.0.s8 %v2678
        %v2680 = vlaneseq
        %v2681 = vshrl.u32 %v2680, 7
        %v2682 = vsub.s32 %v2679, %v2681
        %v2683 = vrot.slane %v2669, %v2682
        %v2684 = vcombine.low %v886, %v956
        %v2685 = vcombine.high %v886, %v956
        %v2687 = vunpack.c.l.s4 1983009808
        %v2688 = vunpack.c.0.s8 %v2687
        %v2689 = vlaneseq
        %v2690 = vshrl.u32 %v2689, 7
        %v2691 = vsub.s32 %v2688, %v2690
        %v2692 = vrot.slane %v2684, %v2691
        %v2694 = vunpack.c.l.s4 1983009808
        %v2695 = vunpack.c.0.s8 %v2694
        %v2696 = vlaneseq
        %v2697 = vshrl.u32 %v2696, 7
        %v2698 = vsub.s32 %v2695, %v2697
        %v2699 = vrot.slane %v2685, %v2698
        %v2700 = vcombine.low %v921, %v991
        %v2701 = vcombine.high %v921, %v991
        %v2703 = vunpack.c.l.s4 1983009808
        %v2704 = vunpack.c.0.s8 %v2703
        %v2705 = vlaneseq
        %v2706 = vshrl.u32 %v2705, 7
        %v2707 = vsub.s32 %v2704, %v2706
        %v2708 = vrot.slane %v2700, %v2707
        %v2710 = vunpack.c.l.s4 1983009808
        %v2711 = vunpack.c.0.s8 %v2710
        %v2712 = vlaneseq
        %v2713 = vshrl.u32 %v2712, 7
        %v2714 = vsub.s32 %v2711, %v2713
        %v2715 = vrot.slane %v2701, %v2714
        %v2716 = vcombine.low %v2660, %v2676
        %v2717 = vcombine.high %v2660, %v2676
        %v2719 = vunpack.c.l.s4 1934713408
        %v2720 = vunpack.c.0.s8 %v2719
        %v2721 = vlaneseq
        %v2722 = vshrl.u32 %v2721, 7
        %v2723 = vsub.s32 %v2720, %v2722
        %v2724 = vrot.slane %v2716, %v2723
        %v2726 = vunpack.c.l.s4 1934713408
        %v2727 = vunpack.c.0.s8 %v2726
        %v2728 = vlaneseq
        %v2729 = vshrl.u32 %v2728, 7
        %v2730 = vsub.s32 %v2727, %v2729
        %v2731 = vrot.slane %v2717, %v2730
        %v2732 = vcombine.low %v2667, %v2683
        %v2733 = vcombine.high %v2667, %v2683
        %v2735 = vunpack.c.l.s4 1934713408
        %v2736 = vunpack.c.0.s8 %v2735
        %v2737 = vlaneseq
        %v2738 = vshrl.u32 %v2737, 7
        %v2739 = vsub.s32 %v2736, %v2738
        %v2740 = vrot.slane %v2732, %v2739
        %v2742 = vunpack.c.l.s4 1934713408
        %v2743 = vunpack.c.0.s8 %v2742
        %v2744 = vlaneseq
        %v2745 = vshrl.u32 %v2744, 7
        %v2746 = vsub.s32 %v2743, %v2745
        %v2747 = vrot.slane %v2733, %v2746
        %v2748 = vcombine.low %v2692, %v2708
        %v2749 = vcombine.high %v2692, %v2708
        %v2751 = vunpack.c.l.s4 1934713408
        %v2752 = vunpack.c.0.s8 %v2751
        %v2753 = vlaneseq
        %v2754 = vshrl.u32 %v2753, 7
        %v2755 = vsub.s32 %v2752, %v2754
        %v2756 = vrot.slane %v2748, %v2755
        %v2758 = vunpack.c.l.s4 1934713408
        %v2759 = vunpack.c.0.s8 %v2758
        %v2760 = vlaneseq
        %v2761 = vshrl.u32 %v2760, 7
        %v2762 = vsub.s32 %v2759, %v2761
        %v2763 = vrot.slane %v2749, %v2762
        %v2764 = vcombine.low %v2699, %v2715
        %v2765 = vcombine.high %v2699, %v2715
        %v2767 = vunpack.c.l.s4 1934713408
        %v2768 = vunpack.c.0.s8 %v2767
        %v2769 = vlaneseq
        %v2770 = vshrl.u32 %v2769, 7
        %v2771 = vsub.s32 %v2768, %v2770
        %v2772 = vrot.slane %v2764, %v2771
        %v2774 = vunpack.c.l.s4 1934713408
        %v2775 = vunpack.c.0.s8 %v2774
        %v2776 = vlaneseq
        %v2777 = vshrl.u32 %v2776, 7
        %v2778 = vsub.s32 %v2775, %v2777
        %v2779 = vrot.slane %v2765, %v2778
        %v2780 = vcombine.low %v2724, %v2756
        %v2781 = vcombine.high %v2724, %v2756
        %v2782 = vcombine.low %v2731, %v2763
        %v2783 = vcombine.high %v2731, %v2763
        %v2784 = vcombine.low %v2740, %v2772
        %v2785 = vcombine.high %v2740, %v2772
        %v2786 = vcombine.low %v2747, %v2779
        %v2787 = vcombine.high %v2747, %v2779
        %v2788 = vcombine.low %v1026, %v1096
        %v2789 = vcombine.high %v1026, %v1096
        %v2791 = vunpack.c.l.s4 1983009808
        %v2792 = vunpack.c.0.s8 %v2791
        %v2793 = vlaneseq
        %v2794 = vshrl.u32 %v2793, 7
        %v2795 = vsub.s32 %v2792, %v2794
        %v2796 = vrot.slane %v2788, %v2795
        %v2798 = vunpack.c.l.s4 1983009808
        %v2799 = vunpack.c.0.s8 %v2798
        %v2800 = vlaneseq
        %v2801 = vshrl.u32 %v2800, 7
        %v2802 = vsub.s32 %v2799, %v2801
        %v2803 = vrot.slane %v2789, %v2802
        %v2804 = vcombine.low %v1061, %v1131
        %v2805 = vcombine.high %v1061, %v1131
        %v2807 = vunpack.c.l.s4 1983009808
        %v2808 = vunpack.c.0.s8 %v2807
        %v2809 = vlaneseq
        %v2810 = vshrl.u32 %v2809, 7
        %v2811 = vsub.s32 %v2808, %v2810
        %v2812 = vrot.slane %v2804, %v2811
        %v2814 = vunpack.c.l.s4 1983009808
        %v2815 = vunpack.c.0.s8 %v2814
        %v2816 = vlaneseq
        %v2817 = vshrl.u32 %v2816, 7
        %v2818 = vsub.s32 %v2815, %v2817
        %v2819 = vrot.slane %v2805, %v2818
        %v2820 = vcombine.low %v1166, %v1236
        %v2821 = vcombine.high %v1166, %v1236
        %v2823 = vunpack.c.l.s4 1983009808
        %v2824 = vunpack.c.0.s8 %v2823
        %v2825 = vlaneseq
        %v2826 = vshrl.u32 %v2825, 7
        %v2827 = vsub.s32 %v2824, %v2826
        %v2828 = vrot.slane %v2820, %v2827
        %v2830 = vunpack.c.l.s4 1983009808
        %v2831 = vunpack.c.0.s8 %v2830
        %v2832 = vlaneseq
        %v2833 = vshrl.u32 %v2832, 7
        %v2834 = vsub.s32 %v2831, %v2833
        %v2835 = vrot.slane %v2821, %v2834
        %v2836 = vcombine.low %v1201, %v1271
        %v2837 = vcombine.high %v1201, %v1271
        %v2839 = vunpack.c.l.s4 1983009808
        %v2840 = vunpack.c.0.s8 %v2839
        %v2841 = vlaneseq
        %v2842 = vshrl.u32 %v2841, 7
        %v2843 = vsub.s32 %v2840, %v2842
        %v2844 = vrot.slane %v2836, %v2843
        %v2846 = vunpack.c.l.s4 1983009808
        %v2847 = vunpack.c.0.s8 %v2846
        %v2848 = vlaneseq
        %v2849 = vshrl.u32 %v2848, 7
        %v2850 = vsub.s32 %v2847, %v2849
        %v2851 = vrot.slane %v2837, %v2850
        %v2852 = vcombine.low %v2796, %v2812
        %v2853 = vcombine.high %v2796, %v2812
        %v2855 = vunpack.c.l.s4 1934713408
        %v2856 = vunpack.c.0.s8 %v2855
        %v2857 = vlaneseq
        %v2858 = vshrl.u32 %v2857, 7
        %v2859 = vsub.s32 %v2856, %v2858
        %v2860 = vrot.slane %v2852, %v2859
        %v2862 = vunpack.c.l.s4 1934713408
        %v2863 = vunpack.c.0.s8 %v2862
        %v2864 = vlaneseq
        %v2865 = vshrl.u32 %v2864, 7
        %v2866 = vsub.s32 %v2863, %v2865
        %v2867 = vrot.slane %v2853, %v2866
        %v2868 = vcombine.low %v2803, %v2819
        %v2869 = vcombine.high %v2803, %v2819
        %v2871 = vunpack.c.l.s4 1934713408
        %v2872 = vunpack.c.0.s8 %v2871
        %v2873 = vlaneseq
        %v2874 = vshrl.u32 %v2873, 7
        %v2875 = vsub.s32 %v2872, %v2874
        %v2876 = vrot.slane %v2868, %v2875
        %v2878 = vunpack.c.l.s4 1934713408
        %v2879 = vunpack.c.0.s8 %v2878
        %v2880 = vlaneseq
        %v2881 = vshrl.u32 %v2880, 7
        %v2882 = vsub.s32 %v2879, %v2881
        %v2883 = vrot.slane %v2869, %v2882
        %v2884 = vcombine.low %v2828, %v2844
        %v2885 = vcombine.high %v2828, %v2844
        %v2887 = vunpack.c.l.s4 1934713408
        %v2888 = vunpack.c.0.s8 %v2887
        %v2889 = vlaneseq
        %v2890 = vshrl.u32 %v2889, 7
        %v2891 = vsub.s32 %v2888, %v2890
        %v2892 = vrot.slane %v2884, %v2891
        %v2894 = vunpack.c.l.s4 1934713408
        %v2895 = vunpack.c.0.s8 %v2894
        %v2896 = vlaneseq
        %v2897 = vshrl.u32 %v2896, 7
        %v2898 = vsub.s32 %v2895, %v2897
        %v2899 = vrot.slane %v2885, %v2898
        %v2900 = vcombine.low %v2835, %v2851
        %v2901 = vcombine.high %v2835, %v2851
        %v2903 = vunpack.c.l.s4 1934713408
        %v2904 = vunpack.c.0.s8 %v2903
        %v2905 = vlaneseq
        %v2906 = vshrl.u32 %v2905, 7
        %v2907 = vsub.s32 %v2904, %v2906
        %v2908 = vrot.slane %v2900, %v2907
        %v2910 = vunpack.c.l.s4 1934713408
        %v2911 = vunpack.c.0.s8 %v2910
        %v2912 = vlaneseq
        %v2913 = vshrl.u32 %v2912, 7
        %v2914 = vsub.s32 %v2911, %v2913
        %v2915 = vrot.slane %v2901, %v2914
        %v2916 = vcombine.low %v2860, %v2892
        %v2917 = vcombine.high %v2860, %v2892
        %v2918 = vcombine.low %v2867, %v2899
        %v2919 = vcombine.high %v2867, %v2899
        %v2920 = vcombine.low %v2876, %v2908
        %v2921 = vcombine.high %v2876, %v2908
        %v2922 = vcombine.low %v2883, %v2915
        %v2923 = vcombine.high %v2883, %v2915
        %v2924 = vcombine.low %v190, %v260
        %v2925 = vcombine.high %v190, %v260
        %v2927 = vunpack.c.l.s4 1983009808
        %v2928 = vunpack.c.0.s8 %v2927
        %v2929 = vlaneseq
        %v2930 = vshrl.u32 %v2929, 7
        %v2931 = vsub.s32 %v2928, %v2930
        %v2932 = vrot.slane %v2924, %v2931
        %v2934 = vunpack.c.l.s4 1983009808
        %v2935 = vunpack.c.0.s8 %v2934
        %v2936 = vlaneseq
        %v2937 = vshrl.u32 %v2936, 7
        %v2938 = vsub.s32 %v2935, %v2937
        %v2939 = vrot.slane %v2925, %v2938
        %v2940 = vcombine.low %v225, %v295
        %v2941 = vcombine.high %v225, %v295
        %v2943 = vunpack.c.l.s4 1983009808
        %v2944 = vunpack.c.0.s8 %v2943
        %v2945 = vlaneseq
        %v2946 = vshrl.u32 %v2945, 7
        %v2947 = vsub.s32 %v2944, %v2946
        %v2948 = vrot.slane %v2940, %v2947
        %v2950 = vunpack.c.l.s4 1983009808
        %v2951 = vunpack.c.0.s8 %v2950
        %v2952 = vlaneseq
        %v2953 = vshrl.u32 %v2952, 7
        %v2954 = vsub.s32 %v2951, %v2953
        %v2955 = vrot.slane %v2941, %v2954
        %v2956 = vcombine.low %v330, %v400
        %v2957 = vcombine.high %v330, %v400
        %v2959 = vunpack.c.l.s4 1983009808
        %v2960 = vunpack.c.0.s8 %v2959
        %v2961 = vlaneseq
        %v2962 = vshrl.u32 %v2961, 7
        %v2963 = vsub.s32 %v2960, %v2962
        %v2964 = vrot.slane %v2956, %v2963
        %v2966 = vunpack.c.l.s4 1983009808
        %v2967 = vunpack.c.0.s8 %v2966
        %v2968 = vlaneseq
        %v2969 = vshrl.u32 %v2968, 7
        %v2970 = vsub.s32 %v2967, %v2969
        %v2971 = vrot.slane %v2957, %v2970
        %v2972 = vcombine.low %v365, %v435
        %v2973 = vcombine.high %v365, %v435
        %v2975 = vunpack.c.l.s4 1983009808
        %v2976 = vunpack.c.0.s8 %v2975
        %v2977 = vlaneseq
        %v2978 = vshrl.u32 %v2977, 7
        %v2979 = vsub.s32 %v2976, %v2978
        %v2980 = vrot.slane %v2972, %v2979
        %v2982 = vunpack.c.l.s4 1983009808
        %v2983 = vunpack.c.0.s8 %v2982
        %v2984 = vlaneseq
        %v2985 = vshrl.u32 %v2984, 7
        %v2986 = vsub.s32 %v2983, %v2985
        %v2987 = vrot.slane %v2973, %v2986
        %v2988 = vcombine.low %v2932, %v2948
        %v2989 = vcombine.high %v2932, %v2948
        %v2991 = vunpack.c.l.s4 1934713408
        %v2992 = vunpack.c.0.s8 %v2991
        %v2993 = vlaneseq
        %v2994 = vshrl.u32 %v2993, 7
        %v2995 = vsub.s32 %v2992, %v2994
        %v2996 = vrot.slane %v2988, %v2995
        %v2998 = vunpack.c.l.s4 1934713408
        %v2999 = vunpack.c.0.s8 %v2998
        %v3000 = vlaneseq
        %v3001 = vshrl.u32 %v3000, 7
        %v3002 = vsub.s32 %v2999, %v3001
        %v3003 = vrot.slane %v2989, %v3002
        %v3004 = vcombine.low %v2939, %v2955
        %v3005 = vcombine.high %v2939, %v2955
        %v3007 = vunpack.c.l.s4 1934713408
        %v3008 = vunpack.c.0.s8 %v3007
        %v3009 = vlaneseq
        %v3010 = vshrl.u32 %v3009, 7
        %v3011 = vsub.s32 %v3008, %v3010
        %v3012 = vrot.slane %v3004, %v3011
        %v3014 = vunpack.c.l.s4 1934713408
        %v3015 = vunpack.c.0.s8 %v3014
        %v3016 = vlaneseq
        %v3017 = vshrl.u32 %v3016, 7
        %v3018 = vsub.s32 %v3015, %v3017
        %v3019 = vrot.slane %v3005, %v3018
        %v3020 = vcombine.low %v2964, %v2980
        %v3021 = vcombine.high %v2964, %v2980
        %v3023 = vunpack.c.l.s4 1934713408
        %v3024 = vunpack.c.0.s8 %v3023
        %v3025 = vlaneseq
        %v3026 = vshrl.u32 %v3025, 7
        %v3027 = vsub.s32 %v3024, %v3026
        %v3028 = vrot.slane %v3020, %v3027
        %v3030 = vunpack.c.l.s4 1934713408
        %v3031 = vunpack.c.0.s8 %v3030
        %v3032 = vlaneseq
        %v3033 = vshrl.u32 %v3032, 7
        %v3034 = vsub.s32 %v3031, %v3033
        %v3035 = vrot.slane %v3021, %v3034
        %v3036 = vcombine.low %v2971, %v2987
        %v3037 = vcombine.high %v2971, %v2987
        %v3039 = vunpack.c.l.s4 1934713408
        %v3040 = vunpack.c.0.s8 %v3039
        %v3041 = vlaneseq
        %v3042 = vshrl.u32 %v3041, 7
        %v3043 = vsub.s32 %v3040, %v3042
        %v3044 = vrot.slane %v3036, %v3043
        %v3046 = vunpack.c.l.s4 1934713408
        %v3047 = vunpack.c.0.s8 %v3046
        %v3048 = vlaneseq
        %v3049 = vshrl.u32 %v3048, 7
        %v3050 = vsub.s32 %v3047, %v3049
        %v3051 = vrot.slane %v3037, %v3050
        %v3052 = vcombine.low %v2996, %v3028
        %v3053 = vcombine.high %v2996, %v3028
        %v3054 = vcombine.low %v3003, %v3035
        %v3055 = vcombine.high %v3003, %v3035
        %v3056 = vcombine.low %v3012, %v3044
        %v3057 = vcombine.high %v3012, %v3044
        %v3058 = vcombine.low %v3019, %v3051
        %v3059 = vcombine.high %v3019, %v3051
        %v3060 = vcombine.low %v470, %v540
        %v3061 = vcombine.high %v470, %v540
        %v3063 = vunpack.c.l.s4 1983009808
        %v3064 = vunpack.c.0.s8 %v3063
        %v3065 = vlaneseq
        %v3066 = vshrl.u32 %v3065, 7
        %v3067 = vsub.s32 %v3064, %v3066
        %v3068 = vrot.slane %v3060, %v3067
        %v3070 = vunpack.c.l.s4 1983009808
        %v3071 = vunpack.c.0.s8 %v3070
        %v3072 = vlaneseq
        %v3073 = vshrl.u32 %v3072, 7
        %v3074 = vsub.s32 %v3071, %v3073
        %v3075 = vrot.slane %v3061, %v3074
        %v3076 = vcombine.low %v505, %v575
        %v3077 = vcombine.high %v505, %v575
        %v3079 = vunpack.c.l.s4 1983009808
        %v3080 = vunpack.c.0.s8 %v3079
        %v3081 = vlaneseq
        %v3082 = vshrl.u32 %v3081, 7
        %v3083 = vsub.s32 %v3080, %v3082
        %v3084 = vrot.slane %v3076, %v3083
        %v3086 = vunpack.c.l.s4 1983009808
        %v3087 = vunpack.c.0.s8 %v3086
        %v3088 = vlaneseq
        %v3089 = vshrl.u32 %v3088, 7
        %v3090 = vsub.s32 %v3087, %v3089
        %v3091 = vrot.slane %v3077, %v3090
        %v3092 = vcombine.low %v610, %v680
        %v3093 = vcombine.high %v610, %v680
        %v3095 = vunpack.c.l.s4 1983009808
        %v3096 = vunpack.c.0.s8 %v3095
        %v3097 = vlaneseq
        %v3098 = vshrl.u32 %v3097, 7
        %v3099 = vsub.s32 %v3096, %v3098
        %v3100 = vrot.slane %v3092, %v3099
        %v3102 = vunpack.c.l.s4 1983009808
        %v3103 = vunpack.c.0.s8 %v3102
        %v3104 = vlaneseq
        %v3105 = vshrl.u32 %v3104, 7
        %v3106 = vsub.s32 %v3103, %v3105
        %v3107 = vrot.slane %v3093, %v3106
        %v3108 = vcombine.low %v645, %v715
        %v3109 = vcombine.high %v645, %v715
        %v3111 = vunpack.c.l.s4 1983009808
        %v3112 = vunpack.c.0.s8 %v3111
        %v3113 = vlaneseq
        %v3114 = vshrl.u32 %v3113, 7
        %v3115 = vsub.s32 %v3112, %v3114
        %v3116 = vrot.slane %v3108, %v3115
        %v3118 = vunpack.c.l.s4 1983009808
        %v3119 = vunpack.c.0.s8 %v3118
        %v3120 = vlaneseq
        %v3121 = vshrl.u32 %v3120, 7
        %v3122 = vsub.s32 %v3119, %v3121
        %v3123 = vrot.slane %v3109, %v3122
        %v3124 = vcombine.low %v3068, %v3084
        %v3125 = vcombine.high %v3068, %v3084
        %v3127 = vunpack.c.l.s4 1934713408
        %v3128 = vunpack.c.0.s8 %v3127
        %v3129 = vlaneseq
        %v3130 = vshrl.u32 %v3129, 7
        %v3131 = vsub.s32 %v3128, %v3130
        %v3132 = vrot.slane %v3124, %v3131
        %v3134 = vunpack.c.l.s4 1934713408
        %v3135 = vunpack.c.0.s8 %v3134
        %v3136 = vlaneseq
        %v3137 = vshrl.u32 %v3136, 7
        %v3138 = vsub.s32 %v3135, %v3137
        %v3139 = vrot.slane %v3125, %v3138
        %v3140 = vcombine.low %v3075, %v3091
        %v3141 = vcombine.high %v3075, %v3091
        %v3143 = vunpack.c.l.s4 1934713408
        %v3144 = vunpack.c.0.s8 %v3143
        %v3145 = vlaneseq
        %v3146 = vshrl.u32 %v3145, 7
        %v3147 = vsub.s32 %v3144, %v3146
        %v3148 = vrot.slane %v3140, %v3147
        %v3150 = vunpack.c.l.s4 1934713408
        %v3151 = vunpack.c.0.s8 %v3150
        %v3152 = vlaneseq
        %v3153 = vshrl.u32 %v3152, 7
        %v3154 = vsub.s32 %v3151, %v3153
        %v3155 = vrot.slane %v3141, %v3154
        %v3156 = vcombine.low %v3100, %v3116
        %v3157 = vcombine.high %v3100, %v3116
        %v3159 = vunpack.c.l.s4 1934713408
        %v3160 = vunpack.c.0.s8 %v3159
        %v3161 = vlaneseq
        %v3162 = vshrl.u32 %v3161, 7
        %v3163 = vsub.s32 %v3160, %v3162
        %v3164 = vrot.slane %v3156, %v3163
        %v3166 = vunpack.c.l.s4 1934713408
        %v3167 = vunpack.c.0.s8 %v3166
        %v3168 = vlaneseq
        %v3169 = vshrl.u32 %v3168, 7
        %v3170 = vsub.s32 %v3167, %v3169
        %v3171 = vrot.slane %v3157, %v3170
        %v3172 = vcombine.low %v3107, %v3123
        %v3173 = vcombine.high %v3107, %v3123
        %v3175 = vunpack.c.l.s4 1934713408
        %v3176 = vunpack.c.0.s8 %v3175
        %v3177 = vlaneseq
        %v3178 = vshrl.u32 %v3177, 7
        %v3179 = vsub.s32 %v3176, %v3178
        %v3180 = vrot.slane %v3172, %v3179
        %v3182 = vunpack.c.l.s4 1934713408
        %v3183 = vunpack.c.0.s8 %v3182
        %v3184 = vlaneseq
        %v3185 = vshrl.u32 %v3184, 7
        %v3186 = vsub.s32 %v3183, %v3185
        %v3187 = vrot.slane %v3173, %v3186
        %v3188 = vcombine.low %v3132, %v3164
        %v3189 = vcombine.high %v3132, %v3164
        %v3190 = vcombine.low %v3139, %v3171
        %v3191 = vcombine.high %v3139, %v3171
        %v3192 = vcombine.low %v3148, %v3180
        %v3193 = vcombine.high %v3148, %v3180
        %v3194 = vcombine.low %v3155, %v3187
        %v3195 = vcombine.high %v3155, %v3187
        %v3196 = vcombine.low %v750, %v820
        %v3197 = vcombine.high %v750, %v820
        %v3199 = vunpack.c.l.s4 1983009808
        %v3200 = vunpack.c.0.s8 %v3199
        %v3201 = vlaneseq
        %v3202 = vshrl.u32 %v3201, 7
        %v3203 = vsub.s32 %v3200, %v3202
        %v3204 = vrot.slane %v3196, %v3203
        %v3206 = vunpack.c.l.s4 1983009808
        %v3207 = vunpack.c.0.s8 %v3206
        %v3208 = vlaneseq
        %v3209 = vshrl.u32 %v3208, 7
        %v3210 = vsub.s32 %v3207, %v3209
        %v3211 = vrot.slane %v3197, %v3210
        %v3212 = vcombine.low %v785, %v855
        %v3213 = vcombine.high %v785, %v855
        %v3215 = vunpack.c.l.s4 1983009808
        %v3216 = vunpack.c.0.s8 %v3215
        %v3217 = vlaneseq
        %v3218 = vshrl.u32 %v3217, 7
        %v3219 = vsub.s32 %v3216, %v3218
        %v3220 = vrot.slane %v3212, %v3219
        %v3222 = vunpack.c.l.s4 1983009808
        %v3223 = vunpack.c.0.s8 %v3222
        %v3224 = vlaneseq
        %v3225 = vshrl.u32 %v3224, 7
        %v3226 = vsub.s32 %v3223, %v3225
        %v3227 = vrot.slane %v3213, %v3226
        %v3228 = vcombine.low %v890, %v960
        %v3229 = vcombine.high %v890, %v960
        %v3231 = vunpack.c.l.s4 1983009808
        %v3232 = vunpack.c.0.s8 %v3231
        %v3233 = vlaneseq
        %v3234 = vshrl.u32 %v3233, 7
        %v3235 = vsub.s32 %v3232, %v3234
        %v3236 = vrot.slane %v3228, %v3235
        %v3238 = vunpack.c.l.s4 1983009808
        %v3239 = vunpack.c.0.s8 %v3238
        %v3240 = vlaneseq
        %v3241 = vshrl.u32 %v3240, 7
        %v3242 = vsub.s32 %v3239, %v3241
        %v3243 = vrot.slane %v3229, %v3242
        %v3244 = vcombine.low %v925, %v995
        %v3245 = vcombine.high %v925, %v995
        %v3247 = vunpack.c.l.s4 1983009808
        %v3248 = vunpack.c.0.s8 %v3247
        %v3249 = vlaneseq
        %v3250 = vshrl.u32 %v3249, 7
        %v3251 = vsub.s32 %v3248, %v3250
        %v3252 = vrot.slane %v3244, %v3251
        %v3254 = vunpack.c.l.s4 1983009808
        %v3255 = vunpack.c.0.s8 %v3254
        %v3256 = vlaneseq
        %v3257 = vshrl.u32 %v3256, 7
        %v3258 = vsub.s32 %v3255, %v3257
        %v3259 = vrot.slane %v3245, %v3258
        %v3260 = vcombine.low %v3204, %v3220
        %v3261 = vcombine.high %v3204, %v3220
        %v3263 = vunpack.c.l.s4 1934713408
        %v3264 = vunpack.c.0.s8 %v3263
        %v3265 = vlaneseq
        %v3266 = vshrl.u32 %v3265, 7
        %v3267 = vsub.s32 %v3264, %v3266
        %v3268 = vrot.slane %v3260, %v3267
        %v3270 = vunpack.c.l.s4 1934713408
        %v3271 = vunpack.c.0.s8 %v3270
        %v3272 = vlaneseq
        %v3273 = vshrl.u32 %v3272, 7
        %v3274 = vsub.s32 %v3271, %v3273
        %v3275 = vrot.slane %v3261, %v3274
        %v3276 = vcombine.low %v3211, %v3227
        %v3277 = vcombine.high %v3211, %v3227
        %v3279 = vunpack.c.l.s4 1934713408
        %v3280 = vunpack.c.0.s8 %v3279
        %v3281 = vlaneseq
        %v3282 = vshrl.u32 %v3281, 7
        %v3283 = vsub.s32 %v3280, %v3282
        %v3284 = vrot.slane %v3276, %v3283
        %v3286 = vunpack.c.l.s4 1934713408
        %v3287 = vunpack.c.0.s8 %v3286
        %v3288 = vlaneseq
        %v3289 = vshrl.u32 %v3288, 7
        %v3290 = vsub.s32 %v3287, %v3289
        %v3291 = vrot.slane %v3277, %v3290
        %v3292 = vcombine.low %v3236, %v3252
        %v3293 = vcombine.high %v3236, %v3252
        %v3295 = vunpack.c.l.s4 1934713408
        %v3296 = vunpack.c.0.s8 %v3295
        %v3297 = vlaneseq
        %v3298 = vshrl.u32 %v3297, 7
        %v3299 = vsub.s32 %v3296, %v3298
        %v3300 = vrot.slane %v3292, %v3299
        %v3302 = vunpack.c.l.s4 1934713408
        %v3303 = vunpack.c.0.s8 %v3302
        %v3304 = vlaneseq
        %v3305 = vshrl.u32 %v3304, 7
        %v3306 = vsub.s32 %v3303, %v3305
        %v3307 = vrot.slane %v3293, %v3306
        %v3308 = vcombine.low %v3243, %v3259
        %v3309 = vcombine.high %v3243, %v3259
        %v3311 = vunpack.c.l.s4 1934713408
        %v3312 = vunpack.c.0.s8 %v3311
        %v3313 = vlaneseq
        %v3314 = vshrl.u32 %v3313, 7
        %v3315 = vsub.s32 %v3312, %v3314
        %v3316 = vrot.slane %v3308, %v3315
        %v3318 = vunpack.c.l.s4 1934713408
        %v3319 = vunpack.c.0.s8 %v3318
        %v3320 = vlaneseq
        %v3321 = vshrl.u32 %v3320, 7
        %v3322 = vsub.s32 %v3319, %v3321
        %v3323 = vrot.slane %v3309, %v3322
        %v3324 = vcombine.low %v3268, %v3300
        %v3325 = vcombine.high %v3268, %v3300
        %v3326 = vcombine.low %v3275, %v3307
        %v3327 = vcombine.high %v3275, %v3307
        %v3328 = vcombine.low %v3284, %v3316
        %v3329 = vcombine.high %v3284, %v3316
        %v3330 = vcombine.low %v3291, %v3323
        %v3331 = vcombine.high %v3291, %v3323
        %v3332 = vcombine.low %v1030, %v1100
        %v3333 = vcombine.high %v1030, %v1100
        %v3335 = vunpack.c.l.s4 1983009808
        %v3336 = vunpack.c.0.s8 %v3335
        %v3337 = vlaneseq
        %v3338 = vshrl.u32 %v3337, 7
        %v3339 = vsub.s32 %v3336, %v3338
        %v3340 = vrot.slane %v3332, %v3339
        %v3342 = vunpack.c.l.s4 1983009808
        %v3343 = vunpack.c.0.s8 %v3342
        %v3344 = vlaneseq
        %v3345 = vshrl.u32 %v3344, 7
        %v3346 = vsub.s32 %v3343, %v3345
        %v3347 = vrot.slane %v3333, %v3346
        %v3348 = vcombine.low %v1065, %v1135
        %v3349 = vcombine.high %v1065, %v1135
        %v3351 = vunpack.c.l.s4 1983009808
        %v3352 = vunpack.c.0.s8 %v3351
        %v3353 = vlaneseq
        %v3354 = vshrl.u32 %v3353, 7
        %v3355 = vsub.s32 %v3352, %v3354
        %v3356 = vrot.slane %v3348, %v3355
        %v3358 = vunpack.c.l.s4 1983009808
        %v3359 = vunpack.c.0.s8 %v3358
        %v3360 = vlaneseq
        %v3361 = vshrl.u32 %v3360, 7
        %v3362 = vsub.s32 %v3359, %v3361
        %v3363 = vrot.slane %v3349, %v3362
        %v3364 = vcombine.low %v1170, %v1240
        %v3365 = vcombine.high %v1170, %v1240
        %v3367 = vunpack.c.l.s4 1983009808
        %v3368 = vunpack.c.0.s8 %v3367
        %v3369 = vlaneseq
        %v3370 = vshrl.u32 %v3369, 7
        %v3371 = vsub.s32 %v3368, %v3370
        %v3372 = vrot.slane %v3364, %v3371
        %v3374 = vunpack.c.l.s4 1983009808
        %v3375 = vunpack.c.0.s8 %v3374
        %v3376 = vlaneseq
        %v3377 = vshrl.u32 %v3376, 7
        %v3378 = vsub.s32 %v3375, %v3377
        %v3379 = vrot.slane %v3365, %v3378
        %v3380 = vcombine.low %v1205, %v1275
        %v3381 = vcombine.high %v1205, %v1275
        %v3383 = vunpack.c.l.s4 1983009808
        %v3384 = vunpack.c.0.s8 %v3383
        %v3385 = vlaneseq
        %v3386 = vshrl.u32 %v3385, 7
        %v3387 = vsub.s32 %v3384, %v3386
        %v3388 = vrot.slane %v3380, %v3387
        %v3390 = vunpack.c.l.s4 1983009808
        %v3391 = vunpack.c.0.s8 %v3390
        %v3392 = vlaneseq
        %v3393 = vshrl.u32 %v3392, 7
        %v3394 = vsub.s32 %v3391, %v3393
        %v3395 = vrot.slane %v3381, %v3394
        %v3396 = vcombine.low %v3340, %v3356
        %v3397 = vcombine.high %v3340, %v3356
        %v3399 = vunpack.c.l.s4 1934713408
        %v3400 = vunpack.c.0.s8 %v3399
        %v3401 = vlaneseq
        %v3402 = vshrl.u32 %v3401, 7
        %v3403 = vsub.s32 %v3400, %v3402
        %v3404 = vrot.slane %v3396, %v3403
        %v3406 = vunpack.c.l.s4 1934713408
        %v3407 = vunpack.c.0.s8 %v3406
        %v3408 = vlaneseq
        %v3409 = vshrl.u32 %v3408, 7
        %v3410 = vsub.s32 %v3407, %v3409
        %v3411 = vrot.slane %v3397, %v3410
        %v3412 = vcombine.low %v3347, %v3363
        %v3413 = vcombine.high %v3347, %v3363
        %v3415 = vunpack.c.l.s4 1934713408
        %v3416 = vunpack.c.0.s8 %v3415
        %v3417 = vlaneseq
        %v3418 = vshrl.u32 %v3417, 7
        %v3419 = vsub.s32 %v3416, %v3418
        %v3420 = vrot.slane %v3412, %v3419
        %v3422 = vunpack.c.l.s4 1934713408
        %v3423 = vunpack.c.0.s8 %v3422
        %v3424 = vlaneseq
        %v3425 = vshrl.u32 %v3424, 7
        %v3426 = vsub.s32 %v3423, %v3425
        %v3427 = vrot.slane %v3413, %v3426
        %v3428 = vcombine.low %v3372, %v3388
        %v3429 = vcombine.high %v3372, %v3388
        %v3431 = vunpack.c.l.s4 1934713408
        %v3432 = vunpack.c.0.s8 %v3431
        %v3433 = vlaneseq
        %v3434 = vshrl.u32 %v3433, 7
        %v3435 = vsub.s32 %v3432, %v3434
        %v3436 = vrot.slane %v3428, %v3435
        %v3438 = vunpack.c.l.s4 1934713408
        %v3439 = vunpack.c.0.s8 %v3438
        %v3440 = vlaneseq
        %v3441 = vshrl.u32 %v3440, 7
        %v3442 = vsub.s32 %v3439, %v3441
        %v3443 = vrot.slane %v3429, %v3442
        %v3444 = vcombine.low %v3379, %v3395
        %v3445 = vcombine.high %v3379, %v3395
        %v3447 = vunpack.c.l.s4 1934713408
        %v3448 = vunpack.c.0.s8 %v3447
        %v3449 = vlaneseq
        %v3450 = vshrl.u32 %v3449, 7
        %v3451 = vsub.s32 %v3448, %v3450
        %v3452 = vrot.slane %v3444, %v3451
        %v3454 = vunpack.c.l.s4 1934713408
        %v3455 = vunpack.c.0.s8 %v3454
        %v3456 = vlaneseq
        %v3457 = vshrl.u32 %v3456, 7
        %v3458 = vsub.s32 %v3455, %v3457
        %v3459 = vrot.slane %v3445, %v3458
        %v3460 = vcombine.low %v3404, %v3436
        %v3461 = vcombine.high %v3404, %v3436
        %v3462 = vcombine.low %v3411, %v3443
        %v3463 = vcombine.high %v3411, %v3443
        %v3464 = vcombine.low %v3420, %v3452
        %v3465 = vcombine.high %v3420, %v3452
        %v3466 = vcombine.low %v3427, %v3459
        %v3467 = vcombine.high %v3427, %v3459
        %v3468 = vcombine.low %v194, %v264
        %v3469 = vcombine.high %v194, %v264
        %v3471 = vunpack.c.l.s4 1983009808
        %v3472 = vunpack.c.0.s8 %v3471
        %v3473 = vlaneseq
        %v3474 = vshrl.u32 %v3473, 7
        %v3475 = vsub.s32 %v3472, %v3474
        %v3476 = vrot.slane %v3468, %v3475
        %v3478 = vunpack.c.l.s4 1983009808
        %v3479 = vunpack.c.0.s8 %v3478
        %v3480 = vlaneseq
        %v3481 = vshrl.u32 %v3480, 7
        %v3482 = vsub.s32 %v3479, %v3481
        %v3483 = vrot.slane %v3469, %v3482
        %v3484 = vcombine.low %v229, %v299
        %v3485 = vcombine.high %v229, %v299
        %v3487 = vunpack.c.l.s4 1983009808
        %v3488 = vunpack.c.0.s8 %v3487
        %v3489 = vlaneseq
        %v3490 = vshrl.u32 %v3489, 7
        %v3491 = vsub.s32 %v3488, %v3490
        %v3492 = vrot.slane %v3484, %v3491
        %v3494 = vunpack.c.l.s4 1983009808
        %v3495 = vunpack.c.0.s8 %v3494
        %v3496 = vlaneseq
        %v3497 = vshrl.u32 %v3496, 7
        %v3498 = vsub.s32 %v3495, %v3497
        %v3499 = vrot.slane %v3485, %v3498
        %v3500 = vcombine.low %v334, %v404
        %v3501 = vcombine.high %v334, %v404
        %v3503 = vunpack.c.l.s4 1983009808
        %v3504 = vunpack.c.0.s8 %v3503
        %v3505 = vlaneseq
        %v3506 = vshrl.u32 %v3505, 7
        %v3507 = vsub.s32 %v3504, %v3506
        %v3508 = vrot.slane %v3500, %v3507
        %v3510 = vunpack.c.l.s4 1983009808
        %v3511 = vunpack.c.0.s8 %v3510
        %v3512 = vlaneseq
        %v3513 = vshrl.u32 %v3512, 7
        %v3514 = vsub.s32 %v3511, %v3513
        %v3515 = vrot.slane %v3501, %v3514
        %v3516 = vcombine.low %v369, %v439
        %v3517 = vcombine.high %v369, %v439
        %v3519 = vunpack.c.l.s4 1983009808
        %v3520 = vunpack.c.0.s8 %v3519
        %v3521 = vlaneseq
        %v3522 = vshrl.u32 %v3521, 7
        %v3523 = vsub.s32 %v3520, %v3522
        %v3524 = vrot.slane %v3516, %v3523
        %v3526 = vunpack.c.l.s4 1983009808
        %v3527 = vunpack.c.0.s8 %v3526
        %v3528 = vlaneseq
        %v3529 = vshrl.u32 %v3528, 7
        %v3530 = vsub.s32 %v3527, %v3529
        %v3531 = vrot.slane %v3517, %v3530
        %v3532 = vcombine.low %v3476, %v3492
        %v3533 = vcombine.high %v3476, %v3492
        %v3535 = vunpack.c.l.s4 1934713408
        %v3536 = vunpack.c.0.s8 %v3535
        %v3537 = vlaneseq
        %v3538 = vshrl.u32 %v3537, 7
        %v3539 = vsub.s32 %v3536, %v3538
        %v3540 = vrot.slane %v3532, %v3539
        %v3542 = vunpack.c.l.s4 1934713408
        %v3543 = vunpack.c.0.s8 %v3542
        %v3544 = vlaneseq
        %v3545 = vshrl.u32 %v3544, 7
        %v3546 = vsub.s32 %v3543, %v3545
        %v3547 = vrot.slane %v3533, %v3546
        %v3548 = vcombine.low %v3483, %v3499
        %v3549 = vcombine.high %v3483, %v3499
        %v3551 = vunpack.c.l.s4 1934713408
        %v3552 = vunpack.c.0.s8 %v3551
        %v3553 = vlaneseq
        %v3554 = vshrl.u32 %v3553, 7
        %v3555 = vsub.s32 %v3552, %v3554
        %v3556 = vrot.slane %v3548, %v3555
        %v3558 = vunpack.c.l.s4 1934713408
        %v3559 = vunpack.c.0.s8 %v3558
        %v3560 = vlaneseq
        %v3561 = vshrl.u32 %v3560, 7
        %v3562 = vsub.s32 %v3559, %v3561
        %v3563 = vrot.slane %v3549, %v3562
        %v3564 = vcombine.low %v3508, %v3524
        %v3565 = vcombine.high %v3508, %v3524
        %v3567 = vunpack.c.l.s4 1934713408
        %v3568 = vunpack.c.0.s8 %v3567
        %v3569 = vlaneseq
        %v3570 = vshrl.u32 %v3569, 7
        %v3571 = vsub.s32 %v3568, %v3570
        %v3572 = vrot.slane %v3564, %v3571
        %v3574 = vunpack.c.l.s4 1934713408
        %v3575 = vunpack.c.0.s8 %v3574
        %v3576 = vlaneseq
        %v3577 = vshrl.u32 %v3576, 7
        %v3578 = vsub.s32 %v3575, %v3577
        %v3579 = vrot.slane %v3565, %v3578
        %v3580 = vcombine.low %v3515, %v3531
        %v3581 = vcombine.high %v3515, %v3531
        %v3583 = vunpack.c.l.s4 1934713408
        %v3584 = vunpack.c.0.s8 %v3583
        %v3585 = vlaneseq
        %v3586 = vshrl.u32 %v3585, 7
        %v3587 = vsub.s32 %v3584, %v3586
        %v3588 = vrot.slane %v3580, %v3587
        %v3590 = vunpack.c.l.s4 1934713408
        %v3591 = vunpack.c.0.s8 %v3590
        %v3592 = vlaneseq
        %v3593 = vshrl.u32 %v3592, 7
        %v3594 = vsub.s32 %v3591, %v3593
        %v3595 = vrot.slane %v3581, %v3594
        %v3596 = vcombine.low %v3540, %v3572
        %v3597 = vcombine.high %v3540, %v3572
        %v3598 = vcombine.low %v3547, %v3579
        %v3599 = vcombine.high %v3547, %v3579
        %v3600 = vcombine.low %v3556, %v3588
        %v3601 = vcombine.high %v3556, %v3588
        %v3602 = vcombine.low %v3563, %v3595
        %v3603 = vcombine.high %v3563, %v3595
        %v3604 = vcombine.low %v474, %v544
        %v3605 = vcombine.high %v474, %v544
        %v3607 = vunpack.c.l.s4 1983009808
        %v3608 = vunpack.c.0.s8 %v3607
        %v3609 = vlaneseq
        %v3610 = vshrl.u32 %v3609, 7
        %v3611 = vsub.s32 %v3608, %v3610
        %v3612 = vrot.slane %v3604, %v3611
        %v3614 = vunpack.c.l.s4 1983009808
        %v3615 = vunpack.c.0.s8 %v3614
        %v3616 = vlaneseq
        %v3617 = vshrl.u32 %v3616, 7
        %v3618 = vsub.s32 %v3615, %v3617
        %v3619 = vrot.slane %v3605, %v3618
        %v3620 = vcombine.low %v509, %v579
        %v3621 = vcombine.high %v509, %v579
        %v3623 = vunpack.c.l.s4 1983009808
        %v3624 = vunpack.c.0.s8 %v3623
        %v3625 = vlaneseq
        %v3626 = vshrl.u32 %v3625, 7
        %v3627 = vsub.s32 %v3624, %v3626
        %v3628 = vrot.slane %v3620, %v3627
        %v3630 = vunpack.c.l.s4 1983009808
        %v3631 = vunpack.c.0.s8 %v3630
        %v3632 = vlaneseq
        %v3633 = vshrl.u32 %v3632, 7
        %v3634 = vsub.s32 %v3631, %v3633
        %v3635 = vrot.slane %v3621, %v3634
        %v3636 = vcombine.low %v614, %v684
        %v3637 = vcombine.high %v614, %v684
        %v3639 = vunpack.c.l.s4 1983009808
        %v3640 = vunpack.c.0.s8 %v3639
        %v3641 = vlaneseq
        %v3642 = vshrl.u32 %v3641, 7
        %v3643 = vsub.s32 %v3640, %v3642
        %v3644 = vrot.slane %v3636, %v3643
        %v3646 = vunpack.c.l.s4 1983009808
        %v3647 = vunpack.c.0.s8 %v3646
        %v3648 = vlaneseq
        %v3649 = vshrl.u32 %v3648, 7
        %v3650 = vsub.s32 %v3647, %v3649
        %v3651 = vrot.slane %v3637, %v3650
        %v3652 = vcombine.low %v649, %v719
        %v3653 = vcombine.high %v649, %v719
        %v3655 = vunpack.c.l.s4 1983009808
        %v3656 = vunpack.c.0.s8 %v3655
        %v3657 = vlaneseq
        %v3658 = vshrl.u32 %v3657, 7
        %v3659 = vsub.s32 %v3656, %v3658
        %v3660 = vrot.slane %v3652, %v3659
        %v3662 = vunpack.c.l.s4 1983009808
        %v3663 = vunpack.c.0.s8 %v3662
        %v3664 = vlaneseq
        %v3665 = vshrl.u32 %v3664, 7
        %v3666 = vsub.s32 %v3663, %v3665
        %v3667 = vrot.slane %v3653, %v3666
        %v3668 = vcombine.low %v3612, %v3628
        %v3669 = vcombine.high %v3612, %v3628
        %v3671 = vunpack.c.l.s4 1934713408
        %v3672 = vunpack.c.0.s8 %v3671
        %v3673 = vlaneseq
        %v3674 = vshrl.u32 %v3673, 7
        %v3675 = vsub.s32 %v3672, %v3674
        %v3676 = vrot.slane %v3668, %v3675
        %v3678 = vunpack.c.l.s4 1934713408
        %v3679 = vunpack.c.0.s8 %v3678
        %v3680 = vlaneseq
        %v3681 = vshrl.u32 %v3680, 7
        %v3682 = vsub.s32 %v3679, %v3681
        %v3683 = vrot.slane %v3669, %v3682
        %v3684 = vcombine.low %v3619, %v3635
        %v3685 = vcombine.high %v3619, %v3635
        %v3687 = vunpack.c.l.s4 1934713408
        %v3688 = vunpack.c.0.s8 %v3687
        %v3689 = vlaneseq
        %v3690 = vshrl.u32 %v3689, 7
        %v3691 = vsub.s32 %v3688, %v3690
        %v3692 = vrot.slane %v3684, %v3691
        %v3694 = vunpack.c.l.s4 1934713408
        %v3695 = vunpack.c.0.s8 %v3694
        %v3696 = vlaneseq
        %v3697 = vshrl.u32 %v3696, 7
        %v3698 = vsub.s32 %v3695, %v3697
        %v3699 = vrot.slane %v3685, %v3698
        %v3700 = vcombine.low %v3644, %v3660
        %v3701 = vcombine.high %v3644, %v3660
        %v3703 = vunpack.c.l.s4 1934713408
        %v3704 = vunpack.c.0.s8 %v3703
        %v3705 = vlaneseq
        %v3706 = vshrl.u32 %v3705, 7
        %v3707 = vsub.s32 %v3704, %v3706
        %v3708 = vrot.slane %v3700, %v3707
        %v3710 = vunpack.c.l.s4 1934713408
        %v3711 = vunpack.c.0.s8 %v3710
        %v3712 = vlaneseq
        %v3713 = vshrl.u32 %v3712, 7
        %v3714 = vsub.s32 %v3711, %v3713
        %v3715 = vrot.slane %v3701, %v3714
        %v3716 = vcombine.low %v3651, %v3667
        %v3717 = vcombine.high %v3651, %v3667
        %v3719 = vunpack.c.l.s4 1934713408
        %v3720 = vunpack.c.0.s8 %v3719
        %v3721 = vlaneseq
        %v3722 = vshrl.u32 %v3721, 7
        %v3723 = vsub.s32 %v3720, %v3722
        %v3724 = vrot.slane %v3716, %v3723
        %v3726 = vunpack.c.l.s4 1934713408
        %v3727 = vunpack.c.0.s8 %v3726
        %v3728 = vlaneseq
        %v3729 = vshrl.u32 %v3728, 7
        %v3730 = vsub.s32 %v3727, %v3729
        %v3731 = vrot.slane %v3717, %v3730
        %v3732 = vcombine.low %v3676, %v3708
        %v3733 = vcombine.high %v3676, %v3708
        %v3734 = vcombine.low %v3683, %v3715
        %v3735 = vcombine.high %v3683, %v3715
        %v3736 = vcombine.low %v3692, %v3724
        %v3737 = vcombine.high %v3692, %v3724
        %v3738 = vcombine.low %v3699, %v3731
        %v3739 = vcombine.high %v3699, %v3731
        %v3740 = vcombine.low %v754, %v824
        %v3741 = vcombine.high %v754, %v824
        %v3743 = vunpack.c.l.s4 1983009808
        %v3744 = vunpack.c.0.s8 %v3743
        %v3745 = vlaneseq
        %v3746 = vshrl.u32 %v3745, 7
        %v3747 = vsub.s32 %v3744, %v3746
        %v3748 = vrot.slane %v3740, %v3747
        %v3750 = vunpack.c.l.s4 1983009808
        %v3751 = vunpack.c.0.s8 %v3750
        %v3752 = vlaneseq
        %v3753 = vshrl.u32 %v3752, 7
        %v3754 = vsub.s32 %v3751, %v3753
        %v3755 = vrot.slane %v3741, %v3754
        %v3756 = vcombine.low %v789, %v859
        %v3757 = vcombine.high %v789, %v859
        %v3759 = vunpack.c.l.s4 1983009808
        %v3760 = vunpack.c.0.s8 %v3759
        %v3761 = vlaneseq
        %v3762 = vshrl.u32 %v3761, 7
        %v3763 = vsub.s32 %v3760, %v3762
        %v3764 = vrot.slane %v3756, %v3763
        %v3766 = vunpack.c.l.s4 1983009808
        %v3767 = vunpack.c.0.s8 %v3766
        %v3768 = vlaneseq
        %v3769 = vshrl.u32 %v3768, 7
        %v3770 = vsub.s32 %v3767, %v3769
        %v3771 = vrot.slane %v3757, %v3770
        %v3772 = vcombine.low %v894, %v964
        %v3773 = vcombine.high %v894, %v964
        %v3775 = vunpack.c.l.s4 1983009808
        %v3776 = vunpack.c.0.s8 %v3775
        %v3777 = vlaneseq
        %v3778 = vshrl.u32 %v3777, 7
        %v3779 = vsub.s32 %v3776, %v3778
        %v3780 = vrot.slane %v3772, %v3779
        %v3782 = vunpack.c.l.s4 1983009808
        %v3783 = vunpack.c.0.s8 %v3782
        %v3784 = vlaneseq
        %v3785 = vshrl.u32 %v3784, 7
        %v3786 = vsub.s32 %v3783, %v3785
        %v3787 = vrot.slane %v3773, %v3786
        %v3788 = vcombine.low %v929, %v999
        %v3789 = vcombine.high %v929, %v999
        %v3791 = vunpack.c.l.s4 1983009808
        %v3792 = vunpack.c.0.s8 %v3791
        %v3793 = vlaneseq
        %v3794 = vshrl.u32 %v3793, 7
        %v3795 = vsub.s32 %v3792, %v3794
        %v3796 = vrot.slane %v3788, %v3795
        %v3798 = vunpack.c.l.s4 1983009808
        %v3799 = vunpack.c.0.s8 %v3798
        %v3800 = vlaneseq
        %v3801 = vshrl.u32 %v3800, 7
        %v3802 = vsub.s32 %v3799, %v3801
        %v3803 = vrot.slane %v3789, %v3802
        %v3804 = vcombine.low %v3748, %v3764
        %v3805 = vcombine.high %v3748, %v3764
        %v3807 = vunpack.c.l.s4 1934713408
        %v3808 = vunpack.c.0.s8 %v3807
        %v3809 = vlaneseq
        %v3810 = vshrl.u32 %v3809, 7
        %v3811 = vsub.s32 %v3808, %v3810
        %v3812 = vrot.slane %v3804, %v3811
        %v3814 = vunpack.c.l.s4 1934713408
        %v3815 = vunpack.c.0.s8 %v3814
        %v3816 = vlaneseq
        %v3817 = vshrl.u32 %v3816, 7
        %v3818 = vsub.s32 %v3815, %v3817
        %v3819 = vrot.slane %v3805, %v3818
        %v3820 = vcombine.low %v3755, %v3771
        %v3821 = vcombine.high %v3755, %v3771
        %v3823 = vunpack.c.l.s4 1934713408
        %v3824 = vunpack.c.0.s8 %v3823
        %v3825 = vlaneseq
        %v3826 = vshrl.u32 %v3825, 7
        %v3827 = vsub.s32 %v3824, %v3826
        %v3828 = vrot.slane %v3820, %v3827
        %v3830 = vunpack.c.l.s4 1934713408
        %v3831 = vunpack.c.0.s8 %v3830
        %v3832 = vlaneseq
        %v3833 = vshrl.u32 %v3832, 7
        %v3834 = vsub.s32 %v3831, %v3833
        %v3835 = vrot.slane %v3821, %v3834
        %v3836 = vcombine.low %v3780, %v3796
        %v3837 = vcombine.high %v3780, %v3796
        %v3839 = vunpack.c.l.s4 1934713408
        %v3840 = vunpack.c.0.s8 %v3839
        %v3841 = vlaneseq
        %v3842 = vshrl.u32 %v3841, 7
        %v3843 = vsub.s32 %v3840, %v3842
        %v3844 = vrot.slane %v3836, %v3843
        %v3846 = vunpack.c.l.s4 1934713408
        %v3847 = vunpack.c.0.s8 %v3846
        %v3848 = vlaneseq
        %v3849 = vshrl.u32 %v3848, 7
        %v3850 = vsub.s32 %v3847, %v3849
        %v3851 = vrot.slane %v3837, %v3850
        %v3852 = vcombine.low %v3787, %v3803
        %v3853 = vcombine.high %v3787, %v3803
        %v3855 = vunpack.c.l.s4 1934713408
        %v3856 = vunpack.c.0.s8 %v3855
        %v3857 = vlaneseq
        %v3858 = vshrl.u32 %v3857, 7
        %v3859 = vsub.s32 %v3856, %v3858
        %v3860 = vrot.slane %v3852, %v3859
        %v3862 = vunpack.c.l.s4 1934713408
        %v3863 = vunpack.c.0.s8 %v3862
        %v3864 = vlaneseq
        %v3865 = vshrl.u32 %v3864, 7
        %v3866 = vsub.s32 %v3863, %v3865
        %v3867 = vrot.slane %v3853, %v3866
        %v3868 = vcombine.low %v3812, %v3844
        %v3869 = vcombine.high %v3812, %v3844
        %v3870 = vcombine.low %v3819, %v3851
        %v3871 = vcombine.high %v3819, %v3851
        %v3872 = vcombine.low %v3828, %v3860
        %v3873 = vcombine.high %v3828, %v3860
        %v3874 = vcombine.low %v3835, %v3867
        %v3875 = vcombine.high %v3835, %v3867
        %v3876 = vcombine.low %v1034, %v1104
        %v3877 = vcombine.high %v1034, %v1104
        %v3879 = vunpack.c.l.s4 1983009808
        %v3880 = vunpack.c.0.s8 %v3879
        %v3881 = vlaneseq
        %v3882 = vshrl.u32 %v3881, 7
        %v3883 = vsub.s32 %v3880, %v3882
        %v3884 = vrot.slane %v3876, %v3883
        %v3886 = vunpack.c.l.s4 1983009808
        %v3887 = vunpack.c.0.s8 %v3886
        %v3888 = vlaneseq
        %v3889 = vshrl.u32 %v3888, 7
        %v3890 = vsub.s32 %v3887, %v3889
        %v3891 = vrot.slane %v3877, %v3890
        %v3892 = vcombine.low %v1069, %v1139
        %v3893 = vcombine.high %v1069, %v1139
        %v3895 = vunpack.c.l.s4 1983009808
        %v3896 = vunpack.c.0.s8 %v3895
        %v3897 = vlaneseq
        %v3898 = vshrl.u32 %v3897, 7
        %v3899 = vsub.s32 %v3896, %v3898
        %v3900 = vrot.slane %v3892, %v3899
        %v3902 = vunpack.c.l.s4 1983009808
        %v3903 = vunpack.c.0.s8 %v3902
        %v3904 = vlaneseq
        %v3905 = vshrl.u32 %v3904, 7
        %v3906 = vsub.s32 %v3903, %v3905
        %v3907 = vrot.slane %v3893, %v3906
        %v3908 = vcombine.low %v1174, %v1244
        %v3909 = vcombine.high %v1174, %v1244
        %v3911 = vunpack.c.l.s4 1983009808
        %v3912 = vunpack.c.0.s8 %v3911
        %v3913 = vlaneseq
        %v3914 = vshrl.u32 %v3913, 7
        %v3915 = vsub.s32 %v3912, %v3914
        %v3916 = vrot.slane %v3908, %v3915
        %v3918 = vunpack.c.l.s4 1983009808
        %v3919 = vunpack.c.0.s8 %v3918
        %v3920 = vlaneseq
        %v3921 = vshrl.u32 %v3920, 7
        %v3922 = vsub.s32 %v3919, %v3921
        %v3923 = vrot.slane %v3909, %v3922
        %v3924 = vcombine.low %v1209, %v1279
        %v3925 = vcombine.high %v1209, %v1279
        %v3927 = vunpack.c.l.s4 1983009808
        %v3928 = vunpack.c.0.s8 %v3927
        %v3929 = vlaneseq
        %v3930 = vshrl.u32 %v3929, 7
        %v3931 = vsub.s32 %v3928, %v3930
        %v3932 = vrot.slane %v3924, %v3931
        %v3934 = vunpack.c.l.s4 1983009808
        %v3935 = vunpack.c.0.s8 %v3934
        %v3936 = vlaneseq
        %v3937 = vshrl.u32 %v3936, 7
        %v3938 = vsub.s32 %v3935, %v3937
        %v3939 = vrot.slane %v3925, %v3938
        %v3940 = vcombine.low %v3884, %v3900
        %v3941 = vcombine.high %v3884, %v3900
        %v3943 = vunpack.c.l.s4 1934713408
        %v3944 = vunpack.c.0.s8 %v3943
        %v3945 = vlaneseq
        %v3946 = vshrl.u32 %v3945, 7
        %v3947 = vsub.s32 %v3944, %v3946
        %v3948 = vrot.slane %v3940, %v3947
        %v3950 = vunpack.c.l.s4 1934713408
        %v3951 = vunpack.c.0.s8 %v3950
        %v3952 = vlaneseq
        %v3953 = vshrl.u32 %v3952, 7
        %v3954 = vsub.s32 %v3951, %v3953
        %v3955 = vrot.slane %v3941, %v3954
        %v3956 = vcombine.low %v3891, %v3907
        %v3957 = vcombine.high %v3891, %v3907
        %v3959 = vunpack.c.l.s4 1934713408
        %v3960 = vunpack.c.0.s8 %v3959
        %v3961 = vlaneseq
        %v3962 = vshrl.u32 %v3961, 7
        %v3963 = vsub.s32 %v3960, %v3962
        %v3964 = vrot.slane %v3956, %v3963
        %v3966 = vunpack.c.l.s4 1934713408
        %v3967 = vunpack.c.0.s8 %v3966
        %v3968 = vlaneseq
        %v3969 = vshrl.u32 %v3968, 7
        %v3970 = vsub.s32 %v3967, %v3969
        %v3971 = vrot.slane %v3957, %v3970
        %v3972 = vcombine.low %v3916, %v3932
        %v3973 = vcombine.high %v3916, %v3932
        %v3975 = vunpack.c.l.s4 1934713408
        %v3976 = vunpack.c.0.s8 %v3975
        %v3977 = vlaneseq
        %v3978 = vshrl.u32 %v3977, 7
        %v3979 = vsub.s32 %v3976, %v3978
        %v3980 = vrot.slane %v3972, %v3979
        %v3982 = vunpack.c.l.s4 1934713408
        %v3983 = vunpack.c.0.s8 %v3982
        %v3984 = vlaneseq
        %v3985 = vshrl.u32 %v3984, 7
        %v3986 = vsub.s32 %v3983, %v3985
        %v3987 = vrot.slane %v3973, %v3986
        %v3988 = vcombine.low %v3923, %v3939
        %v3989 = vcombine.high %v3923, %v3939
        %v3991 = vunpack.c.l.s4 1934713408
        %v3992 = vunpack.c.0.s8 %v3991
        %v3993 = vlaneseq
        %v3994 = vshrl.u32 %v3993, 7
        %v3995 = vsub.s32 %v3992, %v3994
        %v3996 = vrot.slane %v3988, %v3995
        %v3998 = vunpack.c.l.s4 1934713408
        %v3999 = vunpack.c.0.s8 %v3998
        %v4000 = vlaneseq
        %v4001 = vshrl.u32 %v4000, 7
        %v4002 = vsub.s32 %v3999, %v4001
        %v4003 = vrot.slane %v3989, %v4002
        %v4004 = vcombine.low %v3948, %v3980
        %v4005 = vcombine.high %v3948, %v3980
        %v4006 = vcombine.low %v3955, %v3987
        %v4007 = vcombine.high %v3955, %v3987
        %v4008 = vcombine.low %v3964, %v3996
        %v4009 = vcombine.high %v3964, %v3996
        %v4010 = vcombine.low %v3971, %v4003
        %v4011 = vcombine.high %v3971, %v4003
        %v4012 = vcombine.low %v198, %v268
        %v4013 = vcombine.high %v198, %v268
        %v4015 = vunpack.c.l.s4 1983009808
        %v4016 = vunpack.c.0.s8 %v4015
        %v4017 = vlaneseq
        %v4018 = vshrl.u32 %v4017, 7
        %v4019 = vsub.s32 %v4016, %v4018
        %v4020 = vrot.slane %v4012, %v4019
        %v4022 = vunpack.c.l.s4 1983009808
        %v4023 = vunpack.c.0.s8 %v4022
        %v4024 = vlaneseq
        %v4025 = vshrl.u32 %v4024, 7
        %v4026 = vsub.s32 %v4023, %v4025
        %v4027 = vrot.slane %v4013, %v4026
        %v4028 = vcombine.low %v233, %v303
        %v4029 = vcombine.high %v233, %v303
        %v4031 = vunpack.c.l.s4 1983009808
        %v4032 = vunpack.c.0.s8 %v4031
        %v4033 = vlaneseq
        %v4034 = vshrl.u32 %v4033, 7
        %v4035 = vsub.s32 %v4032, %v4034
        %v4036 = vrot.slane %v4028, %v4035
        %v4038 = vunpack.c.l.s4 1983009808
        %v4039 = vunpack.c.0.s8 %v4038
        %v4040 = vlaneseq
        %v4041 = vshrl.u32 %v4040, 7
        %v4042 = vsub.s32 %v4039, %v4041
        %v4043 = vrot.slane %v4029, %v4042
        %v4044 = vcombine.low %v338, %v408
        %v4045 = vcombine.high %v338, %v408
        %v4047 = vunpack.c.l.s4 1983009808
        %v4048 = vunpack.c.0.s8 %v4047
        %v4049 = vlaneseq
        %v4050 = vshrl.u32 %v4049, 7
        %v4051 = vsub.s32 %v4048, %v4050
        %v4052 = vrot.slane %v4044, %v4051
        %v4054 = vunpack.c.l.s4 1983009808
        %v4055 = vunpack.c.0.s8 %v4054
        %v4056 = vlaneseq
        %v4057 = vshrl.u32 %v4056, 7
        %v4058 = vsub.s32 %v4055, %v4057
        %v4059 = vrot.slane %v4045, %v4058
        %v4060 = vcombine.low %v373, %v443
        %v4061 = vcombine.high %v373, %v443
        %v4063 = vunpack.c.l.s4 1983009808
        %v4064 = vunpack.c.0.s8 %v4063
        %v4065 = vlaneseq
        %v4066 = vshrl.u32 %v4065, 7
        %v4067 = vsub.s32 %v4064, %v4066
        %v4068 = vrot.slane %v4060, %v4067
        %v4070 = vunpack.c.l.s4 1983009808
        %v4071 = vunpack.c.0.s8 %v4070
        %v4072 = vlaneseq
        %v4073 = vshrl.u32 %v4072, 7
        %v4074 = vsub.s32 %v4071, %v4073
        %v4075 = vrot.slane %v4061, %v4074
        %v4076 = vcombine.low %v4020, %v4036
        %v4077 = vcombine.high %v4020, %v4036
        %v4079 = vunpack.c.l.s4 1934713408
        %v4080 = vunpack.c.0.s8 %v4079
        %v4081 = vlaneseq
        %v4082 = vshrl.u32 %v4081, 7
        %v4083 = vsub.s32 %v4080, %v4082
        %v4084 = vrot.slane %v4076, %v4083
        %v4086 = vunpack.c.l.s4 1934713408
        %v4087 = vunpack.c.0.s8 %v4086
        %v4088 = vlaneseq
        %v4089 = vshrl.u32 %v4088, 7
        %v4090 = vsub.s32 %v4087, %v4089
        %v4091 = vrot.slane %v4077, %v4090
        %v4092 = vcombine.low %v4027, %v4043
        %v4093 = vcombine.high %v4027, %v4043
        %v4095 = vunpack.c.l.s4 1934713408
        %v4096 = vunpack.c.0.s8 %v4095
        %v4097 = vlaneseq
        %v4098 = vshrl.u32 %v4097, 7
        %v4099 = vsub.s32 %v4096, %v4098
        %v4100 = vrot.slane %v4092, %v4099
        %v4102 = vunpack.c.l.s4 1934713408
        %v4103 = vunpack.c.0.s8 %v4102
        %v4104 = vlaneseq
        %v4105 = vshrl.u32 %v4104, 7
        %v4106 = vsub.s32 %v4103, %v4105
        %v4107 = vrot.slane %v4093, %v4106
        %v4108 = vcombine.low %v4052, %v4068
        %v4109 = vcombine.high %v4052, %v4068
        %v4111 = vunpack.c.l.s4 1934713408
        %v4112 = vunpack.c.0.s8 %v4111
        %v4113 = vlaneseq
        %v4114 = vshrl.u32 %v4113, 7
        %v4115 = vsub.s32 %v4112, %v4114
        %v4116 = vrot.slane %v4108, %v4115
        %v4118 = vunpack.c.l.s4 1934713408
        %v4119 = vunpack.c.0.s8 %v4118
        %v4120 = vlaneseq
        %v4121 = vshrl.u32 %v4120, 7
        %v4122 = vsub.s32 %v4119, %v4121
        %v4123 = vrot.slane %v4109, %v4122
        %v4124 = vcombine.low %v4059, %v4075
        %v4125 = vcombine.high %v4059, %v4075
        %v4127 = vunpack.c.l.s4 1934713408
        %v4128 = vunpack.c.0.s8 %v4127
        %v4129 = vlaneseq
        %v4130 = vshrl.u32 %v4129, 7
        %v4131 = vsub.s32 %v4128, %v4130
        %v4132 = vrot.slane %v4124, %v4131
        %v4134 = vunpack.c.l.s4 1934713408
        %v4135 = vunpack.c.0.s8 %v4134
        %v4136 = vlaneseq
        %v4137 = vshrl.u32 %v4136, 7
        %v4138 = vsub.s32 %v4135, %v4137
        %v4139 = vrot.slane %v4125, %v4138
        %v4140 = vcombine.low %v4084, %v4116
        %v4141 = vcombine.high %v4084, %v4116
        %v4142 = vcombine.low %v4091, %v4123
        %v4143 = vcombine.high %v4091, %v4123
        %v4144 = vcombine.low %v4100, %v4132
        %v4145 = vcombine.high %v4100, %v4132
        %v4146 = vcombine.low %v4107, %v4139
        %v4147 = vcombine.high %v4107, %v4139
        %v4148 = vcombine.low %v478, %v548
        %v4149 = vcombine.high %v478, %v548
        %v4151 = vunpack.c.l.s4 1983009808
        %v4152 = vunpack.c.0.s8 %v4151
        %v4153 = vlaneseq
        %v4154 = vshrl.u32 %v4153, 7
        %v4155 = vsub.s32 %v4152, %v4154
        %v4156 = vrot.slane %v4148, %v4155
        %v4158 = vunpack.c.l.s4 1983009808
        %v4159 = vunpack.c.0.s8 %v4158
        %v4160 = vlaneseq
        %v4161 = vshrl.u32 %v4160, 7
        %v4162 = vsub.s32 %v4159, %v4161
        %v4163 = vrot.slane %v4149, %v4162
        %v4164 = vcombine.low %v513, %v583
        %v4165 = vcombine.high %v513, %v583
        %v4167 = vunpack.c.l.s4 1983009808
        %v4168 = vunpack.c.0.s8 %v4167
        %v4169 = vlaneseq
        %v4170 = vshrl.u32 %v4169, 7
        %v4171 = vsub.s32 %v4168, %v4170
        %v4172 = vrot.slane %v4164, %v4171
        %v4174 = vunpack.c.l.s4 1983009808
        %v4175 = vunpack.c.0.s8 %v4174
        %v4176 = vlaneseq
        %v4177 = vshrl.u32 %v4176, 7
        %v4178 = vsub.s32 %v4175, %v4177
        %v4179 = vrot.slane %v4165, %v4178
        %v4180 = vcombine.low %v618, %v688
        %v4181 = vcombine.high %v618, %v688
        %v4183 = vunpack.c.l.s4 1983009808
        %v4184 = vunpack.c.0.s8 %v4183
        %v4185 = vlaneseq
        %v4186 = vshrl.u32 %v4185, 7
        %v4187 = vsub.s32 %v4184, %v4186
        %v4188 = vrot.slane %v4180, %v4187
        %v4190 = vunpack.c.l.s4 1983009808
        %v4191 = vunpack.c.0.s8 %v4190
        %v4192 = vlaneseq
        %v4193 = vshrl.u32 %v4192, 7
        %v4194 = vsub.s32 %v4191, %v4193
        %v4195 = vrot.slane %v4181, %v4194
        %v4196 = vcombine.low %v653, %v723
        %v4197 = vcombine.high %v653, %v723
        %v4199 = vunpack.c.l.s4 1983009808
        %v4200 = vunpack.c.0.s8 %v4199
        %v4201 = vlaneseq
        %v4202 = vshrl.u32 %v4201, 7
        %v4203 = vsub.s32 %v4200, %v4202
        %v4204 = vrot.slane %v4196, %v4203
        %v4206 = vunpack.c.l.s4 1983009808
        %v4207 = vunpack.c.0.s8 %v4206
        %v4208 = vlaneseq
        %v4209 = vshrl.u32 %v4208, 7
        %v4210 = vsub.s32 %v4207, %v4209
        %v4211 = vrot.slane %v4197, %v4210
        %v4212 = vcombine.low %v4156, %v4172
        %v4213 = vcombine.high %v4156, %v4172
        %v4215 = vunpack.c.l.s4 1934713408
        %v4216 = vunpack.c.0.s8 %v4215
        %v4217 = vlaneseq
        %v4218 = vshrl.u32 %v4217, 7
        %v4219 = vsub.s32 %v4216, %v4218
        %v4220 = vrot.slane %v4212, %v4219
        %v4222 = vunpack.c.l.s4 1934713408
        %v4223 = vunpack.c.0.s8 %v4222
        %v4224 = vlaneseq
        %v4225 = vshrl.u32 %v4224, 7
        %v4226 = vsub.s32 %v4223, %v4225
        %v4227 = vrot.slane %v4213, %v4226
        %v4228 = vcombine.low %v4163, %v4179
        %v4229 = vcombine.high %v4163, %v4179
        %v4231 = vunpack.c.l.s4 1934713408
        %v4232 = vunpack.c.0.s8 %v4231
        %v4233 = vlaneseq
        %v4234 = vshrl.u32 %v4233, 7
        %v4235 = vsub.s32 %v4232, %v4234
        %v4236 = vrot.slane %v4228, %v4235
        %v4238 = vunpack.c.l.s4 1934713408
        %v4239 = vunpack.c.0.s8 %v4238
        %v4240 = vlaneseq
        %v4241 = vshrl.u32 %v4240, 7
        %v4242 = vsub.s32 %v4239, %v4241
        %v4243 = vrot.slane %v4229, %v4242
        %v4244 = vcombine.low %v4188, %v4204
        %v4245 = vcombine.high %v4188, %v4204
        %v4247 = vunpack.c.l.s4 1934713408
        %v4248 = vunpack.c.0.s8 %v4247
        %v4249 = vlaneseq
        %v4250 = vshrl.u32 %v4249, 7
        %v4251 = vsub.s32 %v4248, %v4250
        %v4252 = vrot.slane %v4244, %v4251
        %v4254 = vunpack.c.l.s4 1934713408
        %v4255 = vunpack.c.0.s8 %v4254
        %v4256 = vlaneseq
        %v4257 = vshrl.u32 %v4256, 7
        %v4258 = vsub.s32 %v4255, %v4257
        %v4259 = vrot.slane %v4245, %v4258
        %v4260 = vcombine.low %v4195, %v4211
        %v4261 = vcombine.high %v4195, %v4211
        %v4263 = vunpack.c.l.s4 1934713408
        %v4264 = vunpack.c.0.s8 %v4263
        %v4265 = vlaneseq
        %v4266 = vshrl.u32 %v4265, 7
        %v4267 = vsub.s32 %v4264, %v4266
        %v4268 = vrot.slane %v4260, %v4267
        %v4270 = vunpack.c.l.s4 1934713408
        %v4271 = vunpack.c.0.s8 %v4270
        %v4272 = vlaneseq
        %v4273 = vshrl.u32 %v4272, 7
        %v4274 = vsub.s32 %v4271, %v4273
        %v4275 = vrot.slane %v4261, %v4274
        %v4276 = vcombine.low %v4220, %v4252
        %v4277 = vcombine.high %v4220, %v4252
        %v4278 = vcombine.low %v4227, %v4259
        %v4279 = vcombine.high %v4227, %v4259
        %v4280 = vcombine.low %v4236, %v4268
        %v4281 = vcombine.high %v4236, %v4268
        %v4282 = vcombine.low %v4243, %v4275
        %v4283 = vcombine.high %v4243, %v4275
        %v4284 = vcombine.low %v758, %v828
        %v4285 = vcombine.high %v758, %v828
        %v4287 = vunpack.c.l.s4 1983009808
        %v4288 = vunpack.c.0.s8 %v4287
        %v4289 = vlaneseq
        %v4290 = vshrl.u32 %v4289, 7
        %v4291 = vsub.s32 %v4288, %v4290
        %v4292 = vrot.slane %v4284, %v4291
        %v4294 = vunpack.c.l.s4 1983009808
        %v4295 = vunpack.c.0.s8 %v4294
        %v4296 = vlaneseq
        %v4297 = vshrl.u32 %v4296, 7
        %v4298 = vsub.s32 %v4295, %v4297
        %v4299 = vrot.slane %v4285, %v4298
        %v4300 = vcombine.low %v793, %v863
        %v4301 = vcombine.high %v793, %v863
        %v4303 = vunpack.c.l.s4 1983009808
        %v4304 = vunpack.c.0.s8 %v4303
        %v4305 = vlaneseq
        %v4306 = vshrl.u32 %v4305, 7
        %v4307 = vsub.s32 %v4304, %v4306
        %v4308 = vrot.slane %v4300, %v4307
        %v4310 = vunpack.c.l.s4 1983009808
        %v4311 = vunpack.c.0.s8 %v4310
        %v4312 = vlaneseq
        %v4313 = vshrl.u32 %v4312, 7
        %v4314 = vsub.s32 %v4311, %v4313
        %v4315 = vrot.slane %v4301, %v4314
        %v4316 = vcombine.low %v898, %v968
        %v4317 = vcombine.high %v898, %v968
        %v4319 = vunpack.c.l.s4 1983009808
        %v4320 = vunpack.c.0.s8 %v4319
        %v4321 = vlaneseq
        %v4322 = vshrl.u32 %v4321, 7
        %v4323 = vsub.s32 %v4320, %v4322
        %v4324 = vrot.slane %v4316, %v4323
        %v4326 = vunpack.c.l.s4 1983009808
        %v4327 = vunpack.c.0.s8 %v4326
        %v4328 = vlaneseq
        %v4329 = vshrl.u32 %v4328, 7
        %v4330 = vsub.s32 %v4327, %v4329
        %v4331 = vrot.slane %v4317, %v4330
        %v4332 = vcombine.low %v933, %v1003
        %v4333 = vcombine.high %v933, %v1003
        %v4335 = vunpack.c.l.s4 1983009808
        %v4336 = vunpack.c.0.s8 %v4335
        %v4337 = vlaneseq
        %v4338 = vshrl.u32 %v4337, 7
        %v4339 = vsub.s32 %v4336, %v4338
        %v4340 = vrot.slane %v4332, %v4339
        %v4342 = vunpack.c.l.s4 1983009808
        %v4343 = vunpack.c.0.s8 %v4342
        %v4344 = vlaneseq
        %v4345 = vshrl.u32 %v4344, 7
        %v4346 = vsub.s32 %v4343, %v4345
        %v4347 = vrot.slane %v4333, %v4346
        %v4348 = vcombine.low %v4292, %v4308
        %v4349 = vcombine.high %v4292, %v4308
        %v4351 = vunpack.c.l.s4 1934713408
        %v4352 = vunpack.c.0.s8 %v4351
        %v4353 = vlaneseq
        %v4354 = vshrl.u32 %v4353, 7
        %v4355 = vsub.s32 %v4352, %v4354
        %v4356 = vrot.slane %v4348, %v4355
        %v4358 = vunpack.c.l.s4 1934713408
        %v4359 = vunpack.c.0.s8 %v4358
        %v4360 = vlaneseq
        %v4361 = vshrl.u32 %v4360, 7
        %v4362 = vsub.s32 %v4359, %v4361
        %v4363 = vrot.slane %v4349, %v4362
        %v4364 = vcombine.low %v4299, %v4315
        %v4365 = vcombine.high %v4299, %v4315
        %v4367 = vunpack.c.l.s4 1934713408
        %v4368 = vunpack.c.0.s8 %v4367
        %v4369 = vlaneseq
        %v4370 = vshrl.u32 %v4369, 7
        %v4371 = vsub.s32 %v4368, %v4370
        %v4372 = vrot.slane %v4364, %v4371
        %v4374 = vunpack.c.l.s4 1934713408
        %v4375 = vunpack.c.0.s8 %v4374
        %v4376 = vlaneseq
        %v4377 = vshrl.u32 %v4376, 7
        %v4378 = vsub.s32 %v4375, %v4377
        %v4379 = vrot.slane %v4365, %v4378
        %v4380 = vcombine.low %v4324, %v4340
        %v4381 = vcombine.high %v4324, %v4340
        %v4383 = vunpack.c.l.s4 1934713408
        %v4384 = vunpack.c.0.s8 %v4383
        %v4385 = vlaneseq
        %v4386 = vshrl.u32 %v4385, 7
        %v4387 = vsub.s32 %v4384, %v4386
        %v4388 = vrot.slane %v4380, %v4387
        %v4390 = vunpack.c.l.s4 1934713408
        %v4391 = vunpack.c.0.s8 %v4390
        %v4392 = vlaneseq
        %v4393 = vshrl.u32 %v4392, 7
        %v4394 = vsub.s32 %v4391, %v4393
        %v4395 = vrot.slane %v4381, %v4394
        %v4396 = vcombine.low %v4331, %v4347
        %v4397 = vcombine.high %v4331, %v4347
        %v4399 = vunpack.c.l.s4 1934713408
        %v4400 = vunpack.c.0.s8 %v4399
        %v4401 = vlaneseq
        %v4402 = vshrl.u32 %v4401, 7
        %v4403 = vsub.s32 %v4400, %v4402
        %v4404 = vrot.slane %v4396, %v4403
        %v4406 = vunpack.c.l.s4 1934713408
        %v4407 = vunpack.c.0.s8 %v4406
        %v4408 = vlaneseq
        %v4409 = vshrl.u32 %v4408, 7
        %v4410 = vsub.s32 %v4407, %v4409
        %v4411 = vrot.slane %v4397, %v4410
        %v4412 = vcombine.low %v4356, %v4388
        %v4413 = vcombine.high %v4356, %v4388
        %v4414 = vcombine.low %v4363, %v4395
        %v4415 = vcombine.high %v4363, %v4395
        %v4416 = vcombine.low %v4372, %v4404
        %v4417 = vcombine.high %v4372, %v4404
        %v4418 = vcombine.low %v4379, %v4411
        %v4419 = vcombine.high %v4379, %v4411
        %v4420 = vcombine.low %v1038, %v1108
        %v4421 = vcombine.high %v1038, %v1108
        %v4423 = vunpack.c.l.s4 1983009808
        %v4424 = vunpack.c.0.s8 %v4423
        %v4425 = vlaneseq
        %v4426 = vshrl.u32 %v4425, 7
        %v4427 = vsub.s32 %v4424, %v4426
        %v4428 = vrot.slane %v4420, %v4427
        %v4430 = vunpack.c.l.s4 1983009808
        %v4431 = vunpack.c.0.s8 %v4430
        %v4432 = vlaneseq
        %v4433 = vshrl.u32 %v4432, 7
        %v4434 = vsub.s32 %v4431, %v4433
        %v4435 = vrot.slane %v4421, %v4434
        %v4436 = vcombine.low %v1073, %v1143
        %v4437 = vcombine.high %v1073, %v1143
        %v4439 = vunpack.c.l.s4 1983009808
        %v4440 = vunpack.c.0.s8 %v4439
        %v4441 = vlaneseq
        %v4442 = vshrl.u32 %v4441, 7
        %v4443 = vsub.s32 %v4440, %v4442
        %v4444 = vrot.slane %v4436, %v4443
        %v4446 = vunpack.c.l.s4 1983009808
        %v4447 = vunpack.c.0.s8 %v4446
        %v4448 = vlaneseq
        %v4449 = vshrl.u32 %v4448, 7
        %v4450 = vsub.s32 %v4447, %v4449
        %v4451 = vrot.slane %v4437, %v4450
        %v4452 = vcombine.low %v1178, %v1248
        %v4453 = vcombine.high %v1178, %v1248
        %v4455 = vunpack.c.l.s4 1983009808
        %v4456 = vunpack.c.0.s8 %v4455
        %v4457 = vlaneseq
        %v4458 = vshrl.u32 %v4457, 7
        %v4459 = vsub.s32 %v4456, %v4458
        %v4460 = vrot.slane %v4452, %v4459
        %v4462 = vunpack.c.l.s4 1983009808
        %v4463 = vunpack.c.0.s8 %v4462
        %v4464 = vlaneseq
        %v4465 = vshrl.u32 %v4464, 7
        %v4466 = vsub.s32 %v4463, %v4465
        %v4467 = vrot.slane %v4453, %v4466
        %v4468 = vcombine.low %v1213, %v1283
        %v4469 = vcombine.high %v1213, %v1283
        %v4471 = vunpack.c.l.s4 1983009808
        %v4472 = vunpack.c.0.s8 %v4471
        %v4473 = vlaneseq
        %v4474 = vshrl.u32 %v4473, 7
        %v4475 = vsub.s32 %v4472, %v4474
        %v4476 = vrot.slane %v4468, %v4475
        %v4478 = vunpack.c.l.s4 1983009808
        %v4479 = vunpack.c.0.s8 %v4478
        %v4480 = vlaneseq
        %v4481 = vshrl.u32 %v4480, 7
        %v4482 = vsub.s32 %v4479, %v4481
        %v4483 = vrot.slane %v4469, %v4482
        %v4484 = vcombine.low %v4428, %v4444
        %v4485 = vcombine.high %v4428, %v4444
        %v4487 = vunpack.c.l.s4 1934713408
        %v4488 = vunpack.c.0.s8 %v4487
        %v4489 = vlaneseq
        %v4490 = vshrl.u32 %v4489, 7
        %v4491 = vsub.s32 %v4488, %v4490
        %v4492 = vrot.slane %v4484, %v4491
        %v4494 = vunpack.c.l.s4 1934713408
        %v4495 = vunpack.c.0.s8 %v4494
        %v4496 = vlaneseq
        %v4497 = vshrl.u32 %v4496, 7
        %v4498 = vsub.s32 %v4495, %v4497
        %v4499 = vrot.slane %v4485, %v4498
        %v4500 = vcombine.low %v4435, %v4451
        %v4501 = vcombine.high %v4435, %v4451
        %v4503 = vunpack.c.l.s4 1934713408
        %v4504 = vunpack.c.0.s8 %v4503
        %v4505 = vlaneseq
        %v4506 = vshrl.u32 %v4505, 7
        %v4507 = vsub.s32 %v4504, %v4506
        %v4508 = vrot.slane %v4500, %v4507
        %v4510 = vunpack.c.l.s4 1934713408
        %v4511 = vunpack.c.0.s8 %v4510
        %v4512 = vlaneseq
        %v4513 = vshrl.u32 %v4512, 7
        %v4514 = vsub.s32 %v4511, %v4513
        %v4515 = vrot.slane %v4501, %v4514
        %v4516 = vcombine.low %v4460, %v4476
        %v4517 = vcombine.high %v4460, %v4476
        %v4519 = vunpack.c.l.s4 1934713408
        %v4520 = vunpack.c.0.s8 %v4519
        %v4521 = vlaneseq
        %v4522 = vshrl.u32 %v4521, 7
        %v4523 = vsub.s32 %v4520, %v4522
        %v4524 = vrot.slane %v4516, %v4523
        %v4526 = vunpack.c.l.s4 1934713408
        %v4527 = vunpack.c.0.s8 %v4526
        %v4528 = vlaneseq
        %v4529 = vshrl.u32 %v4528, 7
        %v4530 = vsub.s32 %v4527, %v4529
        %v4531 = vrot.slane %v4517, %v4530
        %v4532 = vcombine.low %v4467, %v4483
        %v4533 = vcombine.high %v4467, %v4483
        %v4535 = vunpack.c.l.s4 1934713408
        %v4536 = vunpack.c.0.s8 %v4535
        %v4537 = vlaneseq
        %v4538 = vshrl.u32 %v4537, 7
        %v4539 = vsub.s32 %v4536, %v4538
        %v4540 = vrot.slane %v4532, %v4539
        %v4542 = vunpack.c.l.s4 1934713408
        %v4543 = vunpack.c.0.s8 %v4542
        %v4544 = vlaneseq
        %v4545 = vshrl.u32 %v4544, 7
        %v4546 = vsub.s32 %v4543, %v4545
        %v4547 = vrot.slane %v4533, %v4546
        %v4548 = vcombine.low %v4492, %v4524
        %v4549 = vcombine.high %v4492, %v4524
        %v4550 = vcombine.low %v4499, %v4531
        %v4551 = vcombine.high %v4499, %v4531
        %v4552 = vcombine.low %v4508, %v4540
        %v4553 = vcombine.high %v4508, %v4540
        %v4554 = vcombine.low %v4515, %v4547
        %v4555 = vcombine.high %v4515, %v4547
        %v4556 = vcombine.low %v202, %v272
        %v4557 = vcombine.high %v202, %v272
        %v4559 = vunpack.c.l.s4 1983009808
        %v4560 = vunpack.c.0.s8 %v4559
        %v4561 = vlaneseq
        %v4562 = vshrl.u32 %v4561, 7
        %v4563 = vsub.s32 %v4560, %v4562
        %v4564 = vrot.slane %v4556, %v4563
        %v4566 = vunpack.c.l.s4 1983009808
        %v4567 = vunpack.c.0.s8 %v4566
        %v4568 = vlaneseq
        %v4569 = vshrl.u32 %v4568, 7
        %v4570 = vsub.s32 %v4567, %v4569
        %v4571 = vrot.slane %v4557, %v4570
        %v4572 = vcombine.low %v237, %v307
        %v4573 = vcombine.high %v237, %v307
        %v4575 = vunpack.c.l.s4 1983009808
        %v4576 = vunpack.c.0.s8 %v4575
        %v4577 = vlaneseq
        %v4578 = vshrl.u32 %v4577, 7
        %v4579 = vsub.s32 %v4576, %v4578
        %v4580 = vrot.slane %v4572, %v4579
        %v4582 = vunpack.c.l.s4 1983009808
        %v4583 = vunpack.c.0.s8 %v4582
        %v4584 = vlaneseq
        %v4585 = vshrl.u32 %v4584, 7
        %v4586 = vsub.s32 %v4583, %v4585
        %v4587 = vrot.slane %v4573, %v4586
        %v4588 = vcombine.low %v342, %v412
        %v4589 = vcombine.high %v342, %v412
        %v4591 = vunpack.c.l.s4 1983009808
        %v4592 = vunpack.c.0.s8 %v4591
        %v4593 = vlaneseq
        %v4594 = vshrl.u32 %v4593, 7
        %v4595 = vsub.s32 %v4592, %v4594
        %v4596 = vrot.slane %v4588, %v4595
        %v4598 = vunpack.c.l.s4 1983009808
        %v4599 = vunpack.c.0.s8 %v4598
        %v4600 = vlaneseq
        %v4601 = vshrl.u32 %v4600, 7
        %v4602 = vsub.s32 %v4599, %v4601
        %v4603 = vrot.slane %v4589, %v4602
        %v4604 = vcombine.low %v377, %v447
        %v4605 = vcombine.high %v377, %v447
        %v4607 = vunpack.c.l.s4 1983009808
        %v4608 = vunpack.c.0.s8 %v4607
        %v4609 = vlaneseq
        %v4610 = vshrl.u32 %v4609, 7
        %v4611 = vsub.s32 %v4608, %v4610
        %v4612 = vrot.slane %v4604, %v4611
        %v4614 = vunpack.c.l.s4 1983009808
        %v4615 = vunpack.c.0.s8 %v4614
        %v4616 = vlaneseq
        %v4617 = vshrl.u32 %v4616, 7
        %v4618 = vsub.s32 %v4615, %v4617
        %v4619 = vrot.slane %v4605, %v4618
        %v4620 = vcombine.low %v4564, %v4580
        %v4621 = vcombine.high %v4564, %v4580
        %v4623 = vunpack.c.l.s4 1934713408
        %v4624 = vunpack.c.0.s8 %v4623
        %v4625 = vlaneseq
        %v4626 = vshrl.u32 %v4625, 7
        %v4627 = vsub.s32 %v4624, %v4626
        %v4628 = vrot.slane %v4620, %v4627
        %v4630 = vunpack.c.l.s4 1934713408
        %v4631 = vunpack.c.0.s8 %v4630
        %v4632 = vlaneseq
        %v4633 = vshrl.u32 %v4632, 7
        %v4634 = vsub.s32 %v4631, %v4633
        %v4635 = vrot.slane %v4621, %v4634
        %v4636 = vcombine.low %v4571, %v4587
        %v4637 = vcombine.high %v4571, %v4587
        %v4639 = vunpack.c.l.s4 1934713408
        %v4640 = vunpack.c.0.s8 %v4639
        %v4641 = vlaneseq
        %v4642 = vshrl.u32 %v4641, 7
        %v4643 = vsub.s32 %v4640, %v4642
        %v4644 = vrot.slane %v4636, %v4643
        %v4646 = vunpack.c.l.s4 1934713408
        %v4647 = vunpack.c.0.s8 %v4646
        %v4648 = vlaneseq
        %v4649 = vshrl.u32 %v4648, 7
        %v4650 = vsub.s32 %v4647, %v4649
        %v4651 = vrot.slane %v4637, %v4650
        %v4652 = vcombine.low %v4596, %v4612
        %v4653 = vcombine.high %v4596, %v4612
        %v4655 = vunpack.c.l.s4 1934713408
        %v4656 = vunpack.c.0.s8 %v4655
        %v4657 = vlaneseq
        %v4658 = vshrl.u32 %v4657, 7
        %v4659 = vsub.s32 %v4656, %v4658
        %v4660 = vrot.slane %v4652, %v4659
        %v4662 = vunpack.c.l.s4 1934713408
        %v4663 = vunpack.c.0.s8 %v4662
        %v4664 = vlaneseq
        %v4665 = vshrl.u32 %v4664, 7
        %v4666 = vsub.s32 %v4663, %v4665
        %v4667 = vrot.slane %v4653, %v4666
        %v4668 = vcombine.low %v4603, %v4619
        %v4669 = vcombine.high %v4603, %v4619
        %v4671 = vunpack.c.l.s4 1934713408
        %v4672 = vunpack.c.0.s8 %v4671
        %v4673 = vlaneseq
        %v4674 = vshrl.u32 %v4673, 7
        %v4675 = vsub.s32 %v4672, %v4674
        %v4676 = vrot.slane %v4668, %v4675
        %v4678 = vunpack.c.l.s4 1934713408
        %v4679 = vunpack.c.0.s8 %v4678
        %v4680 = vlaneseq
        %v4681 = vshrl.u32 %v4680, 7
        %v4682 = vsub.s32 %v4679, %v4681
        %v4683 = vrot.slane %v4669, %v4682
        %v4684 = vcombine.low %v4628, %v4660
        %v4685 = vcombine.high %v4628, %v4660
        %v4686 = vcombine.low %v4635, %v4667
        %v4687 = vcombine.high %v4635, %v4667
        %v4688 = vcombine.low %v4644, %v4676
        %v4689 = vcombine.high %v4644, %v4676
        %v4690 = vcombine.low %v4651, %v4683
        %v4691 = vcombine.high %v4651, %v4683
        %v4692 = vcombine.low %v482, %v552
        %v4693 = vcombine.high %v482, %v552
        %v4695 = vunpack.c.l.s4 1983009808
        %v4696 = vunpack.c.0.s8 %v4695
        %v4697 = vlaneseq
        %v4698 = vshrl.u32 %v4697, 7
        %v4699 = vsub.s32 %v4696, %v4698
        %v4700 = vrot.slane %v4692, %v4699
        %v4702 = vunpack.c.l.s4 1983009808
        %v4703 = vunpack.c.0.s8 %v4702
        %v4704 = vlaneseq
        %v4705 = vshrl.u32 %v4704, 7
        %v4706 = vsub.s32 %v4703, %v4705
        %v4707 = vrot.slane %v4693, %v4706
        %v4708 = vcombine.low %v517, %v587
        %v4709 = vcombine.high %v517, %v587
        %v4711 = vunpack.c.l.s4 1983009808
        %v4712 = vunpack.c.0.s8 %v4711
        %v4713 = vlaneseq
        %v4714 = vshrl.u32 %v4713, 7
        %v4715 = vsub.s32 %v4712, %v4714
        %v4716 = vrot.slane %v4708, %v4715
        %v4718 = vunpack.c.l.s4 1983009808
        %v4719 = vunpack.c.0.s8 %v4718
        %v4720 = vlaneseq
        %v4721 = vshrl.u32 %v4720, 7
        %v4722 = vsub.s32 %v4719, %v4721
        %v4723 = vrot.slane %v4709, %v4722
        %v4724 = vcombine.low %v622, %v692
        %v4725 = vcombine.high %v622, %v692
        %v4727 = vunpack.c.l.s4 1983009808
        %v4728 = vunpack.c.0.s8 %v4727
        %v4729 = vlaneseq
        %v4730 = vshrl.u32 %v4729, 7
        %v4731 = vsub.s32 %v4728, %v4730
        %v4732 = vrot.slane %v4724, %v4731
        %v4734 = vunpack.c.l.s4 1983009808
        %v4735 = vunpack.c.0.s8 %v4734
        %v4736 = vlaneseq
        %v4737 = vshrl.u32 %v4736, 7
        %v4738 = vsub.s32 %v4735, %v4737
        %v4739 = vrot.slane %v4725, %v4738
        %v4740 = vcombine.low %v657, %v727
        %v4741 = vcombine.high %v657, %v727
        %v4743 = vunpack.c.l.s4 1983009808
        %v4744 = vunpack.c.0.s8 %v4743
        %v4745 = vlaneseq
        %v4746 = vshrl.u32 %v4745, 7
        %v4747 = vsub.s32 %v4744, %v4746
        %v4748 = vrot.slane %v4740, %v4747
        %v4750 = vunpack.c.l.s4 1983009808
        %v4751 = vunpack.c.0.s8 %v4750
        %v4752 = vlaneseq
        %v4753 = vshrl.u32 %v4752, 7
        %v4754 = vsub.s32 %v4751, %v4753
        %v4755 = vrot.slane %v4741, %v4754
        %v4756 = vcombine.low %v4700, %v4716
        %v4757 = vcombine.high %v4700, %v4716
        %v4759 = vunpack.c.l.s4 1934713408
        %v4760 = vunpack.c.0.s8 %v4759
        %v4761 = vlaneseq
        %v4762 = vshrl.u32 %v4761, 7
        %v4763 = vsub.s32 %v4760, %v4762
        %v4764 = vrot.slane %v4756, %v4763
        %v4766 = vunpack.c.l.s4 1934713408
        %v4767 = vunpack.c.0.s8 %v4766
        %v4768 = vlaneseq
        %v4769 = vshrl.u32 %v4768, 7
        %v4770 = vsub.s32 %v4767, %v4769
        %v4771 = vrot.slane %v4757, %v4770
        %v4772 = vcombine.low %v4707, %v4723
        %v4773 = vcombine.high %v4707, %v4723
        %v4775 = vunpack.c.l.s4 1934713408
        %v4776 = vunpack.c.0.s8 %v4775
        %v4777 = vlaneseq
        %v4778 = vshrl.u32 %v4777, 7
        %v4779 = vsub.s32 %v4776, %v4778
        %v4780 = vrot.slane %v4772, %v4779
        %v4782 = vunpack.c.l.s4 1934713408
        %v4783 = vunpack.c.0.s8 %v4782
        %v4784 = vlaneseq
        %v4785 = vshrl.u32 %v4784, 7
        %v4786 = vsub.s32 %v4783, %v4785
        %v4787 = vrot.slane %v4773, %v4786
        %v4788 = vcombine.low %v4732, %v4748
        %v4789 = vcombine.high %v4732, %v4748
        %v4791 = vunpack.c.l.s4 1934713408
        %v4792 = vunpack.c.0.s8 %v4791
        %v4793 = vlaneseq
        %v4794 = vshrl.u32 %v4793, 7
        %v4795 = vsub.s32 %v4792, %v4794
        %v4796 = vrot.slane %v4788, %v4795
        %v4798 = vunpack.c.l.s4 1934713408
        %v4799 = vunpack.c.0.s8 %v4798
        %v4800 = vlaneseq
        %v4801 = vshrl.u32 %v4800, 7
        %v4802 = vsub.s32 %v4799, %v4801
        %v4803 = vrot.slane %v4789, %v4802
        %v4804 = vcombine.low %v4739, %v4755
        %v4805 = vcombine.high %v4739, %v4755
        %v4807 = vunpack.c.l.s4 1934713408
        %v4808 = vunpack.c.0.s8 %v4807
        %v4809 = vlaneseq
        %v4810 = vshrl.u32 %v4809, 7
        %v4811 = vsub.s32 %v4808, %v4810
        %v4812 = vrot.slane %v4804, %v4811
        %v4814 = vunpack.c.l.s4 1934713408
        %v4815 = vunpack.c.0.s8 %v4814
        %v4816 = vlaneseq
        %v4817 = vshrl.u32 %v4816, 7
        %v4818 = vsub.s32 %v4815, %v4817
        %v4819 = vrot.slane %v4805, %v4818
        %v4820 = vcombine.low %v4764, %v4796
        %v4821 = vcombine.high %v4764, %v4796
        %v4822 = vcombine.low %v4771, %v4803
        %v4823 = vcombine.high %v4771, %v4803
        %v4824 = vcombine.low %v4780, %v4812
        %v4825 = vcombine.high %v4780, %v4812
        %v4826 = vcombine.low %v4787, %v4819
        %v4827 = vcombine.high %v4787, %v4819
        %v4828 = vcombine.low %v762, %v832
        %v4829 = vcombine.high %v762, %v832
        %v4831 = vunpack.c.l.s4 1983009808
        %v4832 = vunpack.c.0.s8 %v4831
        %v4833 = vlaneseq
        %v4834 = vshrl.u32 %v4833, 7
        %v4835 = vsub.s32 %v4832, %v4834
        %v4836 = vrot.slane %v4828, %v4835
        %v4838 = vunpack.c.l.s4 1983009808
        %v4839 = vunpack.c.0.s8 %v4838
        %v4840 = vlaneseq
        %v4841 = vshrl.u32 %v4840, 7
        %v4842 = vsub.s32 %v4839, %v4841
        %v4843 = vrot.slane %v4829, %v4842
        %v4844 = vcombine.low %v797, %v867
        %v4845 = vcombine.high %v797, %v867
        %v4847 = vunpack.c.l.s4 1983009808
        %v4848 = vunpack.c.0.s8 %v4847
        %v4849 = vlaneseq
        %v4850 = vshrl.u32 %v4849, 7
        %v4851 = vsub.s32 %v4848, %v4850
        %v4852 = vrot.slane %v4844, %v4851
        %v4854 = vunpack.c.l.s4 1983009808
        %v4855 = vunpack.c.0.s8 %v4854
        %v4856 = vlaneseq
        %v4857 = vshrl.u32 %v4856, 7
        %v4858 = vsub.s32 %v4855, %v4857
        %v4859 = vrot.slane %v4845, %v4858
        %v4860 = vcombine.low %v902, %v972
        %v4861 = vcombine.high %v902, %v972
        %v4863 = vunpack.c.l.s4 1983009808
        %v4864 = vunpack.c.0.s8 %v4863
        %v4865 = vlaneseq
        %v4866 = vshrl.u32 %v4865, 7
        %v4867 = vsub.s32 %v4864, %v4866
        %v4868 = vrot.slane %v4860, %v4867
        %v4870 = vunpack.c.l.s4 1983009808
        %v4871 = vunpack.c.0.s8 %v4870
        %v4872 = vlaneseq
        %v4873 = vshrl.u32 %v4872, 7
        %v4874 = vsub.s32 %v4871, %v4873
        %v4875 = vrot.slane %v4861, %v4874
        %v4876 = vcombine.low %v937, %v1007
        %v4877 = vcombine.high %v937, %v1007
        %v4879 = vunpack.c.l.s4 1983009808
        %v4880 = vunpack.c.0.s8 %v4879
        %v4881 = vlaneseq
        %v4882 = vshrl.u32 %v4881, 7
        %v4883 = vsub.s32 %v4880, %v4882
        %v4884 = vrot.slane %v4876, %v4883
        %v4886 = vunpack.c.l.s4 1983009808
        %v4887 = vunpack.c.0.s8 %v4886
        %v4888 = vlaneseq
        %v4889 = vshrl.u32 %v4888, 7
        %v4890 = vsub.s32 %v4887, %v4889
        %v4891 = vrot.slane %v4877, %v4890
        %v4892 = vcombine.low %v4836, %v4852
        %v4893 = vcombine.high %v4836, %v4852
        %v4895 = vunpack.c.l.s4 1934713408
        %v4896 = vunpack.c.0.s8 %v4895
        %v4897 = vlaneseq
        %v4898 = vshrl.u32 %v4897, 7
        %v4899 = vsub.s32 %v4896, %v4898
        %v4900 = vrot.slane %v4892, %v4899
        %v4902 = vunpack.c.l.s4 1934713408
        %v4903 = vunpack.c.0.s8 %v4902
        %v4904 = vlaneseq
        %v4905 = vshrl.u32 %v4904, 7
        %v4906 = vsub.s32 %v4903, %v4905
        %v4907 = vrot.slane %v4893, %v4906
        %v4908 = vcombine.low %v4843, %v4859
        %v4909 = vcombine.high %v4843, %v4859
        %v4911 = vunpack.c.l.s4 1934713408
        %v4912 = vunpack.c.0.s8 %v4911
        %v4913 = vlaneseq
        %v4914 = vshrl.u32 %v4913, 7
        %v4915 = vsub.s32 %v4912, %v4914
        %v4916 = vrot.slane %v4908, %v4915
        %v4918 = vunpack.c.l.s4 1934713408
        %v4919 = vunpack.c.0.s8 %v4918
        %v4920 = vlaneseq
        %v4921 = vshrl.u32 %v4920, 7
        %v4922 = vsub.s32 %v4919, %v4921
        %v4923 = vrot.slane %v4909, %v4922
        %v4924 = vcombine.low %v4868, %v4884
        %v4925 = vcombine.high %v4868, %v4884
        %v4927 = vunpack.c.l.s4 1934713408
        %v4928 = vunpack.c.0.s8 %v4927
        %v4929 = vlaneseq
        %v4930 = vshrl.u32 %v4929, 7
        %v4931 = vsub.s32 %v4928, %v4930
        %v4932 = vrot.slane %v4924, %v4931
        %v4934 = vunpack.c.l.s4 1934713408
        %v4935 = vunpack.c.0.s8 %v4934
        %v4936 = vlaneseq
        %v4937 = vshrl.u32 %v4936, 7
        %v4938 = vsub.s32 %v4935, %v4937
        %v4939 = vrot.slane %v4925, %v4938
        %v4940 = vcombine.low %v4875, %v4891
        %v4941 = vcombine.high %v4875, %v4891
        %v4943 = vunpack.c.l.s4 1934713408
        %v4944 = vunpack.c.0.s8 %v4943
        %v4945 = vlaneseq
        %v4946 = vshrl.u32 %v4945, 7
        %v4947 = vsub.s32 %v4944, %v4946
        %v4948 = vrot.slane %v4940, %v4947
        %v4950 = vunpack.c.l.s4 1934713408
        %v4951 = vunpack.c.0.s8 %v4950
        %v4952 = vlaneseq
        %v4953 = vshrl.u32 %v4952, 7
        %v4954 = vsub.s32 %v4951, %v4953
        %v4955 = vrot.slane %v4941, %v4954
        %v4956 = vcombine.low %v4900, %v4932
        %v4957 = vcombine.high %v4900, %v4932
        %v4958 = vcombine.low %v4907, %v4939
        %v4959 = vcombine.high %v4907, %v4939
        %v4960 = vcombine.low %v4916, %v4948
        %v4961 = vcombine.high %v4916, %v4948
        %v4962 = vcombine.low %v4923, %v4955
        %v4963 = vcombine.high %v4923, %v4955
        %v4964 = vcombine.low %v1042, %v1112
        %v4965 = vcombine.high %v1042, %v1112
        %v4967 = vunpack.c.l.s4 1983009808
        %v4968 = vunpack.c.0.s8 %v4967
        %v4969 = vlaneseq
        %v4970 = vshrl.u32 %v4969, 7
        %v4971 = vsub.s32 %v4968, %v4970
        %v4972 = vrot.slane %v4964, %v4971
        %v4974 = vunpack.c.l.s4 1983009808
        %v4975 = vunpack.c.0.s8 %v4974
        %v4976 = vlaneseq
        %v4977 = vshrl.u32 %v4976, 7
        %v4978 = vsub.s32 %v4975, %v4977
        %v4979 = vrot.slane %v4965, %v4978
        %v4980 = vcombine.low %v1077, %v1147
        %v4981 = vcombine.high %v1077, %v1147
        %v4983 = vunpack.c.l.s4 1983009808
        %v4984 = vunpack.c.0.s8 %v4983
        %v4985 = vlaneseq
        %v4986 = vshrl.u32 %v4985, 7
        %v4987 = vsub.s32 %v4984, %v4986
        %v4988 = vrot.slane %v4980, %v4987
        %v4990 = vunpack.c.l.s4 1983009808
        %v4991 = vunpack.c.0.s8 %v4990
        %v4992 = vlaneseq
        %v4993 = vshrl.u32 %v4992, 7
        %v4994 = vsub.s32 %v4991, %v4993
        %v4995 = vrot.slane %v4981, %v4994
        %v4996 = vcombine.low %v1182, %v1252
        %v4997 = vcombine.high %v1182, %v1252
        %v4999 = vunpack.c.l.s4 1983009808
        %v5000 = vunpack.c.0.s8 %v4999
        %v5001 = vlaneseq
        %v5002 = vshrl.u32 %v5001, 7
        %v5003 = vsub.s32 %v5000, %v5002
        %v5004 = vrot.slane %v4996, %v5003
        %v5006 = vunpack.c.l.s4 1983009808
        %v5007 = vunpack.c.0.s8 %v5006
        %v5008 = vlaneseq
        %v5009 = vshrl.u32 %v5008, 7
        %v5010 = vsub.s32 %v5007, %v5009
        %v5011 = vrot.slane %v4997, %v5010
        %v5012 = vcombine.low %v1217, %v1287
        %v5013 = vcombine.high %v1217, %v1287
        %v5015 = vunpack.c.l.s4 1983009808
        %v5016 = vunpack.c.0.s8 %v5015
        %v5017 = vlaneseq
        %v5018 = vshrl.u32 %v5017, 7
        %v5019 = vsub.s32 %v5016, %v5018
        %v5020 = vrot.slane %v5012, %v5019
        %v5022 = vunpack.c.l.s4 1983009808
        %v5023 = vunpack.c.0.s8 %v5022
        %v5024 = vlaneseq
        %v5025 = vshrl.u32 %v5024, 7
        %v5026 = vsub.s32 %v5023, %v5025
        %v5027 = vrot.slane %v5013, %v5026
        %v5028 = vcombine.low %v4972, %v4988
        %v5029 = vcombine.high %v4972, %v4988
        %v5031 = vunpack.c.l.s4 1934713408
        %v5032 = vunpack.c.0.s8 %v5031
        %v5033 = vlaneseq
        %v5034 = vshrl.u32 %v5033, 7
        %v5035 = vsub.s32 %v5032, %v5034
        %v5036 = vrot.slane %v5028, %v5035
        %v5038 = vunpack.c.l.s4 1934713408
        %v5039 = vunpack.c.0.s8 %v5038
        %v5040 = vlaneseq
        %v5041 = vshrl.u32 %v5040, 7
        %v5042 = vsub.s32 %v5039, %v5041
        %v5043 = vrot.slane %v5029, %v5042
        %v5044 = vcombine.low %v4979, %v4995
        %v5045 = vcombine.high %v4979, %v4995
        %v5047 = vunpack.c.l.s4 1934713408
        %v5048 = vunpack.c.0.s8 %v5047
        %v5049 = vlaneseq
        %v5050 = vshrl.u32 %v5049, 7
        %v5051 = vsub.s32 %v5048, %v5050
        %v5052 = vrot.slane %v5044, %v5051
        %v5054 = vunpack.c.l.s4 1934713408
        %v5055 = vunpack.c.0.s8 %v5054
        %v5056 = vlaneseq
        %v5057 = vshrl.u32 %v5056, 7
        %v5058 = vsub.s32 %v5055, %v5057
        %v5059 = vrot.slane %v5045, %v5058
        %v5060 = vcombine.low %v5004, %v5020
        %v5061 = vcombine.high %v5004, %v5020
        %v5063 = vunpack.c.l.s4 1934713408
        %v5064 = vunpack.c.0.s8 %v5063
        %v5065 = vlaneseq
        %v5066 = vshrl.u32 %v5065, 7
        %v5067 = vsub.s32 %v5064, %v5066
        %v5068 = vrot.slane %v5060, %v5067
        %v5070 = vunpack.c.l.s4 1934713408
        %v5071 = vunpack.c.0.s8 %v5070
        %v5072 = vlaneseq
        %v5073 = vshrl.u32 %v5072, 7
        %v5074 = vsub.s32 %v5071, %v5073
        %v5075 = vrot.slane %v5061, %v5074
        %v5076 = vcombine.low %v5011, %v5027
        %v5077 = vcombine.high %v5011, %v5027
        %v5079 = vunpack.c.l.s4 1934713408
        %v5080 = vunpack.c.0.s8 %v5079
        %v5081 = vlaneseq
        %v5082 = vshrl.u32 %v5081, 7
        %v5083 = vsub.s32 %v5080, %v5082
        %v5084 = vrot.slane %v5076, %v5083
        %v5086 = vunpack.c.l.s4 1934713408
        %v5087 = vunpack.c.0.s8 %v5086
        %v5088 = vlaneseq
        %v5089 = vshrl.u32 %v5088, 7
        %v5090 = vsub.s32 %v5087, %v5089
        %v5091 = vrot.slane %v5077, %v5090
        %v5092 = vcombine.low %v5036, %v5068
        %v5093 = vcombine.high %v5036, %v5068
        %v5094 = vcombine.low %v5043, %v5075
        %v5095 = vcombine.high %v5043, %v5075
        %v5096 = vcombine.low %v5052, %v5084
        %v5097 = vcombine.high %v5052, %v5084
        %v5098 = vcombine.low %v5059, %v5091
        %v5099 = vcombine.high %v5059, %v5091
        %v5100 = vcombine.low %v206, %v276
        %v5101 = vcombine.high %v206, %v276
        %v5103 = vunpack.c.l.s4 1983009808
        %v5104 = vunpack.c.0.s8 %v5103
        %v5105 = vlaneseq
        %v5106 = vshrl.u32 %v5105, 7
        %v5107 = vsub.s32 %v5104, %v5106
        %v5108 = vrot.slane %v5100, %v5107
        %v5110 = vunpack.c.l.s4 1983009808
        %v5111 = vunpack.c.0.s8 %v5110
        %v5112 = vlaneseq
        %v5113 = vshrl.u32 %v5112, 7
        %v5114 = vsub.s32 %v5111, %v5113
        %v5115 = vrot.slane %v5101, %v5114
        %v5116 = vcombine.low %v241, %v311
        %v5117 = vcombine.high %v241, %v311
        %v5119 = vunpack.c.l.s4 1983009808
        %v5120 = vunpack.c.0.s8 %v5119
        %v5121 = vlaneseq
        %v5122 = vshrl.u32 %v5121, 7
        %v5123 = vsub.s32 %v5120, %v5122
        %v5124 = vrot.slane %v5116, %v5123
        %v5126 = vunpack.c.l.s4 1983009808
        %v5127 = vunpack.c.0.s8 %v5126
        %v5128 = vlaneseq
        %v5129 = vshrl.u32 %v5128, 7
        %v5130 = vsub.s32 %v5127, %v5129
        %v5131 = vrot.slane %v5117, %v5130
        %v5132 = vcombine.low %v346, %v416
        %v5133 = vcombine.high %v346, %v416
        %v5135 = vunpack.c.l.s4 1983009808
        %v5136 = vunpack.c.0.s8 %v5135
        %v5137 = vlaneseq
        %v5138 = vshrl.u32 %v5137, 7
        %v5139 = vsub.s32 %v5136, %v5138
        %v5140 = vrot.slane %v5132, %v5139
        %v5142 = vunpack.c.l.s4 1983009808
        %v5143 = vunpack.c.0.s8 %v5142
        %v5144 = vlaneseq
        %v5145 = vshrl.u32 %v5144, 7
        %v5146 = vsub.s32 %v5143, %v5145
        %v5147 = vrot.slane %v5133, %v5146
        %v5148 = vcombine.low %v381, %v451
        %v5149 = vcombine.high %v381, %v451
        %v5151 = vunpack.c.l.s4 1983009808
        %v5152 = vunpack.c.0.s8 %v5151
        %v5153 = vlaneseq
        %v5154 = vshrl.u32 %v5153, 7
        %v5155 = vsub.s32 %v5152, %v5154
        %v5156 = vrot.slane %v5148, %v5155
        %v5158 = vunpack.c.l.s4 1983009808
        %v5159 = vunpack.c.0.s8 %v5158
        %v5160 = vlaneseq
        %v5161 = vshrl.u32 %v5160, 7
        %v5162 = vsub.s32 %v5159, %v5161
        %v5163 = vrot.slane %v5149, %v5162
        %v5164 = vcombine.low %v5108, %v5124
        %v5165 = vcombine.high %v5108, %v5124
        %v5167 = vunpack.c.l.s4 1934713408
        %v5168 = vunpack.c.0.s8 %v5167
        %v5169 = vlaneseq
        %v5170 = vshrl.u32 %v5169, 7
        %v5171 = vsub.s32 %v5168, %v5170
        %v5172 = vrot.slane %v5164, %v5171
        %v5174 = vunpack.c.l.s4 1934713408
        %v5175 = vunpack.c.0.s8 %v5174
        %v5176 = vlaneseq
        %v5177 = vshrl.u32 %v5176, 7
        %v5178 = vsub.s32 %v5175, %v5177
        %v5179 = vrot.slane %v5165, %v5178
        %v5180 = vcombine.low %v5115, %v5131
        %v5181 = vcombine.high %v5115, %v5131
        %v5183 = vunpack.c.l.s4 1934713408
        %v5184 = vunpack.c.0.s8 %v5183
        %v5185 = vlaneseq
        %v5186 = vshrl.u32 %v5185, 7
        %v5187 = vsub.s32 %v5184, %v5186
        %v5188 = vrot.slane %v5180, %v5187
        %v5190 = vunpack.c.l.s4 1934713408
        %v5191 = vunpack.c.0.s8 %v5190
        %v5192 = vlaneseq
        %v5193 = vshrl.u32 %v5192, 7
        %v5194 = vsub.s32 %v5191, %v5193
        %v5195 = vrot.slane %v5181, %v5194
        %v5196 = vcombine.low %v5140, %v5156
        %v5197 = vcombine.high %v5140, %v5156
        %v5199 = vunpack.c.l.s4 1934713408
        %v5200 = vunpack.c.0.s8 %v5199
        %v5201 = vlaneseq
        %v5202 = vshrl.u32 %v5201, 7
        %v5203 = vsub.s32 %v5200, %v5202
        %v5204 = vrot.slane %v5196, %v5203
        %v5206 = vunpack.c.l.s4 1934713408
        %v5207 = vunpack.c.0.s8 %v5206
        %v5208 = vlaneseq
        %v5209 = vshrl.u32 %v5208, 7
        %v5210 = vsub.s32 %v5207, %v5209
        %v5211 = vrot.slane %v5197, %v5210
        %v5212 = vcombine.low %v5147, %v5163
        %v5213 = vcombine.high %v5147, %v5163
        %v5215 = vunpack.c.l.s4 1934713408
        %v5216 = vunpack.c.0.s8 %v5215
        %v5217 = vlaneseq
        %v5218 = vshrl.u32 %v5217, 7
        %v5219 = vsub.s32 %v5216, %v5218
        %v5220 = vrot.slane %v5212, %v5219
        %v5222 = vunpack.c.l.s4 1934713408
        %v5223 = vunpack.c.0.s8 %v5222
        %v5224 = vlaneseq
        %v5225 = vshrl.u32 %v5224, 7
        %v5226 = vsub.s32 %v5223, %v5225
        %v5227 = vrot.slane %v5213, %v5226
        %v5228 = vcombine.low %v5172, %v5204
        %v5229 = vcombine.high %v5172, %v5204
        %v5230 = vcombine.low %v5179, %v5211
        %v5231 = vcombine.high %v5179, %v5211
        %v5232 = vcombine.low %v5188, %v5220
        %v5233 = vcombine.high %v5188, %v5220
        %v5234 = vcombine.low %v5195, %v5227
        %v5235 = vcombine.high %v5195, %v5227
        %v5236 = vcombine.low %v486, %v556
        %v5237 = vcombine.high %v486, %v556
        %v5239 = vunpack.c.l.s4 1983009808
        %v5240 = vunpack.c.0.s8 %v5239
        %v5241 = vlaneseq
        %v5242 = vshrl.u32 %v5241, 7
        %v5243 = vsub.s32 %v5240, %v5242
        %v5244 = vrot.slane %v5236, %v5243
        %v5246 = vunpack.c.l.s4 1983009808
        %v5247 = vunpack.c.0.s8 %v5246
        %v5248 = vlaneseq
        %v5249 = vshrl.u32 %v5248, 7
        %v5250 = vsub.s32 %v5247, %v5249
        %v5251 = vrot.slane %v5237, %v5250
        %v5252 = vcombine.low %v521, %v591
        %v5253 = vcombine.high %v521, %v591
        %v5255 = vunpack.c.l.s4 1983009808
        %v5256 = vunpack.c.0.s8 %v5255
        %v5257 = vlaneseq
        %v5258 = vshrl.u32 %v5257, 7
        %v5259 = vsub.s32 %v5256, %v5258
        %v5260 = vrot.slane %v5252, %v5259
        %v5262 = vunpack.c.l.s4 1983009808
        %v5263 = vunpack.c.0.s8 %v5262
        %v5264 = vlaneseq
        %v5265 = vshrl.u32 %v5264, 7
        %v5266 = vsub.s32 %v5263, %v5265
        %v5267 = vrot.slane %v5253, %v5266
        %v5268 = vcombine.low %v626, %v696
        %v5269 = vcombine.high %v626, %v696
        %v5271 = vunpack.c.l.s4 1983009808
        %v5272 = vunpack.c.0.s8 %v5271
        %v5273 = vlaneseq
        %v5274 = vshrl.u32 %v5273, 7
        %v5275 = vsub.s32 %v5272, %v5274
        %v5276 = vrot.slane %v5268, %v5275
        %v5278 = vunpack.c.l.s4 1983009808
        %v5279 = vunpack.c.0.s8 %v5278
        %v5280 = vlaneseq
        %v5281 = vshrl.u32 %v5280, 7
        %v5282 = vsub.s32 %v5279, %v5281
        %v5283 = vrot.slane %v5269, %v5282
        %v5284 = vcombine.low %v661, %v731
        %v5285 = vcombine.high %v661, %v731
        %v5287 = vunpack.c.l.s4 1983009808
        %v5288 = vunpack.c.0.s8 %v5287
        %v5289 = vlaneseq
        %v5290 = vshrl.u32 %v5289, 7
        %v5291 = vsub.s32 %v5288, %v5290
        %v5292 = vrot.slane %v5284, %v5291
        %v5294 = vunpack.c.l.s4 1983009808
        %v5295 = vunpack.c.0.s8 %v5294
        %v5296 = vlaneseq
        %v5297 = vshrl.u32 %v5296, 7
        %v5298 = vsub.s32 %v5295, %v5297
        %v5299 = vrot.slane %v5285, %v5298
        %v5300 = vcombine.low %v5244, %v5260
        %v5301 = vcombine.high %v5244, %v5260
        %v5303 = vunpack.c.l.s4 1934713408
        %v5304 = vunpack.c.0.s8 %v5303
        %v5305 = vlaneseq
        %v5306 = vshrl.u32 %v5305, 7
        %v5307 = vsub.s32 %v5304, %v5306
        %v5308 = vrot.slane %v5300, %v5307
        %v5310 = vunpack.c.l.s4 1934713408
        %v5311 = vunpack.c.0.s8 %v5310
        %v5312 = vlaneseq
        %v5313 = vshrl.u32 %v5312, 7
        %v5314 = vsub.s32 %v5311, %v5313
        %v5315 = vrot.slane %v5301, %v5314
        %v5316 = vcombine.low %v5251, %v5267
        %v5317 = vcombine.high %v5251, %v5267
        %v5319 = vunpack.c.l.s4 1934713408
        %v5320 = vunpack.c.0.s8 %v5319
        %v5321 = vlaneseq
        %v5322 = vshrl.u32 %v5321, 7
        %v5323 = vsub.s32 %v5320, %v5322
        %v5324 = vrot.slane %v5316, %v5323
        %v5326 = vunpack.c.l.s4 1934713408
        %v5327 = vunpack.c.0.s8 %v5326
        %v5328 = vlaneseq
        %v5329 = vshrl.u32 %v5328, 7
        %v5330 = vsub.s32 %v5327, %v5329
        %v5331 = vrot.slane %v5317, %v5330
        %v5332 = vcombine.low %v5276, %v5292
        %v5333 = vcombine.high %v5276, %v5292
        %v5335 = vunpack.c.l.s4 1934713408
        %v5336 = vunpack.c.0.s8 %v5335
        %v5337 = vlaneseq
        %v5338 = vshrl.u32 %v5337, 7
        %v5339 = vsub.s32 %v5336, %v5338
        %v5340 = vrot.slane %v5332, %v5339
        %v5342 = vunpack.c.l.s4 1934713408
        %v5343 = vunpack.c.0.s8 %v5342
        %v5344 = vlaneseq
        %v5345 = vshrl.u32 %v5344, 7
        %v5346 = vsub.s32 %v5343, %v5345
        %v5347 = vrot.slane %v5333, %v5346
        %v5348 = vcombine.low %v5283, %v5299
        %v5349 = vcombine.high %v5283, %v5299
        %v5351 = vunpack.c.l.s4 1934713408
        %v5352 = vunpack.c.0.s8 %v5351
        %v5353 = vlaneseq
        %v5354 = vshrl.u32 %v5353, 7
        %v5355 = vsub.s32 %v5352, %v5354
        %v5356 = vrot.slane %v5348, %v5355
        %v5358 = vunpack.c.l.s4 1934713408
        %v5359 = vunpack.c.0.s8 %v5358
        %v5360 = vlaneseq
        %v5361 = vshrl.u32 %v5360, 7
        %v5362 = vsub.s32 %v5359, %v5361
        %v5363 = vrot.slane %v5349, %v5362
        %v5364 = vcombine.low %v5308, %v5340
        %v5365 = vcombine.high %v5308, %v5340
        %v5366 = vcombine.low %v5315, %v5347
        %v5367 = vcombine.high %v5315, %v5347
        %v5368 = vcombine.low %v5324, %v5356
        %v5369 = vcombine.high %v5324, %v5356
        %v5370 = vcombine.low %v5331, %v5363
        %v5371 = vcombine.high %v5331, %v5363
        %v5372 = vcombine.low %v766, %v836
        %v5373 = vcombine.high %v766, %v836
        %v5375 = vunpack.c.l.s4 1983009808
        %v5376 = vunpack.c.0.s8 %v5375
        %v5377 = vlaneseq
        %v5378 = vshrl.u32 %v5377, 7
        %v5379 = vsub.s32 %v5376, %v5378
        %v5380 = vrot.slane %v5372, %v5379
        %v5382 = vunpack.c.l.s4 1983009808
        %v5383 = vunpack.c.0.s8 %v5382
        %v5384 = vlaneseq
        %v5385 = vshrl.u32 %v5384, 7
        %v5386 = vsub.s32 %v5383, %v5385
        %v5387 = vrot.slane %v5373, %v5386
        %v5388 = vcombine.low %v801, %v871
        %v5389 = vcombine.high %v801, %v871
        %v5391 = vunpack.c.l.s4 1983009808
        %v5392 = vunpack.c.0.s8 %v5391
        %v5393 = vlaneseq
        %v5394 = vshrl.u32 %v5393, 7
        %v5395 = vsub.s32 %v5392, %v5394
        %v5396 = vrot.slane %v5388, %v5395
        %v5398 = vunpack.c.l.s4 1983009808
        %v5399 = vunpack.c.0.s8 %v5398
        %v5400 = vlaneseq
        %v5401 = vshrl.u32 %v5400, 7
        %v5402 = vsub.s32 %v5399, %v5401
        %v5403 = vrot.slane %v5389, %v5402
        %v5404 = vcombine.low %v906, %v976
        %v5405 = vcombine.high %v906, %v976
        %v5407 = vunpack.c.l.s4 1983009808
        %v5408 = vunpack.c.0.s8 %v5407
        %v5409 = vlaneseq
        %v5410 = vshrl.u32 %v5409, 7
        %v5411 = vsub.s32 %v5408, %v5410
        %v5412 = vrot.slane %v5404, %v5411
        %v5414 = vunpack.c.l.s4 1983009808
        %v5415 = vunpack.c.0.s8 %v5414
        %v5416 = vlaneseq
        %v5417 = vshrl.u32 %v5416, 7
        %v5418 = vsub.s32 %v5415, %v5417
        %v5419 = vrot.slane %v5405, %v5418
        %v5420 = vcombine.low %v941, %v1011
        %v5421 = vcombine.high %v941, %v1011
        %v5423 = vunpack.c.l.s4 1983009808
        %v5424 = vunpack.c.0.s8 %v5423
        %v5425 = vlaneseq
        %v5426 = vshrl.u32 %v5425, 7
        %v5427 = vsub.s32 %v5424, %v5426
        %v5428 = vrot.slane %v5420, %v5427
        %v5430 = vunpack.c.l.s4 1983009808
        %v5431 = vunpack.c.0.s8 %v5430
        %v5432 = vlaneseq
        %v5433 = vshrl.u32 %v5432, 7
        %v5434 = vsub.s32 %v5431, %v5433
        %v5435 = vrot.slane %v5421, %v5434
        %v5436 = vcombine.low %v5380, %v5396
        %v5437 = vcombine.high %v5380, %v5396
        %v5439 = vunpack.c.l.s4 1934713408
        %v5440 = vunpack.c.0.s8 %v5439
        %v5441 = vlaneseq
        %v5442 = vshrl.u32 %v5441, 7
        %v5443 = vsub.s32 %v5440, %v5442
        %v5444 = vrot.slane %v5436, %v5443
        %v5446 = vunpack.c.l.s4 1934713408
        %v5447 = vunpack.c.0.s8 %v5446
        %v5448 = vlaneseq
        %v5449 = vshrl.u32 %v5448, 7
        %v5450 = vsub.s32 %v5447, %v5449
        %v5451 = vrot.slane %v5437, %v5450
        %v5452 = vcombine.low %v5387, %v5403
        %v5453 = vcombine.high %v5387, %v5403
        %v5455 = vunpack.c.l.s4 1934713408
        %v5456 = vunpack.c.0.s8 %v5455
        %v5457 = vlaneseq
        %v5458 = vshrl.u32 %v5457, 7
        %v5459 = vsub.s32 %v5456, %v5458
        %v5460 = vrot.slane %v5452, %v5459
        %v5462 = vunpack.c.l.s4 1934713408
        %v5463 = vunpack.c.0.s8 %v5462
        %v5464 = vlaneseq
        %v5465 = vshrl.u32 %v5464, 7
        %v5466 = vsub.s32 %v5463, %v5465
        %v5467 = vrot.slane %v5453, %v5466
        %v5468 = vcombine.low %v5412, %v5428
        %v5469 = vcombine.high %v5412, %v5428
        %v5471 = vunpack.c.l.s4 1934713408
        %v5472 = vunpack.c.0.s8 %v5471
        %v5473 = vlaneseq
        %v5474 = vshrl.u32 %v5473, 7
        %v5475 = vsub.s32 %v5472, %v5474
        %v5476 = vrot.slane %v5468, %v5475
        %v5478 = vunpack.c.l.s4 1934713408
        %v5479 = vunpack.c.0.s8 %v5478
        %v5480 = vlaneseq
        %v5481 = vshrl.u32 %v5480, 7
        %v5482 = vsub.s32 %v5479, %v5481
        %v5483 = vrot.slane %v5469, %v5482
        %v5484 = vcombine.low %v5419, %v5435
        %v5485 = vcombine.high %v5419, %v5435
        %v5487 = vunpack.c.l.s4 1934713408
        %v5488 = vunpack.c.0.s8 %v5487
        %v5489 = vlaneseq
        %v5490 = vshrl.u32 %v5489, 7
        %v5491 = vsub.s32 %v5488, %v5490
        %v5492 = vrot.slane %v5484, %v5491
        %v5494 = vunpack.c.l.s4 1934713408
        %v5495 = vunpack.c.0.s8 %v5494
        %v5496 = vlaneseq
        %v5497 = vshrl.u32 %v5496, 7
        %v5498 = vsub.s32 %v5495, %v5497
        %v5499 = vrot.slane %v5485, %v5498
        %v5500 = vcombine.low %v5444, %v5476
        %v5501 = vcombine.high %v5444, %v5476
        %v5502 = vcombine.low %v5451, %v5483
        %v5503 = vcombine.high %v5451, %v5483
        %v5504 = vcombine.low %v5460, %v5492
        %v5505 = vcombine.high %v5460, %v5492
        %v5506 = vcombine.low %v5467, %v5499
        %v5507 = vcombine.high %v5467, %v5499
        %v5508 = vcombine.low %v1046, %v1116
        %v5509 = vcombine.high %v1046, %v1116
        %v5511 = vunpack.c.l.s4 1983009808
        %v5512 = vunpack.c.0.s8 %v5511
        %v5513 = vlaneseq
        %v5514 = vshrl.u32 %v5513, 7
        %v5515 = vsub.s32 %v5512, %v5514
        %v5516 = vrot.slane %v5508, %v5515
        %v5518 = vunpack.c.l.s4 1983009808
        %v5519 = vunpack.c.0.s8 %v5518
        %v5520 = vlaneseq
        %v5521 = vshrl.u32 %v5520, 7
        %v5522 = vsub.s32 %v5519, %v5521
        %v5523 = vrot.slane %v5509, %v5522
        %v5524 = vcombine.low %v1081, %v1151
        %v5525 = vcombine.high %v1081, %v1151
        %v5527 = vunpack.c.l.s4 1983009808
        %v5528 = vunpack.c.0.s8 %v5527
        %v5529 = vlaneseq
        %v5530 = vshrl.u32 %v5529, 7
        %v5531 = vsub.s32 %v5528, %v5530
        %v5532 = vrot.slane %v5524, %v5531
        %v5534 = vunpack.c.l.s4 1983009808
        %v5535 = vunpack.c.0.s8 %v5534
        %v5536 = vlaneseq
        %v5537 = vshrl.u32 %v5536, 7
        %v5538 = vsub.s32 %v5535, %v5537
        %v5539 = vrot.slane %v5525, %v5538
        %v5540 = vcombine.low %v1186, %v1256
        %v5541 = vcombine.high %v1186, %v1256
        %v5543 = vunpack.c.l.s4 1983009808
        %v5544 = vunpack.c.0.s8 %v5543
        %v5545 = vlaneseq
        %v5546 = vshrl.u32 %v5545, 7
        %v5547 = vsub.s32 %v5544, %v5546
        %v5548 = vrot.slane %v5540, %v5547
        %v5550 = vunpack.c.l.s4 1983009808
        %v5551 = vunpack.c.0.s8 %v5550
        %v5552 = vlaneseq
        %v5553 = vshrl.u32 %v5552, 7
        %v5554 = vsub.s32 %v5551, %v5553
        %v5555 = vrot.slane %v5541, %v5554
        %v5556 = vcombine.low %v1221, %v1291
        %v5557 = vcombine.high %v1221, %v1291
        %v5559 = vunpack.c.l.s4 1983009808
        %v5560 = vunpack.c.0.s8 %v5559
        %v5561 = vlaneseq
        %v5562 = vshrl.u32 %v5561, 7
        %v5563 = vsub.s32 %v5560, %v5562
        %v5564 = vrot.slane %v5556, %v5563
        %v5566 = vunpack.c.l.s4 1983009808
        %v5567 = vunpack.c.0.s8 %v5566
        %v5568 = vlaneseq
        %v5569 = vshrl.u32 %v5568, 7
        %v5570 = vsub.s32 %v5567, %v5569
        %v5571 = vrot.slane %v5557, %v5570
        %v5572 = vcombine.low %v5516, %v5532
        %v5573 = vcombine.high %v5516, %v5532
        %v5575 = vunpack.c.l.s4 1934713408
        %v5576 = vunpack.c.0.s8 %v5575
        %v5577 = vlaneseq
        %v5578 = vshrl.u32 %v5577, 7
        %v5579 = vsub.s32 %v5576, %v5578
        %v5580 = vrot.slane %v5572, %v5579
        %v5582 = vunpack.c.l.s4 1934713408
        %v5583 = vunpack.c.0.s8 %v5582
        %v5584 = vlaneseq
        %v5585 = vshrl.u32 %v5584, 7
        %v5586 = vsub.s32 %v5583, %v5585
        %v5587 = vrot.slane %v5573, %v5586
        %v5588 = vcombine.low %v5523, %v5539
        %v5589 = vcombine.high %v5523, %v5539
        %v5591 = vunpack.c.l.s4 1934713408
        %v5592 = vunpack.c.0.s8 %v5591
        %v5593 = vlaneseq
        %v5594 = vshrl.u32 %v5593, 7
        %v5595 = vsub.s32 %v5592, %v5594
        %v5596 = vrot.slane %v5588, %v5595
        %v5598 = vunpack.c.l.s4 1934713408
        %v5599 = vunpack.c.0.s8 %v5598
        %v5600 = vlaneseq
        %v5601 = vshrl.u32 %v5600, 7
        %v5602 = vsub.s32 %v5599, %v5601
        %v5603 = vrot.slane %v5589, %v5602
        %v5604 = vcombine.low %v5548, %v5564
        %v5605 = vcombine.high %v5548, %v5564
        %v5607 = vunpack.c.l.s4 1934713408
        %v5608 = vunpack.c.0.s8 %v5607
        %v5609 = vlaneseq
        %v5610 = vshrl.u32 %v5609, 7
        %v5611 = vsub.s32 %v5608, %v5610
        %v5612 = vrot.slane %v5604, %v5611
        %v5614 = vunpack.c.l.s4 1934713408
        %v5615 = vunpack.c.0.s8 %v5614
        %v5616 = vlaneseq
        %v5617 = vshrl.u32 %v5616, 7
        %v5618 = vsub.s32 %v5615, %v5617
        %v5619 = vrot.slane %v5605, %v5618
        %v5620 = vcombine.low %v5555, %v5571
        %v5621 = vcombine.high %v5555, %v5571
        %v5623 = vunpack.c.l.s4 1934713408
        %v5624 = vunpack.c.0.s8 %v5623
        %v5625 = vlaneseq
        %v5626 = vshrl.u32 %v5625, 7
        %v5627 = vsub.s32 %v5624, %v5626
        %v5628 = vrot.slane %v5620, %v5627
        %v5630 = vunpack.c.l.s4 1934713408
        %v5631 = vunpack.c.0.s8 %v5630
        %v5632 = vlaneseq
        %v5633 = vshrl.u32 %v5632, 7
        %v5634 = vsub.s32 %v5631, %v5633
        %v5635 = vrot.slane %v5621, %v5634
        %v5636 = vcombine.low %v5580, %v5612
        %v5637 = vcombine.high %v5580, %v5612
        %v5638 = vcombine.low %v5587, %v5619
        %v5639 = vcombine.high %v5587, %v5619
        %v5640 = vcombine.low %v5596, %v5628
        %v5641 = vcombine.high %v5596, %v5628
        %v5642 = vcombine.low %v5603, %v5635
        %v5643 = vcombine.high %v5603, %v5635
        %5648 = vrot.lane.b32.xlu0 %v1421, 2
        %v5649 = vpop.permute.xlu0 %5648
        %5650 = vrot.lane.b32.xlu0 %v1557, 2
        %v5651 = vpop.permute.xlu0 %5650
        %5652 = vrot.lane.b32.xlu0 %v1693, 2
        %v5653 = vpop.permute.xlu0 %5652
        %5654 = vrot.lane.b32.xlu0 %v1829, 2
        %v5655 = vpop.permute.xlu0 %5654
        %5664 = vrot.lane.b32.xlu0 %v1422, 4
        %v5665 = vpop.permute.xlu0 %5664
        %5666 = vrot.lane.b32.xlu0 %v1558, 4
        %v5667 = vpop.permute.xlu0 %5666
        %5668 = vrot.lane.b32.xlu0 %v1694, 4
        %v5669 = vpop.permute.xlu0 %5668
        %5670 = vrot.lane.b32.xlu0 %v1830, 4
        %v5671 = vpop.permute.xlu0 %5670
        %5680 = vrot.lane.b32.xlu0 %v1423, 6
        %v5681 = vpop.permute.xlu0 %5680
        %5682 = vrot.lane.b32.xlu0 %v1559, 6
        %v5683 = vpop.permute.xlu0 %5682
        %5684 = vrot.lane.b32.xlu0 %v1695, 6
        %v5685 = vpop.permute.xlu0 %5684
        %5686 = vrot.lane.b32.xlu0 %v1831, 6
        %v5687 = vpop.permute.xlu0 %5686
        %5696 = vrot.lane.b32.xlu0 %v1424, 8
        %v5697 = vpop.permute.xlu0 %5696
        %5698 = vrot.lane.b32.xlu0 %v1560, 8
        %v5699 = vpop.permute.xlu0 %5698
        %5700 = vrot.lane.b32.xlu0 %v1696, 8
        %v5701 = vpop.permute.xlu0 %5700
        %5702 = vrot.lane.b32.xlu0 %v1832, 8
        %v5703 = vpop.permute.xlu0 %5702
        %5712 = vrot.lane.b32.xlu0 %v1425, 10
        %v5713 = vpop.permute.xlu0 %5712
        %5714 = vrot.lane.b32.xlu0 %v1561, 10
        %v5715 = vpop.permute.xlu0 %5714
        %5716 = vrot.lane.b32.xlu0 %v1697, 10
        %v5717 = vpop.permute.xlu0 %5716
        %5718 = vrot.lane.b32.xlu0 %v1833, 10
        %v5719 = vpop.permute.xlu0 %5718
        %5728 = vrot.lane.b32.xlu0 %v1426, 12
        %v5729 = vpop.permute.xlu0 %5728
        %5730 = vrot.lane.b32.xlu0 %v1562, 12
        %v5731 = vpop.permute.xlu0 %5730
        %5732 = vrot.lane.b32.xlu0 %v1698, 12
        %v5733 = vpop.permute.xlu0 %5732
        %5734 = vrot.lane.b32.xlu0 %v1834, 12
        %v5735 = vpop.permute.xlu0 %5734
        %5744 = vrot.lane.b32.xlu0 %v1427, 14
        %v5745 = vpop.permute.xlu0 %5744
        %5746 = vrot.lane.b32.xlu0 %v1563, 14
        %v5747 = vpop.permute.xlu0 %5746
        %5748 = vrot.lane.b32.xlu0 %v1699, 14
        %v5749 = vpop.permute.xlu0 %5748
        %5750 = vrot.lane.b32.xlu0 %v1835, 14
        %v5751 = vpop.permute.xlu0 %5750
        %5760 = vrot.lane.b32.xlu0 %v1964, 16
        %v5761 = vpop.permute.xlu0 %5760
        %5762 = vrot.lane.b32.xlu0 %v2100, 16
        %v5763 = vpop.permute.xlu0 %5762
        %5764 = vrot.lane.b32.xlu0 %v2236, 16
        %v5765 = vpop.permute.xlu0 %5764
        %5766 = vrot.lane.b32.xlu0 %v2372, 16
        %v5767 = vpop.permute.xlu0 %5766
        %5776 = vrot.lane.b32.xlu0 %v1965, 18
        %v5777 = vpop.permute.xlu0 %5776
        %5778 = vrot.lane.b32.xlu0 %v2101, 18
        %v5779 = vpop.permute.xlu0 %5778
        %5780 = vrot.lane.b32.xlu0 %v2237, 18
        %v5781 = vpop.permute.xlu0 %5780
        %5782 = vrot.lane.b32.xlu0 %v2373, 18
        %v5783 = vpop.permute.xlu0 %5782
        %5792 = vrot.lane.b32.xlu0 %v1966, 20
        %v5793 = vpop.permute.xlu0 %5792
        %5794 = vrot.lane.b32.xlu0 %v2102, 20
        %v5795 = vpop.permute.xlu0 %5794
        %5796 = vrot.lane.b32.xlu0 %v2238, 20
        %v5797 = vpop.permute.xlu0 %5796
        %5798 = vrot.lane.b32.xlu0 %v2374, 20
        %v5799 = vpop.permute.xlu0 %5798
        %5808 = vrot.lane.b32.xlu0 %v1967, 22
        %v5809 = vpop.permute.xlu0 %5808
        %5810 = vrot.lane.b32.xlu0 %v2103, 22
        %v5811 = vpop.permute.xlu0 %5810
        %5812 = vrot.lane.b32.xlu0 %v2239, 22
        %v5813 = vpop.permute.xlu0 %5812
        %5814 = vrot.lane.b32.xlu0 %v2375, 22
        %v5815 = vpop.permute.xlu0 %5814
        %5824 = vrot.lane.b32.xlu0 %v1968, 24
        %v5825 = vpop.permute.xlu0 %5824
        %5826 = vrot.lane.b32.xlu0 %v2104, 24
        %v5827 = vpop.permute.xlu0 %5826
        %5828 = vrot.lane.b32.xlu0 %v2240, 24
        %v5829 = vpop.permute.xlu0 %5828
        %5830 = vrot.lane.b32.xlu0 %v2376, 24
        %v5831 = vpop.permute.xlu0 %5830
        %5840 = vrot.lane.b32.xlu0 %v1969, 26
        %v5841 = vpop.permute.xlu0 %5840
        %5842 = vrot.lane.b32.xlu0 %v2105, 26
        %v5843 = vpop.permute.xlu0 %5842
        %5844 = vrot.lane.b32.xlu0 %v2241, 26
        %v5845 = vpop.permute.xlu0 %5844
        %5846 = vrot.lane.b32.xlu0 %v2377, 26
        %v5847 = vpop.permute.xlu0 %5846
        %5856 = vrot.lane.b32.xlu0 %v1970, 28
        %v5857 = vpop.permute.xlu0 %5856
        %5858 = vrot.lane.b32.xlu0 %v2106, 28
        %v5859 = vpop.permute.xlu0 %5858
        %5860 = vrot.lane.b32.xlu0 %v2242, 28
        %v5861 = vpop.permute.xlu0 %5860
        %5862 = vrot.lane.b32.xlu0 %v2378, 28
        %v5863 = vpop.permute.xlu0 %5862
        %5872 = vrot.lane.b32.xlu0 %v1971, 30
        %v5873 = vpop.permute.xlu0 %5872
        %5874 = vrot.lane.b32.xlu0 %v2107, 30
        %v5875 = vpop.permute.xlu0 %5874
        %5876 = vrot.lane.b32.xlu0 %v2243, 30
        %v5877 = vpop.permute.xlu0 %5876
        %5878 = vrot.lane.b32.xlu0 %v2379, 30
        %v5879 = vpop.permute.xlu0 %5878
        %5888 = vrot.lane.b32.xlu0 %v2508, 32
        %v5889 = vpop.permute.xlu0 %5888
        %5890 = vrot.lane.b32.xlu0 %v2644, 32
        %v5891 = vpop.permute.xlu0 %5890
        %5892 = vrot.lane.b32.xlu0 %v2780, 32
        %v5893 = vpop.permute.xlu0 %5892
        %5894 = vrot.lane.b32.xlu0 %v2916, 32
        %v5895 = vpop.permute.xlu0 %5894
        %5904 = vrot.lane.b32.xlu0 %v2509, 34
        %v5905 = vpop.permute.xlu0 %5904
        %5906 = vrot.lane.b32.xlu0 %v2645, 34
        %v5907 = vpop.permute.xlu0 %5906
        %5908 = vrot.lane.b32.xlu0 %v2781, 34
        %v5909 = vpop.permute.xlu0 %5908
        %5910 = vrot.lane.b32.xlu0 %v2917, 34
        %v5911 = vpop.permute.xlu0 %5910
        %5920 = vrot.lane.b32.xlu0 %v2510, 36
        %v5921 = vpop.permute.xlu0 %5920
        %5922 = vrot.lane.b32.xlu0 %v2646, 36
        %v5923 = vpop.permute.xlu0 %5922
        %5924 = vrot.lane.b32.xlu0 %v2782, 36
        %v5925 = vpop.permute.xlu0 %5924
        %5926 = vrot.lane.b32.xlu0 %v2918, 36
        %v5927 = vpop.permute.xlu0 %5926
        %5936 = vrot.lane.b32.xlu0 %v2511, 38
        %v5937 = vpop.permute.xlu0 %5936
        %5938 = vrot.lane.b32.xlu0 %v2647, 38
        %v5939 = vpop.permute.xlu0 %5938
        %5940 = vrot.lane.b32.xlu0 %v2783, 38
        %v5941 = vpop.permute.xlu0 %5940
        %5942 = vrot.lane.b32.xlu0 %v2919, 38
        %v5943 = vpop.permute.xlu0 %5942
        %5952 = vrot.lane.b32.xlu0 %v2512, 40
        %v5953 = vpop.permute.xlu0 %5952
        %5954 = vrot.lane.b32.xlu0 %v2648, 40
        %v5955 = vpop.permute.xlu0 %5954
        %5956 = vrot.lane.b32.xlu0 %v2784, 40
        %v5957 = vpop.permute.xlu0 %5956
        %5958 = vrot.lane.b32.xlu0 %v2920, 40
        %v5959 = vpop.permute.xlu0 %5958
        %5968 = vrot.lane.b32.xlu0 %v2513, 42
        %v5969 = vpop.permute.xlu0 %5968
        %5970 = vrot.lane.b32.xlu0 %v2649, 42
        %v5971 = vpop.permute.xlu0 %5970
        %5972 = vrot.lane.b32.xlu0 %v2785, 42
        %v5973 = vpop.permute.xlu0 %5972
        %5974 = vrot.lane.b32.xlu0 %v2921, 42
        %v5975 = vpop.permute.xlu0 %5974
        %5984 = vrot.lane.b32.xlu0 %v2514, 44
        %v5985 = vpop.permute.xlu0 %5984
        %5986 = vrot.lane.b32.xlu0 %v2650, 44
        %v5987 = vpop.permute.xlu0 %5986
        %5988 = vrot.lane.b32.xlu0 %v2786, 44
        %v5989 = vpop.permute.xlu0 %5988
        %5990 = vrot.lane.b32.xlu0 %v2922, 44
        %v5991 = vpop.permute.xlu0 %5990
        %6000 = vrot.lane.b32.xlu0 %v2515, 46
        %v6001 = vpop.permute.xlu0 %6000
        %6002 = vrot.lane.b32.xlu0 %v2651, 46
        %v6003 = vpop.permute.xlu0 %6002
        %6004 = vrot.lane.b32.xlu0 %v2787, 46
        %v6005 = vpop.permute.xlu0 %6004
        %6006 = vrot.lane.b32.xlu0 %v2923, 46
        %v6007 = vpop.permute.xlu0 %6006
        %6016 = vrot.lane.b32.xlu0 %v3052, 48
        %v6017 = vpop.permute.xlu0 %6016
        %6018 = vrot.lane.b32.xlu0 %v3188, 48
        %v6019 = vpop.permute.xlu0 %6018
        %6020 = vrot.lane.b32.xlu0 %v3324, 48
        %v6021 = vpop.permute.xlu0 %6020
        %6022 = vrot.lane.b32.xlu0 %v3460, 48
        %v6023 = vpop.permute.xlu0 %6022
        %6032 = vrot.lane.b32.xlu0 %v3053, 50
        %v6033 = vpop.permute.xlu0 %6032
        %6034 = vrot.lane.b32.xlu0 %v3189, 50
        %v6035 = vpop.permute.xlu0 %6034
        %6036 = vrot.lane.b32.xlu0 %v3325, 50
        %v6037 = vpop.permute.xlu0 %6036
        %6038 = vrot.lane.b32.xlu0 %v3461, 50
        %v6039 = vpop.permute.xlu0 %6038
        %6048 = vrot.lane.b32.xlu0 %v3054, 52
        %v6049 = vpop.permute.xlu0 %6048
        %6050 = vrot.lane.b32.xlu0 %v3190, 52
        %v6051 = vpop.permute.xlu0 %6050
        %6052 = vrot.lane.b32.xlu0 %v3326, 52
        %v6053 = vpop.permute.xlu0 %6052
        %6054 = vrot.lane.b32.xlu0 %v3462, 52
        %v6055 = vpop.permute.xlu0 %6054
        %6064 = vrot.lane.b32.xlu0 %v3055, 54
        %v6065 = vpop.permute.xlu0 %6064
        %6066 = vrot.lane.b32.xlu0 %v3191, 54
        %v6067 = vpop.permute.xlu0 %6066
        %6068 = vrot.lane.b32.xlu0 %v3327, 54
        %v6069 = vpop.permute.xlu0 %6068
        %6070 = vrot.lane.b32.xlu0 %v3463, 54
        %v6071 = vpop.permute.xlu0 %6070
        %6080 = vrot.lane.b32.xlu0 %v3056, 56
        %v6081 = vpop.permute.xlu0 %6080
        %6082 = vrot.lane.b32.xlu0 %v3192, 56
        %v6083 = vpop.permute.xlu0 %6082
        %6084 = vrot.lane.b32.xlu0 %v3328, 56
        %v6085 = vpop.permute.xlu0 %6084
        %6086 = vrot.lane.b32.xlu0 %v3464, 56
        %v6087 = vpop.permute.xlu0 %6086
        %6096 = vrot.lane.b32.xlu0 %v3057, 58
        %v6097 = vpop.permute.xlu0 %6096
        %6098 = vrot.lane.b32.xlu0 %v3193, 58
        %v6099 = vpop.permute.xlu0 %6098
        %6100 = vrot.lane.b32.xlu0 %v3329, 58
        %v6101 = vpop.permute.xlu0 %6100
        %6102 = vrot.lane.b32.xlu0 %v3465, 58
        %v6103 = vpop.permute.xlu0 %6102
        %6112 = vrot.lane.b32.xlu0 %v3058, 60
        %v6113 = vpop.permute.xlu0 %6112
        %6114 = vrot.lane.b32.xlu0 %v3194, 60
        %v6115 = vpop.permute.xlu0 %6114
        %6116 = vrot.lane.b32.xlu0 %v3330, 60
        %v6117 = vpop.permute.xlu0 %6116
        %6118 = vrot.lane.b32.xlu0 %v3466, 60
        %v6119 = vpop.permute.xlu0 %6118
        %6128 = vrot.lane.b32.xlu0 %v3059, 62
        %v6129 = vpop.permute.xlu0 %6128
        %6130 = vrot.lane.b32.xlu0 %v3195, 62
        %v6131 = vpop.permute.xlu0 %6130
        %6132 = vrot.lane.b32.xlu0 %v3331, 62
        %v6133 = vpop.permute.xlu0 %6132
        %6134 = vrot.lane.b32.xlu0 %v3467, 62
        %v6135 = vpop.permute.xlu0 %6134
        %6144 = vrot.lane.b32.xlu0 %v3596, 64
        %v6145 = vpop.permute.xlu0 %6144
        %6146 = vrot.lane.b32.xlu0 %v3732, 64
        %v6147 = vpop.permute.xlu0 %6146
        %6148 = vrot.lane.b32.xlu0 %v3868, 64
        %v6149 = vpop.permute.xlu0 %6148
        %6150 = vrot.lane.b32.xlu0 %v4004, 64
        %v6151 = vpop.permute.xlu0 %6150
        %6160 = vrot.lane.b32.xlu0 %v3597, 66
        %v6161 = vpop.permute.xlu0 %6160
        %6162 = vrot.lane.b32.xlu0 %v3733, 66
        %v6163 = vpop.permute.xlu0 %6162
        %6164 = vrot.lane.b32.xlu0 %v3869, 66
        %v6165 = vpop.permute.xlu0 %6164
        %6166 = vrot.lane.b32.xlu0 %v4005, 66
        %v6167 = vpop.permute.xlu0 %6166
        %6176 = vrot.lane.b32.xlu0 %v3598, 68
        %v6177 = vpop.permute.xlu0 %6176
        %6178 = vrot.lane.b32.xlu0 %v3734, 68
        %v6179 = vpop.permute.xlu0 %6178
        %6180 = vrot.lane.b32.xlu0 %v3870, 68
        %v6181 = vpop.permute.xlu0 %6180
        %6182 = vrot.lane.b32.xlu0 %v4006, 68
        %v6183 = vpop.permute.xlu0 %6182
        %6192 = vrot.lane.b32.xlu0 %v3599, 70
        %v6193 = vpop.permute.xlu0 %6192
        %6194 = vrot.lane.b32.xlu0 %v3735, 70
        %v6195 = vpop.permute.xlu0 %6194
        %6196 = vrot.lane.b32.xlu0 %v3871, 70
        %v6197 = vpop.permute.xlu0 %6196
        %6198 = vrot.lane.b32.xlu0 %v4007, 70
        %v6199 = vpop.permute.xlu0 %6198
        %6208 = vrot.lane.b32.xlu0 %v3600, 72
        %v6209 = vpop.permute.xlu0 %6208
        %6210 = vrot.lane.b32.xlu0 %v3736, 72
        %v6211 = vpop.permute.xlu0 %6210
        %6212 = vrot.lane.b32.xlu0 %v3872, 72
        %v6213 = vpop.permute.xlu0 %6212
        %6214 = vrot.lane.b32.xlu0 %v4008, 72
        %v6215 = vpop.permute.xlu0 %6214
        %6224 = vrot.lane.b32.xlu0 %v3601, 74
        %v6225 = vpop.permute.xlu0 %6224
        %6226 = vrot.lane.b32.xlu0 %v3737, 74
        %v6227 = vpop.permute.xlu0 %6226
        %6228 = vrot.lane.b32.xlu0 %v3873, 74
        %v6229 = vpop.permute.xlu0 %6228
        %6230 = vrot.lane.b32.xlu0 %v4009, 74
        %v6231 = vpop.permute.xlu0 %6230
        %6240 = vrot.lane.b32.xlu0 %v3602, 76
        %v6241 = vpop.permute.xlu0 %6240
        %6242 = vrot.lane.b32.xlu0 %v3738, 76
        %v6243 = vpop.permute.xlu0 %6242
        %6244 = vrot.lane.b32.xlu0 %v3874, 76
        %v6245 = vpop.permute.xlu0 %6244
        %6246 = vrot.lane.b32.xlu0 %v4010, 76
        %v6247 = vpop.permute.xlu0 %6246
        %6256 = vrot.lane.b32.xlu0 %v3603, 78
        %v6257 = vpop.permute.xlu0 %6256
        %6258 = vrot.lane.b32.xlu0 %v3739, 78
        %v6259 = vpop.permute.xlu0 %6258
        %6260 = vrot.lane.b32.xlu0 %v3875, 78
        %v6261 = vpop.permute.xlu0 %6260
        %6262 = vrot.lane.b32.xlu0 %v4011, 78
        %v6263 = vpop.permute.xlu0 %6262
        %6272 = vrot.lane.b32.xlu0 %v4140, 80
        %v6273 = vpop.permute.xlu0 %6272
        %6274 = vrot.lane.b32.xlu0 %v4276, 80
        %v6275 = vpop.permute.xlu0 %6274
        %6276 = vrot.lane.b32.xlu0 %v4412, 80
        %v6277 = vpop.permute.xlu0 %6276
        %6278 = vrot.lane.b32.xlu0 %v4548, 80
        %v6279 = vpop.permute.xlu0 %6278
        %6288 = vrot.lane.b32.xlu0 %v4141, 82
        %v6289 = vpop.permute.xlu0 %6288
        %6290 = vrot.lane.b32.xlu0 %v4277, 82
        %v6291 = vpop.permute.xlu0 %6290
        %6292 = vrot.lane.b32.xlu0 %v4413, 82
        %v6293 = vpop.permute.xlu0 %6292
        %6294 = vrot.lane.b32.xlu0 %v4549, 82
        %v6295 = vpop.permute.xlu0 %6294
        %6304 = vrot.lane.b32.xlu0 %v4142, 84
        %v6305 = vpop.permute.xlu0 %6304
        %6306 = vrot.lane.b32.xlu0 %v4278, 84
        %v6307 = vpop.permute.xlu0 %6306
        %6308 = vrot.lane.b32.xlu0 %v4414, 84
        %v6309 = vpop.permute.xlu0 %6308
        %6310 = vrot.lane.b32.xlu0 %v4550, 84
        %v6311 = vpop.permute.xlu0 %6310
        %6320 = vrot.lane.b32.xlu0 %v4143, 86
        %v6321 = vpop.permute.xlu0 %6320
        %6322 = vrot.lane.b32.xlu0 %v4279, 86
        %v6323 = vpop.permute.xlu0 %6322
        %6324 = vrot.lane.b32.xlu0 %v4415, 86
        %v6325 = vpop.permute.xlu0 %6324
        %6326 = vrot.lane.b32.xlu0 %v4551, 86
        %v6327 = vpop.permute.xlu0 %6326
        %6336 = vrot.lane.b32.xlu0 %v4144, 88
        %v6337 = vpop.permute.xlu0 %6336
        %6338 = vrot.lane.b32.xlu0 %v4280, 88
        %v6339 = vpop.permute.xlu0 %6338
        %6340 = vrot.lane.b32.xlu0 %v4416, 88
        %v6341 = vpop.permute.xlu0 %6340
        %6342 = vrot.lane.b32.xlu0 %v4552, 88
        %v6343 = vpop.permute.xlu0 %6342
        %6352 = vrot.lane.b32.xlu0 %v4145, 90
        %v6353 = vpop.permute.xlu0 %6352
        %6354 = vrot.lane.b32.xlu0 %v4281, 90
        %v6355 = vpop.permute.xlu0 %6354
        %6356 = vrot.lane.b32.xlu0 %v4417, 90
        %v6357 = vpop.permute.xlu0 %6356
        %6358 = vrot.lane.b32.xlu0 %v4553, 90
        %v6359 = vpop.permute.xlu0 %6358
        %6368 = vrot.lane.b32.xlu0 %v4146, 92
        %v6369 = vpop.permute.xlu0 %6368
        %6370 = vrot.lane.b32.xlu0 %v4282, 92
        %v6371 = vpop.permute.xlu0 %6370
        %6372 = vrot.lane.b32.xlu0 %v4418, 92
        %v6373 = vpop.permute.xlu0 %6372
        %6374 = vrot.lane.b32.xlu0 %v4554, 92
        %v6375 = vpop.permute.xlu0 %6374
        %6384 = vrot.lane.b32.xlu0 %v4147, 94
        %v6385 = vpop.permute.xlu0 %6384
        %6386 = vrot.lane.b32.xlu0 %v4283, 94
        %v6387 = vpop.permute.xlu0 %6386
        %6388 = vrot.lane.b32.xlu0 %v4419, 94
        %v6389 = vpop.permute.xlu0 %6388
        %6390 = vrot.lane.b32.xlu0 %v4555, 94
        %v6391 = vpop.permute.xlu0 %6390
        %6400 = vrot.lane.b32.xlu0 %v4684, 96
        %v6401 = vpop.permute.xlu0 %6400
        %6402 = vrot.lane.b32.xlu0 %v4820, 96
        %v6403 = vpop.permute.xlu0 %6402
        %6404 = vrot.lane.b32.xlu0 %v4956, 96
        %v6405 = vpop.permute.xlu0 %6404
        %6406 = vrot.lane.b32.xlu0 %v5092, 96
        %v6407 = vpop.permute.xlu0 %6406
        %6416 = vrot.lane.b32.xlu0 %v4685, 98
        %v6417 = vpop.permute.xlu0 %6416
        %6418 = vrot.lane.b32.xlu0 %v4821, 98
        %v6419 = vpop.permute.xlu0 %6418
        %6420 = vrot.lane.b32.xlu0 %v4957, 98
        %v6421 = vpop.permute.xlu0 %6420
        %6422 = vrot.lane.b32.xlu0 %v5093, 98
        %v6423 = vpop.permute.xlu0 %6422
        %6432 = vrot.lane.b32.xlu0 %v4686, 100
        %v6433 = vpop.permute.xlu0 %6432
        %6434 = vrot.lane.b32.xlu0 %v4822, 100
        %v6435 = vpop.permute.xlu0 %6434
        %6436 = vrot.lane.b32.xlu0 %v4958, 100
        %v6437 = vpop.permute.xlu0 %6436
        %6438 = vrot.lane.b32.xlu0 %v5094, 100
        %v6439 = vpop.permute.xlu0 %6438
        %6448 = vrot.lane.b32.xlu0 %v4687, 102
        %v6449 = vpop.permute.xlu0 %6448
        %6450 = vrot.lane.b32.xlu0 %v4823, 102
        %v6451 = vpop.permute.xlu0 %6450
        %6452 = vrot.lane.b32.xlu0 %v4959, 102
        %v6453 = vpop.permute.xlu0 %6452
        %6454 = vrot.lane.b32.xlu0 %v5095, 102
        %v6455 = vpop.permute.xlu0 %6454
        %6464 = vrot.lane.b32.xlu0 %v4688, 104
        %v6465 = vpop.permute.xlu0 %6464
        %6466 = vrot.lane.b32.xlu0 %v4824, 104
        %v6467 = vpop.permute.xlu0 %6466
        %6468 = vrot.lane.b32.xlu0 %v4960, 104
        %v6469 = vpop.permute.xlu0 %6468
        %6470 = vrot.lane.b32.xlu0 %v5096, 104
        %v6471 = vpop.permute.xlu0 %6470
        %6480 = vrot.lane.b32.xlu0 %v4689, 106
        %v6481 = vpop.permute.xlu0 %6480
        %6482 = vrot.lane.b32.xlu0 %v4825, 106
        %v6483 = vpop.permute.xlu0 %6482
        %6484 = vrot.lane.b32.xlu0 %v4961, 106
        %v6485 = vpop.permute.xlu0 %6484
        %6486 = vrot.lane.b32.xlu0 %v5097, 106
        %v6487 = vpop.permute.xlu0 %6486
        %6496 = vrot.lane.b32.xlu0 %v4690, 108
        %v6497 = vpop.permute.xlu0 %6496
        %6498 = vrot.lane.b32.xlu0 %v4826, 108
        %v6499 = vpop.permute.xlu0 %6498
        %6500 = vrot.lane.b32.xlu0 %v4962, 108
        %v6501 = vpop.permute.xlu0 %6500
        %6502 = vrot.lane.b32.xlu0 %v5098, 108
        %v6503 = vpop.permute.xlu0 %6502
        %6512 = vrot.lane.b32.xlu0 %v4691, 110
        %v6513 = vpop.permute.xlu0 %6512
        %6514 = vrot.lane.b32.xlu0 %v4827, 110
        %v6515 = vpop.permute.xlu0 %6514
        %6516 = vrot.lane.b32.xlu0 %v4963, 110
        %v6517 = vpop.permute.xlu0 %6516
        %6518 = vrot.lane.b32.xlu0 %v5099, 110
        %v6519 = vpop.permute.xlu0 %6518
        %6528 = vrot.lane.b32.xlu0 %v5228, 112
        %v6529 = vpop.permute.xlu0 %6528
        %6530 = vrot.lane.b32.xlu0 %v5364, 112
        %v6531 = vpop.permute.xlu0 %6530
        %6532 = vrot.lane.b32.xlu0 %v5500, 112
        %v6533 = vpop.permute.xlu0 %6532
        %6534 = vrot.lane.b32.xlu0 %v5636, 112
        %v6535 = vpop.permute.xlu0 %6534
        %6544 = vrot.lane.b32.xlu0 %v5229, 114
        %v6545 = vpop.permute.xlu0 %6544
        %6546 = vrot.lane.b32.xlu0 %v5365, 114
        %v6547 = vpop.permute.xlu0 %6546
        %6548 = vrot.lane.b32.xlu0 %v5501, 114
        %v6549 = vpop.permute.xlu0 %6548
        %6550 = vrot.lane.b32.xlu0 %v5637, 114
        %v6551 = vpop.permute.xlu0 %6550
        %6560 = vrot.lane.b32.xlu0 %v5230, 116
        %v6561 = vpop.permute.xlu0 %6560
        %6562 = vrot.lane.b32.xlu0 %v5366, 116
        %v6563 = vpop.permute.xlu0 %6562
        %6564 = vrot.lane.b32.xlu0 %v5502, 116
        %v6565 = vpop.permute.xlu0 %6564
        %6566 = vrot.lane.b32.xlu0 %v5638, 116
        %v6567 = vpop.permute.xlu0 %6566
        %6576 = vrot.lane.b32.xlu0 %v5231, 118
        %v6577 = vpop.permute.xlu0 %6576
        %6578 = vrot.lane.b32.xlu0 %v5367, 118
        %v6579 = vpop.permute.xlu0 %6578
        %6580 = vrot.lane.b32.xlu0 %v5503, 118
        %v6581 = vpop.permute.xlu0 %6580
        %6582 = vrot.lane.b32.xlu0 %v5639, 118
        %v6583 = vpop.permute.xlu0 %6582
        %6592 = vrot.lane.b32.xlu0 %v5232, 120
        %v6593 = vpop.permute.xlu0 %6592
        %6594 = vrot.lane.b32.xlu0 %v5368, 120
        %v6595 = vpop.permute.xlu0 %6594
        %6596 = vrot.lane.b32.xlu0 %v5504, 120
        %v6597 = vpop.permute.xlu0 %6596
        %6598 = vrot.lane.b32.xlu0 %v5640, 120
        %v6599 = vpop.permute.xlu0 %6598
        %6608 = vrot.lane.b32.xlu0 %v5233, 122
        %v6609 = vpop.permute.xlu0 %6608
        %6610 = vrot.lane.b32.xlu0 %v5369, 122
        %v6611 = vpop.permute.xlu0 %6610
        %6612 = vrot.lane.b32.xlu0 %v5505, 122
        %v6613 = vpop.permute.xlu0 %6612
        %6614 = vrot.lane.b32.xlu0 %v5641, 122
        %v6615 = vpop.permute.xlu0 %6614
        %6624 = vrot.lane.b32.xlu0 %v5234, 124
        %v6625 = vpop.permute.xlu0 %6624
        %6626 = vrot.lane.b32.xlu0 %v5370, 124
        %v6627 = vpop.permute.xlu0 %6626
        %6628 = vrot.lane.b32.xlu0 %v5506, 124
        %v6629 = vpop.permute.xlu0 %6628
        %6630 = vrot.lane.b32.xlu0 %v5642, 124
        %v6631 = vpop.permute.xlu0 %6630
        %6640 = vrot.lane.b32.xlu0 %v5235, 126
        %v6641 = vpop.permute.xlu0 %6640
        %6642 = vrot.lane.b32.xlu0 %v5371, 126
        %v6643 = vpop.permute.xlu0 %6642
        %6644 = vrot.lane.b32.xlu0 %v5507, 126
        %v6645 = vpop.permute.xlu0 %6644
        %6646 = vrot.lane.b32.xlu0 %v5643, 126
        %v6647 = vpop.permute.xlu0 %6646
        %vm6652 = vcmask 15360
        %v6653 = vsel %vm6652, %v1420, %v5649
        %v6654 = vsel %vm6652, %v1556, %v5651
        %v6655 = vsel %vm6652, %v1692, %v5653
        %v6656 = vsel %vm6652, %v1828, %v5655
        %vm6657 = vcmask 31744
        %v6658 = vsel %vm6657, %v6653, %v5665
        %v6659 = vsel %vm6657, %v6654, %v5667
        %v6660 = vsel %vm6657, %v6655, %v5669
        %v6661 = vsel %vm6657, %v6656, %v5671
        %vm6662 = vcmask 48128
        %v6663 = vsel %vm6662, %v6658, %v5681
        %v6664 = vsel %vm6662, %v6659, %v5683
        %v6665 = vsel %vm6662, %v6660, %v5685
        %v6666 = vsel %vm6662, %v6661, %v5687
        %vm6667 = vcmask 64512
        %v6668 = vsel %vm6667, %v6663, %v5697
        %v6669 = vsel %vm6667, %v6664, %v5699
        %v6670 = vsel %vm6667, %v6665, %v5701
        %v6671 = vsel %vm6667, %v6666, %v5703
        %vm6672 = vcmask 80896
        %v6673 = vsel %vm6672, %v6668, %v5713
        %v6674 = vsel %vm6672, %v6669, %v5715
        %v6675 = vsel %vm6672, %v6670, %v5717
        %v6676 = vsel %vm6672, %v6671, %v5719
        %vm6677 = vcmask 97280
        %v6678 = vsel %vm6677, %v6673, %v5729
        %v6679 = vsel %vm6677, %v6674, %v5731
        %v6680 = vsel %vm6677, %v6675, %v5733
        %v6681 = vsel %vm6677, %v6676, %v5735
        %vm6682 = vcmask 113664
        %v6683 = vsel %vm6682, %v6678, %v5745
        %v6684 = vsel %vm6682, %v6679, %v5747
        %v6685 = vsel %vm6682, %v6680, %v5749
        %v6686 = vsel %vm6682, %v6681, %v5751
        %v6687 = vsel %vm157, %v6683, %v5761
        %v6688 = vsel %vm157, %v6684, %v5763
        %v6689 = vsel %vm157, %v6685, %v5765
        %v6690 = vsel %vm157, %v6686, %v5767
        %vm6691 = vcmask 146432
        %v6692 = vsel %vm6691, %v6687, %v5777
        %v6693 = vsel %vm6691, %v6688, %v5779
        %v6694 = vsel %vm6691, %v6689, %v5781
        %v6695 = vsel %vm6691, %v6690, %v5783
        %vm6696 = vcmask 162816
        %v6697 = vsel %vm6696, %v6692, %v5793
        %v6698 = vsel %vm6696, %v6693, %v5795
        %v6699 = vsel %vm6696, %v6694, %v5797
        %v6700 = vsel %vm6696, %v6695, %v5799
        %vm6701 = vcmask 179200
        %v6702 = vsel %vm6701, %v6697, %v5809
        %v6703 = vsel %vm6701, %v6698, %v5811
        %v6704 = vsel %vm6701, %v6699, %v5813
        %v6705 = vsel %vm6701, %v6700, %v5815
        %vm6706 = vcmask 195584
        %v6707 = vsel %vm6706, %v6702, %v5825
        %v6708 = vsel %vm6706, %v6703, %v5827
        %v6709 = vsel %vm6706, %v6704, %v5829
        %v6710 = vsel %vm6706, %v6705, %v5831
        %vm6711 = vcmask 211968
        %v6712 = vsel %vm6711, %v6707, %v5841
        %v6713 = vsel %vm6711, %v6708, %v5843
        %v6714 = vsel %vm6711, %v6709, %v5845
        %v6715 = vsel %vm6711, %v6710, %v5847
        %vm6716 = vcmask 228352
        %v6717 = vsel %vm6716, %v6712, %v5857
        %v6718 = vsel %vm6716, %v6713, %v5859
        %v6719 = vsel %vm6716, %v6714, %v5861
        %v6720 = vsel %vm6716, %v6715, %v5863
        %vm6721 = vcmask 244736
        %v6722 = vsel %vm6721, %v6717, %v5873
        %v6723 = vsel %vm6721, %v6718, %v5875
        %v6724 = vsel %vm6721, %v6719, %v5877
        %v6725 = vsel %vm6721, %v6720, %v5879
        %v6726 = vsel %vm162, %v6722, %v5889
        %v6727 = vsel %vm162, %v6723, %v5891
        %v6728 = vsel %vm162, %v6724, %v5893
        %v6729 = vsel %vm162, %v6725, %v5895
        %vm6730 = vcmask 277504
        %v6731 = vsel %vm6730, %v6726, %v5905
        %v6732 = vsel %vm6730, %v6727, %v5907
        %v6733 = vsel %vm6730, %v6728, %v5909
        %v6734 = vsel %vm6730, %v6729, %v5911
        %vm6735 = vcmask 293888
        %v6736 = vsel %vm6735, %v6731, %v5921
        %v6737 = vsel %vm6735, %v6732, %v5923
        %v6738 = vsel %vm6735, %v6733, %v5925
        %v6739 = vsel %vm6735, %v6734, %v5927
        %vm6740 = vcmask 310272
        %v6741 = vsel %vm6740, %v6736, %v5937
        %v6742 = vsel %vm6740, %v6737, %v5939
        %v6743 = vsel %vm6740, %v6738, %v5941
        %v6744 = vsel %vm6740, %v6739, %v5943
        %vm6745 = vcmask 326656
        %v6746 = vsel %vm6745, %v6741, %v5953
        %v6747 = vsel %vm6745, %v6742, %v5955
        %v6748 = vsel %vm6745, %v6743, %v5957
        %v6749 = vsel %vm6745, %v6744, %v5959
        %vm6750 = vcmask 343040
        %v6751 = vsel %vm6750, %v6746, %v5969
        %v6752 = vsel %vm6750, %v6747, %v5971
        %v6753 = vsel %vm6750, %v6748, %v5973
        %v6754 = vsel %vm6750, %v6749, %v5975
        %vm6755 = vcmask 359424
        %v6756 = vsel %vm6755, %v6751, %v5985
        %v6757 = vsel %vm6755, %v6752, %v5987
        %v6758 = vsel %vm6755, %v6753, %v5989
        %v6759 = vsel %vm6755, %v6754, %v5991
        %vm6760 = vcmask 375808
        %v6761 = vsel %vm6760, %v6756, %v6001
        %v6762 = vsel %vm6760, %v6757, %v6003
        %v6763 = vsel %vm6760, %v6758, %v6005
        %v6764 = vsel %vm6760, %v6759, %v6007
        %v6765 = vsel %vm167, %v6761, %v6017
        %v6766 = vsel %vm167, %v6762, %v6019
        %v6767 = vsel %vm167, %v6763, %v6021
        %v6768 = vsel %vm167, %v6764, %v6023
        %vm6769 = vcmask 408576
        %v6770 = vsel %vm6769, %v6765, %v6033
        %v6771 = vsel %vm6769, %v6766, %v6035
        %v6772 = vsel %vm6769, %v6767, %v6037
        %v6773 = vsel %vm6769, %v6768, %v6039
        %vm6774 = vcmask 424960
        %v6775 = vsel %vm6774, %v6770, %v6049
        %v6776 = vsel %vm6774, %v6771, %v6051
        %v6777 = vsel %vm6774, %v6772, %v6053
        %v6778 = vsel %vm6774, %v6773, %v6055
        %vm6779 = vcmask 441344
        %v6780 = vsel %vm6779, %v6775, %v6065
        %v6781 = vsel %vm6779, %v6776, %v6067
        %v6782 = vsel %vm6779, %v6777, %v6069
        %v6783 = vsel %vm6779, %v6778, %v6071
        %vm6784 = vcmask 457728
        %v6785 = vsel %vm6784, %v6780, %v6081
        %v6786 = vsel %vm6784, %v6781, %v6083
        %v6787 = vsel %vm6784, %v6782, %v6085
        %v6788 = vsel %vm6784, %v6783, %v6087
        %vm6789 = vcmask 474112
        %v6790 = vsel %vm6789, %v6785, %v6097
        %v6791 = vsel %vm6789, %v6786, %v6099
        %v6792 = vsel %vm6789, %v6787, %v6101
        %v6793 = vsel %vm6789, %v6788, %v6103
        %vm6794 = vcmask 490496
        %v6795 = vsel %vm6794, %v6790, %v6113
        %v6796 = vsel %vm6794, %v6791, %v6115
        %v6797 = vsel %vm6794, %v6792, %v6117
        %v6798 = vsel %vm6794, %v6793, %v6119
        %vm6799 = vcmask 506880
        %v6800 = vsel %vm6799, %v6795, %v6129
        %v6801 = vsel %vm6799, %v6796, %v6131
        %v6802 = vsel %vm6799, %v6797, %v6133
        %v6803 = vsel %vm6799, %v6798, %v6135
        %vm6804 = vcmask 523264
        %v6805 = vsel %vm6804, %v6800, %v6145
        %v6806 = vsel %vm6804, %v6801, %v6147
        %v6807 = vsel %vm6804, %v6802, %v6149
        %v6808 = vsel %vm6804, %v6803, %v6151
        %vm6809 = vcmask 539648
        %v6810 = vsel %vm6809, %v6805, %v6161
        %v6811 = vsel %vm6809, %v6806, %v6163
        %v6812 = vsel %vm6809, %v6807, %v6165
        %v6813 = vsel %vm6809, %v6808, %v6167
        %vm6814 = vcmask 556032
        %v6815 = vsel %vm6814, %v6810, %v6177
        %v6816 = vsel %vm6814, %v6811, %v6179
        %v6817 = vsel %vm6814, %v6812, %v6181
        %v6818 = vsel %vm6814, %v6813, %v6183
        %vm6819 = vcmask 572416
        %v6820 = vsel %vm6819, %v6815, %v6193
        %v6821 = vsel %vm6819, %v6816, %v6195
        %v6822 = vsel %vm6819, %v6817, %v6197
        %v6823 = vsel %vm6819, %v6818, %v6199
        %vm6824 = vcmask 588800
        %v6825 = vsel %vm6824, %v6820, %v6209
        %v6826 = vsel %vm6824, %v6821, %v6211
        %v6827 = vsel %vm6824, %v6822, %v6213
        %v6828 = vsel %vm6824, %v6823, %v6215
        %vm6829 = vcmask 605184
        %v6830 = vsel %vm6829, %v6825, %v6225
        %v6831 = vsel %vm6829, %v6826, %v6227
        %v6832 = vsel %vm6829, %v6827, %v6229
        %v6833 = vsel %vm6829, %v6828, %v6231
        %vm6834 = vcmask 621568
        %v6835 = vsel %vm6834, %v6830, %v6241
        %v6836 = vsel %vm6834, %v6831, %v6243
        %v6837 = vsel %vm6834, %v6832, %v6245
        %v6838 = vsel %vm6834, %v6833, %v6247
        %vm6839 = vcmask 637952
        %v6840 = vsel %vm6839, %v6835, %v6257
        %v6841 = vsel %vm6839, %v6836, %v6259
        %v6842 = vsel %vm6839, %v6837, %v6261
        %v6843 = vsel %vm6839, %v6838, %v6263
        %vm6844 = vcmask 654336
        %v6845 = vsel %vm6844, %v6840, %v6273
        %v6846 = vsel %vm6844, %v6841, %v6275
        %v6847 = vsel %vm6844, %v6842, %v6277
        %v6848 = vsel %vm6844, %v6843, %v6279
        %vm6849 = vcmask 670720
        %v6850 = vsel %vm6849, %v6845, %v6289
        %v6851 = vsel %vm6849, %v6846, %v6291
        %v6852 = vsel %vm6849, %v6847, %v6293
        %v6853 = vsel %vm6849, %v6848, %v6295
        %vm6854 = vcmask 687104
        %v6855 = vsel %vm6854, %v6850, %v6305
        %v6856 = vsel %vm6854, %v6851, %v6307
        %v6857 = vsel %vm6854, %v6852, %v6309
        %v6858 = vsel %vm6854, %v6853, %v6311
        %vm6859 = vcmask 703488
        %v6860 = vsel %vm6859, %v6855, %v6321
        %v6861 = vsel %vm6859, %v6856, %v6323
        %v6862 = vsel %vm6859, %v6857, %v6325
        %v6863 = vsel %vm6859, %v6858, %v6327
        %vm6864 = vcmask 719872
        %v6865 = vsel %vm6864, %v6860, %v6337
        %v6866 = vsel %vm6864, %v6861, %v6339
        %v6867 = vsel %vm6864, %v6862, %v6341
        %v6868 = vsel %vm6864, %v6863, %v6343
        %vm6869 = vcmask 736256
        %v6870 = vsel %vm6869, %v6865, %v6353
        %v6871 = vsel %vm6869, %v6866, %v6355
        %v6872 = vsel %vm6869, %v6867, %v6357
        %v6873 = vsel %vm6869, %v6868, %v6359
        %vm6874 = vcmask 752640
        %v6875 = vsel %vm6874, %v6870, %v6369
        %v6876 = vsel %vm6874, %v6871, %v6371
        %v6877 = vsel %vm6874, %v6872, %v6373
        %v6878 = vsel %vm6874, %v6873, %v6375
        %vm6879 = vcmask 769024
        %v6880 = vsel %vm6879, %v6875, %v6385
        %v6881 = vsel %vm6879, %v6876, %v6387
        %v6882 = vsel %vm6879, %v6877, %v6389
        %v6883 = vsel %vm6879, %v6878, %v6391
        %vm6884 = vcmask 785408
        %v6885 = vsel %vm6884, %v6880, %v6401
        %v6886 = vsel %vm6884, %v6881, %v6403
        %v6887 = vsel %vm6884, %v6882, %v6405
        %v6888 = vsel %vm6884, %v6883, %v6407
        %vm6889 = vcmask 801792
        %v6890 = vsel %vm6889, %v6885, %v6417
        %v6891 = vsel %vm6889, %v6886, %v6419
        %v6892 = vsel %vm6889, %v6887, %v6421
        %v6893 = vsel %vm6889, %v6888, %v6423
        %vm6894 = vcmask 818176
        %v6895 = vsel %vm6894, %v6890, %v6433
        %v6896 = vsel %vm6894, %v6891, %v6435
        %v6897 = vsel %vm6894, %v6892, %v6437
        %v6898 = vsel %vm6894, %v6893, %v6439
        %vm6899 = vcmask 834560
        %v6900 = vsel %vm6899, %v6895, %v6449
        %v6901 = vsel %vm6899, %v6896, %v6451
        %v6902 = vsel %vm6899, %v6897, %v6453
        %v6903 = vsel %vm6899, %v6898, %v6455
        %vm6904 = vcmask 850944
        %v6905 = vsel %vm6904, %v6900, %v6465
        %v6906 = vsel %vm6904, %v6901, %v6467
        %v6907 = vsel %vm6904, %v6902, %v6469
        %v6908 = vsel %vm6904, %v6903, %v6471
        %vm6909 = vcmask 867328
        %v6910 = vsel %vm6909, %v6905, %v6481
        %v6911 = vsel %vm6909, %v6906, %v6483
        %v6912 = vsel %vm6909, %v6907, %v6485
        %v6913 = vsel %vm6909, %v6908, %v6487
        %vm6914 = vcmask 883712
        %v6915 = vsel %vm6914, %v6910, %v6497
        %v6916 = vsel %vm6914, %v6911, %v6499
        %v6917 = vsel %vm6914, %v6912, %v6501
        %v6918 = vsel %vm6914, %v6913, %v6503
        %vm6919 = vcmask 900096
        %v6920 = vsel %vm6919, %v6915, %v6513
        %v6921 = vsel %vm6919, %v6916, %v6515
        %v6922 = vsel %vm6919, %v6917, %v6517
        %v6923 = vsel %vm6919, %v6918, %v6519
        %vm6924 = vcmask 916480
        %v6925 = vsel %vm6924, %v6920, %v6529
        %v6926 = vsel %vm6924, %v6921, %v6531
        %v6927 = vsel %vm6924, %v6922, %v6533
        %v6928 = vsel %vm6924, %v6923, %v6535
        %vm6929 = vcmask 932864
        %v6930 = vsel %vm6929, %v6925, %v6545
        %v6931 = vsel %vm6929, %v6926, %v6547
        %v6932 = vsel %vm6929, %v6927, %v6549
        %v6933 = vsel %vm6929, %v6928, %v6551
        %vm6934 = vcmask 949248
        %v6935 = vsel %vm6934, %v6930, %v6561
        %v6936 = vsel %vm6934, %v6931, %v6563
        %v6937 = vsel %vm6934, %v6932, %v6565
        %v6938 = vsel %vm6934, %v6933, %v6567
        %vm6939 = vcmask 965632
        %v6940 = vsel %vm6939, %v6935, %v6577
        %v6941 = vsel %vm6939, %v6936, %v6579
        %v6942 = vsel %vm6939, %v6937, %v6581
        %v6943 = vsel %vm6939, %v6938, %v6583
        %vm6944 = vcmask 982016
        %v6945 = vsel %vm6944, %v6940, %v6593
        %v6946 = vsel %vm6944, %v6941, %v6595
        %v6947 = vsel %vm6944, %v6942, %v6597
        %v6948 = vsel %vm6944, %v6943, %v6599
        %vm6949 = vcmask 998400
        %v6950 = vsel %vm6949, %v6945, %v6609
        %v6951 = vsel %vm6949, %v6946, %v6611
        %v6952 = vsel %vm6949, %v6947, %v6613
        %v6953 = vsel %vm6949, %v6948, %v6615
        %vm6954 = vcmask 1014784
        %v6955 = vsel %vm6954, %v6950, %v6625
        %v6956 = vsel %vm6954, %v6951, %v6627
        %v6957 = vsel %vm6954, %v6952, %v6629
        %v6958 = vsel %vm6954, %v6953, %v6631
        %vm6959 = vcmask 1031168
        %v6960 = vsel %vm6959, %v6955, %v6641
        %v6961 = vsel %vm6959, %v6956, %v6643
        %v6962 = vsel %vm6959, %v6957, %v6645
        %v6963 = vsel %vm6959, %v6958, %v6647
        %s6964 = sld [smem:[#allocation3]]
        %s6965 = sld [smem:[#allocation3 + $0x1]]
        %s6966 = sld [smem:[#allocation3 + $0x2]]
        %s6967 = sld [smem:[#allocation3 + $0x3]]
        %v6968 = vlaneseq
        %v6969 = vand.u32 %v6968, 127
        %v6970 = vand.u32 %v6969, 1
        %vm6971 = vcmp.eq.s32.totalorder %v6970, 1
        %v6972 = vstv %s6965
        %v6973 = vstv %s6964
        %v6974 = vsel %vm6971, %v6972, %v6973
        %v6975 = vstv %s6967
        %v6976 = vstv %s6966
        %v6977 = vsel %vm6971, %v6975, %v6976
        %6979 = vrot.lane.b32.xlu0 %v6977, 32
        %v6980 = vpop.permute.xlu0 %6979
        %v6982 = vsel %vm162, %v6974, %v6980
        %6984 = vrot.lane.b32.xlu0 %v6982, 64
        %v6985 = vpop.permute.xlu0 %6984
        %v6987 = vsel %vm6804, %v6982, %v6985
        %v6988 = vlaneseq
        %v6989 = vshrl.u32 %v6988, 7
        %v6990 = vsub.s32 0, %v6989
        %v6991 = vrot.slane %v6987, %v6990
        %v6992 = vmul.f32 %v6960, %v6991
        %v6993 = vmul.f32 %v6961, %v6991
        %v6994 = vmul.f32 %v6962, %v6991
        %v6995 = vmul.f32 %v6963, %v6991
        %6996 = vst [vmem:[%s117] sm:$0xff] %v6992
        %6997 = vst [vmem:[%s117 + $0x8] sm:$0xff] %v6993
        %6998 = vst [vmem:[%s117 + $0x10] sm:$0xff] %v6994
        %6999 = vst [vmem:[%s117 + $0x18] sm:$0xff] %v6995
        %s7000 = sand.u32 %s56, 1
        %s7001 = scalar_lea.sflag [#allocation5], %s7000
        %s7002 = sand.u32 %s56, 1
        %s7003 = smul.addr %s7002, 32
        %s7004 = scalar_lea.vmem [#allocation4], %s7003
        // Predicated region
        $region25: #{tpu_custom_call.1} parent=23 // pred_check
          %p7005 = pneg %p66
        $region26: #{tpu_custom_call.1} parent=23 // pred_check_branch
          %7007 = sbr.rel (%p7005) target = $region28
        $region27: #{tpu_custom_call.1} parent=23 // pred_region
          %s7008 = smul.u32 4, %s22
          %s7010 = ssub.s32 512, 512
          %7011 = vsyncadd %s7001, %s7010
          %s7012 = smul.addr %s7008, 128
          %s7013 = scalar_lea.hbm %s2, %s7012
          %s7014 = sshll.u32 %s7004, 4
          %s7015 = int_to_ptr.vmem [resolvable:$true] %s7014
          %7020 = dma.vmem_to_hbm [thread:$0]  %s7015, 512, %s7013, %s7001, 128, 128, 8
        $region28: #{tpu_custom_call.1} parent=23 // pred_fallthru
          _
      $region24: #{tpu_custom_call.1} parent=5 // pred_fallthru
        _
      %p7021 = scmp.le.s32.totalorder 2, %s17
      // Predicated region
      $region29: #{tpu_custom_call.1} parent=5 // pred_check
        %p7022 = pneg %p7021
      $region30: #{tpu_custom_call.1} parent=5 // pred_check_branch
        %7024 = sbr.rel (%p7022) target = $region32
      $region31: #{tpu_custom_call.1} parent=5 // pred_region
        %s7025 = ssub.s32 %s17, 2
        // Predicated region
        $region33: #{tpu_custom_call.1} parent=31 // pred_check
          %p7026 = pneg %p72
        $region34: #{tpu_custom_call.1} parent=31 // pred_check_branch
          %7028 = sbr.rel (%p7026) target = $region36
        $region35: #{tpu_custom_call.1} parent=31 // pred_region
          %s7029 = sand.u32 %s57, 1
          %s7030 = scalar_lea.sflag [#allocation5], %s7029
          %s7031 = sand.u32 %s57, 1
          %s7032 = smul.addr %s7031, 32
          %s7033 = scalar_lea.vmem [#allocation4], %s7032
          %7034 = dma.done %s7030, 512
        $region36: #{tpu_custom_call.1} parent=31 // pred_fallthru
          _
      $region32: #{tpu_custom_call.1} parent=5 // pred_fallthru
        _
    $region6: #{tpu_custom_call.1} parent=1 // loop_footer
      %s21 = sadd.s32 1, %s17
    $region7: #{tpu_custom_call.1} parent=1 // loop_footer_branch
      %16 = sbr.rel target = $region3
    $region8: #{tpu_custom_call.1} parent=1 // loop_exit
      _
    %7035 = vsyncpa [#allocation5], 1
    %s7036 = scalar_lea.sflag [#allocation5], 1
    %7037 = vsyncpa %s7036, 1

</llo_original>
